<compile_context>
chip_gen: v7x
topology: tpu7x:2x2x1
jax: 0.10.0
libtpu: 0.0.40
codegen_flags: <defaults>
</compile_context>

<pallas_src>
import functools

import jax
import jax.numpy as jnp
from jax.experimental import pallas as pl
from jax.experimental.pallas import tpu as pltpu


# ------------------------------------------------------------------ Pallas kernels

def _gemm_cf_kernel(w_ref, x_ref, s_ref, b_ref, *rest, post_act, has_residual):
    """Y[Cout, tm] = (W[Cout,K] @ X[K,tm]) * scale + bias  (+ residual) (+ ReLU6)."""
    if has_residual:
        res_ref, o_ref = rest
    else:
        res_ref = None
        (o_ref,) = rest
    y = jnp.dot(w_ref[...], x_ref[...], preferred_element_type=jnp.float32)
    y = y * s_ref[...] + b_ref[...]                 # fused BatchNorm affine (alpha folded in)
    if post_act == "relu6":
        y = jnp.clip(y, 0.0, 6.0)
    if has_residual:
        y = y + res_ref[...]                        # fused residual add
    o_ref[...] = y.astype(o_ref.dtype)


def _tail_kernel(p_ref, wl_ref, sl_ref, bl_ref, wf_ref, fb_ref, o_ref):
    """Fused tail: (pooled @ W_last)*s+b -> ReLU6 -> @ W_fc + b_fc."""
    feat = jnp.dot(p_ref[...], wl_ref[...], preferred_element_type=jnp.float32)
    feat = jnp.clip(feat * sl_ref[...] + bl_ref[...], 0.0, 6.0)
    logits = jnp.dot(feat, wf_ref[...], preferred_element_type=jnp.float32) + fb_ref[...]
    o_ref[...] = logits.astype(o_ref.dtype)


# ------------------------------------------------------------------ GEMM wrapper

def _choose_tm(M, tm_max=512):
    """Fat M tiles, but keep >=2 grid blocks when possible (v7x dual TensorCore)."""
    half = -(-M // 2)
    tm = -(-half // 128) * 128
    return int(max(128, min(tm_max, tm)))


def gemm_channels_first(w_mat, x_patches, scale, bias, *, residual=None, post_act=None,
                        tm_max=512):
    """w_mat: (Cout, K), x_patches: (K, M), scale/bias: (Cout,), residual: (Cout, M) or None.

    Returns (Cout, M) float32. M sits on the lane axis -> lane-dense output stores.
    """
    Cout, K = w_mat.shape
    K2, M = x_patches.shape
    assert K == K2
    tm = _choose_tm(M, tm_max)
    Mp = pl.cdiv(M, tm) * tm
    if Mp != M:
        x_patches = jnp.pad(x_patches, ((0, 0), (0, Mp - M)))
        if residual is not None:
            residual = jnp.pad(residual, ((0, 0), (0, Mp - M)))
    has_res = residual is not None

    kernel = functools.partial(_gemm_cf_kernel, post_act=post_act, has_residual=has_res)

    in_specs = [
        pl.BlockSpec((Cout, K), lambda i: (0, 0)),      # weights: tiny, replicated
        pl.BlockSpec((K, tm), lambda i: (0, i)),        # patches block
        pl.BlockSpec((Cout, 1), lambda i: (0, 0)),      # fused BN scale
        pl.BlockSpec((Cout, 1), lambda i: (0, 0)),      # fused BN bias
    ]
    args = [w_mat, x_patches,
            scale.reshape(Cout, 1).astype(jnp.float32),
            bias.reshape(Cout, 1).astype(jnp.float32)]
    if has_res:
        in_specs.append(pl.BlockSpec((Cout, tm), lambda i: (0, i)))
        args.append(residual.astype(jnp.float32))

    out = pl.pallas_call(
        kernel,
        out_shape=jax.ShapeDtypeStruct((Cout, Mp), jnp.float32),
        grid_spec=pltpu.PrefetchScalarGridSpec(
            num_scalar_prefetch=0,
            grid=(Mp // tm,),
            in_specs=in_specs,
            out_specs=pl.BlockSpec((Cout, tm), lambda i: (0, i)),
        ),
        compiler_params=pltpu.CompilerParams(dimension_semantics=("parallel",)),
    )(*args)
    return out[:, :M] if Mp != M else out


# ------------------------------------------------------------------ layout glue (slicing only)

def im2col_cf(x_cf, ksize, stride, padding):
    """Channels-first im2col: (C, B, D, H, W) -> (C*kd*kh*kw, B*Do*Ho*Wo).

    Row order matches weight.reshape(Cout, Cin*kd*kh*kw); no transposes, only
    slicing / stacking / a contiguous reshape.
    """
    C, B, D, H, W = x_cf.shape
    kd, kh, kw = ksize
    sd, sh, sw = stride
    pd, ph, pw = padding
    xp = jnp.pad(x_cf, ((0, 0), (0, 0), (pd, pd), (ph, ph), (pw, pw)))
    Do = (D + 2 * pd - kd) // sd + 1
    Ho = (H + 2 * ph - kh) // sh + 1
    Wo = (W + 2 * pw - kw) // sw + 1
    taps = []
    for dz in range(kd):
        for dy in range(kh):
            for dx in range(kw):
                taps.append(xp[:, :,
                               dz:dz + sd * Do:sd,
                               dy:dy + sh * Ho:sh,
                               dx:dx + sw * Wo:sw])
    p = jnp.stack(taps, axis=1)                              # (C, k^3, B, Do, Ho, Wo)
    p = p.reshape(C * kd * kh * kw, B * Do * Ho * Wo)
    return p, (Do, Ho, Wo)


def conv3d_cf(x_cf, w, bn_scale, bn_bias, *, stride, padding,
              binary=False, residual=None, post_act=None):
    """Conv3d (no bias) + BatchNorm3d(eval) + optional ReLU6 + optional residual, fused.

    x_cf: (Cin, B, D, H, W) channels-first. Returns (Cout, B, Do, Ho, Wo).
    binary=True applies BinaryActivation(sign) to x and the HardBinaryConv weight rule.
    """
    Cout, Cin, kd, kh, kw = w.shape
    C, B, D, H, W = x_cf.shape
    assert C == Cin

    if binary:
        # HardBinaryConv: bw = alpha * sign(w); fold alpha into the BN scale so the
        # GEMM operands are exact +/-1/0 in bf16 (fast MXU path, exact under f32 accum).
        alpha = jnp.mean(jnp.abs(w), axis=(1, 2, 3, 4))                  # (Cout,)
        w_mat = jnp.sign(w).reshape(Cout, Cin * kd * kh * kw).astype(jnp.bfloat16)
        bn_scale = bn_scale * alpha
        x_cf = jnp.sign(x_cf).astype(jnp.bfloat16)                       # BinaryActivation
    else:
        w_mat = w.reshape(Cout, Cin * kd * kh * kw).astype(jnp.float32)

    if (kd, kh, kw) == (1, 1, 1) and stride == (1, 1, 1) and padding == (0, 0, 0):
        patches = x_cf.reshape(Cin, B * D * H * W)                       # no im2col needed
        Do, Ho, Wo = D, H, W
    else:
        patches, (Do, Ho, Wo) = im2col_cf(x_cf, (kd, kh, kw), stride, padding)

    res_flat = None if residual is None else residual.reshape(Cout, B * Do * Ho * Wo)
    y = gemm_channels_first(w_mat, patches, bn_scale, bn_bias,
                            residual=res_flat, post_act=post_act)
    return y.reshape(Cout, B, Do, Ho, Wo)


def avg_pool3d_2x_cf(x_cf):
    """nn.AvgPool3d(kernel_size=2, stride=(2,2,2)) on a channels-first tensor (floor)."""
    C, B, D, H, W = x_cf.shape
    Do, Ho, Wo = D // 2, H // 2, W // 2
    x_cf = x_cf[:, :, :Do * 2, :Ho * 2, :Wo * 2]
    return x_cf.reshape(C, B, Do, 2, Ho, 2, Wo, 2).mean(axis=(3, 5, 7))


# ------------------------------------------------------------------ BatchNorm (eval affine)

def bn_params(c):
    return {
        "gamma": jnp.ones((c,), jnp.float32),
        "beta": jnp.zeros((c,), jnp.float32),
        "mean": jnp.zeros((c,), jnp.float32),
        "var": jnp.ones((c,), jnp.float32),
    }


def bn_affine(bn, eps=1e-5):
    scale = bn["gamma"] / jnp.sqrt(bn["var"] + eps)
    return scale, bn["beta"] - bn["mean"] * scale


# ------------------------------------------------------------------ fused tail (pool head)

def tail_head(pooled, w_last, s_last, b_last, w_fc, b_fc):
    """pooled (B,6) -> 1x1x1 conv (6->320) + BN + ReLU6 -> Linear(320->nc). One Pallas call."""
    B, _ = pooled.shape
    LCn = w_last.shape[1]
    nc = w_fc.shape[1]
    Bp = -(-B // 8) * 8
    if Bp != B:
        pooled = jnp.pad(pooled, ((0, Bp - B), (0, 0)))
    out = pl.pallas_call(
        _tail_kernel,
        out_shape=jax.ShapeDtypeStruct((Bp, nc), jnp.float32),
    )(pooled.astype(jnp.float32), w_last.astype(jnp.float32),
      s_last.reshape(1, LCn).astype(jnp.float32), b_last.reshape(1, LCn).astype(jnp.float32),
      w_fc.astype(jnp.float32), b_fc.reshape(1, nc).astype(jnp.float32))
    return out[:B]


# ------------------------------------------------------------------ parameters (V1)

IC = 6          # int(16 * 0.4)
LC = 320        # last_channel (width_mult <= 1.0)


def init_params(key, num_classes):
    ks = jax.random.split(key, 12)

    def conv_w(k, cout, cin, kd, kh, kw):
        n = kd * kh * kw * cout                      # matches _initialize_weights
        return jax.random.normal(k, (cout, cin, kd, kh, kw), jnp.float32) * jnp.sqrt(2.0 / n)

    p = {
        "conv0_w": conv_w(ks[0], IC, 1, 3, 3, 3), "bn0": bn_params(6),
        # block1: expand_ratio=1, inp=oup=6, hidden=6, stride (1,1,1)
        "b1_conv1_w": conv_w(ks[1], 6, 6, 3, 3, 3), "b1_bn1": bn_params(6),
        "b1_conv2_w": conv_w(ks[2], 6, 6, 1, 1, 1), "b1_bn2": bn_params(6),
        # block2: expand_ratio=2, inp=6, oup=6, hidden=12, stride (2,2,2)
        "b2_conv1_w": conv_w(ks[3], 12, 6, 1, 1, 1), "b2_bn1": bn_params(12),
        "b2_conv2_w": conv_w(ks[4], 12, 12, 3, 3, 3), "b2_bn2": bn_params(12),
        "b2_conv3_w": conv_w(ks[5], 6, 12, 1, 1, 1), "b2_bn3": bn_params(6),
        # block3: expand_ratio=2, inp=6, oup=6, hidden=12, stride (1,1,1)
        "b3_conv1_w": conv_w(ks[6], 12, 6, 1, 1, 1), "b3_bn1": bn_params(12),
        "b3_conv2_w": conv_w(ks[7], 12, 12, 3, 3, 3), "b3_bn2": bn_params(12),
        "b3_conv3_w": conv_w(ks[8], 6, 12, 1, 1, 1), "b3_bn3": bn_params(6),
        # last_layer: Conv3d(6, 320, 1) + BN + ReLU6
        "last_w": conv_w(ks[9], LC, 6, 1, 1, 1), "bn_last": bn_params(LC),
        # classifier: Linear(320, num_classes)
        "fc_w": jax.random.normal(ks[10], (num_classes, LC), jnp.float32) * 0.01,
        "fc_b": jnp.zeros((num_classes,), jnp.float32),
    }
    return p


# ------------------------------------------------------------------ forward

def eeegnet_b_forward(params, x):
    # x: (B, 1, D, H, W) float32 (NCDHW). Convert once to channels-first (C, B, D, H, W).
    x_cf = jnp.transpose(x, (1, 0, 2, 3, 4))

    # features[0]: Conv3d(1, 6, k=3, stride=(1,2,2), pad=1) + BN + ReLU6
    s0, b0 = bn_affine(params["bn0"])
    f0 = conv3d_cf(x_cf, params["conv0_w"], s0, b0,
                   stride=(1, 2, 2), padding=(1, 1, 1), post_act="relu6")

    # block1 (expand=1, stride 1): out1 = f0 + BN(HBC1x1(sign(BN(HBC3x3(sign(f0))))))
    s, b = bn_affine(params["b1_bn1"])
    y = conv3d_cf(f0, params["b1_conv1_w"], s, b,
                  stride=(1, 1, 1), padding=(1, 1, 1), binary=True)
    s, b = bn_affine(params["b1_bn2"])
    out1 = conv3d_cf(y, params["b1_conv2_w"], s, b,
                     stride=(1, 1, 1), padding=(0, 0, 0), binary=True, residual=f0)

    # block2 (expand=2, stride 2): residual path is AvgPool3d(2, 2); add fused in last conv
    res2 = avg_pool3d_2x_cf(out1)
    s, b = bn_affine(params["b2_bn1"])
    y = conv3d_cf(out1, params["b2_conv1_w"], s, b,
                  stride=(1, 1, 1), padding=(0, 0, 0), binary=True)
    s, b = bn_affine(params["b2_bn2"])
    y = conv3d_cf(y, params["b2_conv2_w"], s, b,
                  stride=(2, 2, 2), padding=(1, 1, 1), binary=True)
    s, b = bn_affine(params["b2_bn3"])
    out2 = conv3d_cf(y, params["b2_conv3_w"], s, b,
                     stride=(1, 1, 1), padding=(0, 0, 0), binary=True, residual=res2)

    # block3 (expand=2, stride 1): identity residual fused into the last conv
    s, b = bn_affine(params["b3_bn1"])
    y = conv3d_cf(out2, params["b3_conv1_w"], s, b,
                  stride=(1, 1, 1), padding=(0, 0, 0), binary=True)
    s, b = bn_affine(params["b3_bn2"])
    y = conv3d_cf(y, params["b3_conv2_w"], s, b,
                  stride=(1, 1, 1), padding=(1, 1, 1), binary=True)
    s, b = bn_affine(params["b3_bn3"])
    out3 = conv3d_cf(y, params["b3_conv3_w"], s, b,
                     stride=(1, 1, 1), padding=(0, 0, 0), binary=True, residual=out2)

    # F.avg_pool3d over the full remaining spatial extent -> (B, 6). Tiny reduction (glue).
    pooled = jnp.mean(out3, axis=(2, 3, 4)).T                # (6, B) -> (B, 6)

    # Fused tail: last_layer (1x1x1 conv == matmul) + BN + ReLU6, Dropout (identity), Linear.
    sL, bL = bn_affine(params["bn_last"])
    w_last = params["last_w"].reshape(LC, 6).T               # (6, 320)
    logits = tail_head(pooled, w_last, sL, bL, params["fc_w"].T, params["fc_b"])
    return logits


# ------------------------------------------------------------------ main

if __name__ == "__main__":
    key = jax.random.PRNGKey(0)
    k_param, k_x = jax.random.split(key)

    NUM_CLASSES = 16
    params = init_params(k_param, NUM_CLASSES)

    # Small input consistent with the module's NCDHW 3-D conv stack.
    B, C, D, H, W = 2, 1, 8, 16, 16
    x = jax.random.normal(k_x, (B, C, D, H, W), jnp.float32)

    fwd = jax.jit(eeegnet_b_forward)
    logits = fwd(params, x)
    jax.block_until_ready(logits)

    assert logits.shape == (B, NUM_CLASSES)
    assert bool(jnp.all(jnp.isfinite(logits)))
    print("KERNEL_OK")
</pallas_src>

<mosaic_0001>
module attributes {stable_mosaic.version = 11 : i64} {
  func.func @_gemm_cf_kernel(%arg0: i32, %arg1: memref<6x27xf32, #tpu.memory_space<vmem>>, %arg2: memref<27x512xf32, #tpu.memory_space<vmem>>, %arg3: memref<6x1xf32, #tpu.memory_space<vmem>>, %arg4: memref<6x1xf32, #tpu.memory_space<vmem>>, %arg5: memref<6x512xf32, #tpu.memory_space<vmem>>) attributes {dimension_semantics = [#tpu.dimension_semantics<parallel>], iteration_bounds = array<i64: 2>, scalar_prefetch = 0 : i64, scratch_operands = 0 : i64, tpu.core_type = #tpu.core_type<tc>, window_params = [{pipeline_mode = #tpu.pipeline_mode<synchronous>, transform_indices = @transform_0, window_bounds = array<i64: 6, 27>}, {transform_indices = @transform_1, window_bounds = array<i64: 27, 512>}, {pipeline_mode = #tpu.pipeline_mode<synchronous>, transform_indices = @transform_2, window_bounds = array<i64: 6, 1>}, {pipeline_mode = #tpu.pipeline_mode<synchronous>, transform_indices = @transform_3, window_bounds = array<i64: 6, 1>}, {transform_indices = @transform_4, window_bounds = array<i64: 6, 512>}]} {
    %c0 = arith.constant 0 : index
    %c0_0 = arith.constant 0 : index
    %0 = vector.load %arg1[%c0, %c0_0] : memref<6x27xf32, #tpu.memory_space<vmem>>, vector<6x27xf32>
    %c0_1 = arith.constant 0 : index
    %c0_2 = arith.constant 0 : index
    %1 = vector.load %arg2[%c0_1, %c0_2] : memref<27x512xf32, #tpu.memory_space<vmem>>, vector<27x512xf32>
    %cst = arith.constant dense<0.000000e+00> : vector<6x512xf32>
    %2 = tpu.matmul %0, %1, %cst {dimension_numbers = #tpu.dot_dimension_numbers<[1], [0], [0], [1], [0, 0, 1, 1], [], []>} : vector<6x27xf32>, vector<27x512xf32>, vector<6x512xf32> -> vector<6x512xf32>
    %c0_3 = arith.constant 0 : index
    %c0_4 = arith.constant 0 : index
    %3 = vector.load %arg3[%c0_3, %c0_4] : memref<6x1xf32, #tpu.memory_space<vmem>>, vector<6x1xf32>
    %4 = vector.broadcast %3 : vector<6x1xf32> to vector<6x512xf32>
    %5 = arith.mulf %2, %4 : vector<6x512xf32>
    %c0_5 = arith.constant 0 : index
    %c0_6 = arith.constant 0 : index
    %6 = vector.load %arg4[%c0_5, %c0_6] : memref<6x1xf32, #tpu.memory_space<vmem>>, vector<6x1xf32>
    %7 = vector.broadcast %6 : vector<6x1xf32> to vector<6x512xf32>
    %8 = arith.addf %5, %7 : vector<6x512xf32>
    %cst_7 = arith.constant 0.000000e+00 : f32
    %cst_8 = arith.constant 6.000000e+00 : f32
    %9 = vector.broadcast %cst_7 : f32 to vector<6x512xf32>
    %10 = arith.maximumf %9, %8 : vector<6x512xf32>
    %11 = vector.broadcast %cst_8 : f32 to vector<6x512xf32>
    %12 = arith.minimumf %11, %10 : vector<6x512xf32>
    %c0_9 = arith.constant 0 : index
    %c0_10 = arith.constant 0 : index
    %13 = vector.load %arg5[%c0_9, %c0_10] : memref<6x512xf32, #tpu.memory_space<vmem>>, vector<6x512xf32>
    tpu.vector_store %arg5[%c0_9, %c0_10], %12 {strides = array<i32>} : memref<6x512xf32, #tpu.memory_space<vmem>>, vector<6x512xf32>,
    return
  }
  func.func @transform_0(%arg0: i32) -> (i32, i32) {
    %c0_i32 = arith.constant 0 : i32
    %c0_i32_0 = arith.constant 0 : i32
    %c0_i32_1 = arith.constant 0 : i32
    return %c0_i32, %c0_i32_0 : i32, i32
  }
  func.func @transform_1(%arg0: i32) -> (i32, i32) {
    %c0_i32 = arith.constant 0 : i32
    %c0_i32_0 = arith.constant 0 : i32
    return %c0_i32, %arg0 : i32, i32
  }
  func.func @transform_2(%arg0: i32) -> (i32, i32) {
    %c0_i32 = arith.constant 0 : i32
    %c0_i32_0 = arith.constant 0 : i32
    %c0_i32_1 = arith.constant 0 : i32
    return %c0_i32, %c0_i32_0 : i32, i32
  }
  func.func @transform_3(%arg0: i32) -> (i32, i32) {
    %c0_i32 = arith.constant 0 : i32
    %c0_i32_0 = arith.constant 0 : i32
    %c0_i32_1 = arith.constant 0 : i32
    return %c0_i32, %c0_i32_0 : i32, i32
  }
  func.func @transform_4(%arg0: i32) -> (i32, i32) {
    %c0_i32 = arith.constant 0 : i32
    %c0_i32_0 = arith.constant 0 : i32
    return %c0_i32, %arg0 : i32, i32
  }
}

module attributes {stable_mosaic.version = 11 : i64} {
  func.func @_gemm_cf_kernel(%arg0: i32, %arg1: memref<6x162xbf16, #tpu.memory_space<vmem>>, %arg2: memref<162x512xbf16, #tpu.memory_space<vmem>>, %arg3: memref<6x1xf32, #tpu.memory_space<vmem>>, %arg4: memref<6x1xf32, #tpu.memory_space<vmem>>, %arg5: memref<6x512xf32, #tpu.memory_space<vmem>>) attributes {dimension_semantics = [#tpu.dimension_semantics<parallel>], iteration_bounds = array<i64: 2>, scalar_prefetch = 0 : i64, scratch_operands = 0 : i64, tpu.core_type = #tpu.core_type<tc>, window_params = [{pipeline_mode = #tpu.pipeline_mode<synchronous>, transform_indices = @transform_0, window_bounds = array<i64: 6, 162>}, {transform_indices = @transform_1, window_bounds = array<i64: 162, 512>}, {pipeline_mode = #tpu.pipeline_mode<synchronous>, transform_indices = @transform_2, window_bounds = array<i64: 6, 1>}, {pipeline_mode = #tpu.pipeline_mode<synchronous>, transform_indices = @transform_3, window_bounds = array<i64: 6, 1>}, {transform_indices = @transform_4, window_bounds = array<i64: 6, 512>}]} {
    %c0 = arith.constant 0 : index
    %c0_0 = arith.constant 0 : index
    %0 = vector.load %arg1[%c0, %c0_0] : memref<6x162xbf16, #tpu.memory_space<vmem>>, vector<6x162xbf16>
    %c0_1 = arith.constant 0 : index
    %c0_2 = arith.constant 0 : index
    %1 = vector.load %arg2[%c0_1, %c0_2] : memref<162x512xbf16, #tpu.memory_space<vmem>>, vector<162x512xbf16>
    %cst = arith.constant dense<0.000000e+00> : vector<6x512xf32>
    %2 = tpu.matmul %0, %1, %cst {dimension_numbers = #tpu.dot_dimension_numbers<[1], [0], [0], [1], [0, 0, 1, 1], [], []>} : vector<6x162xbf16>, vector<162x512xbf16>, vector<6x512xf32> -> vector<6x512xf32>
    %c0_3 = arith.constant 0 : index
    %c0_4 = arith.constant 0 : index
    %3 = vector.load %arg3[%c0_3, %c0_4] : memref<6x1xf32, #tpu.memory_space<vmem>>, vector<6x1xf32>
    %4 = vector.broadcast %3 : vector<6x1xf32> to vector<6x512xf32>
    %5 = arith.mulf %2, %4 : vector<6x512xf32>
    %c0_5 = arith.constant 0 : index
    %c0_6 = arith.constant 0 : index
    %6 = vector.load %arg4[%c0_5, %c0_6] : memref<6x1xf32, #tpu.memory_space<vmem>>, vector<6x1xf32>
    %7 = vector.broadcast %6 : vector<6x1xf32> to vector<6x512xf32>
    %8 = arith.addf %5, %7 : vector<6x512xf32>
    %c0_7 = arith.constant 0 : index
    %c0_8 = arith.constant 0 : index
    %9 = vector.load %arg5[%c0_7, %c0_8] : memref<6x512xf32, #tpu.memory_space<vmem>>, vector<6x512xf32>
    tpu.vector_store %arg5[%c0_7, %c0_8], %8 {strides = array<i32>} : memref<6x512xf32, #tpu.memory_space<vmem>>, vector<6x512xf32>,
    return
  }
  func.func @transform_0(%arg0: i32) -> (i32, i32) {
    %c0_i32 = arith.constant 0 : i32
    %c0_i32_0 = arith.constant 0 : i32
    %c0_i32_1 = arith.constant 0 : i32
    return %c0_i32, %c0_i32_0 : i32, i32
  }
  func.func @transform_1(%arg0: i32) -> (i32, i32) {
    %c0_i32 = arith.constant 0 : i32
    %c0_i32_0 = arith.constant 0 : i32
    return %c0_i32, %arg0 : i32, i32
  }
  func.func @transform_2(%arg0: i32) -> (i32, i32) {
    %c0_i32 = arith.constant 0 : i32
    %c0_i32_0 = arith.constant 0 : i32
    %c0_i32_1 = arith.constant 0 : i32
    return %c0_i32, %c0_i32_0 : i32, i32
  }
  func.func @transform_3(%arg0: i32) -> (i32, i32) {
    %c0_i32 = arith.constant 0 : i32
    %c0_i32_0 = arith.constant 0 : i32
    %c0_i32_1 = arith.constant 0 : i32
    return %c0_i32, %c0_i32_0 : i32, i32
  }
  func.func @transform_4(%arg0: i32) -> (i32, i32) {
    %c0_i32 = arith.constant 0 : i32
    %c0_i32_0 = arith.constant 0 : i32
    return %c0_i32, %arg0 : i32, i32
  }
}

module attributes {stable_mosaic.version = 11 : i64} {
  func.func @_gemm_cf_kernel(%arg0: i32, %arg1: memref<6x6xbf16, #tpu.memory_space<vmem>>, %arg2: memref<6x512xbf16, #tpu.memory_space<vmem>>, %arg3: memref<6x1xf32, #tpu.memory_space<vmem>>, %arg4: memref<6x1xf32, #tpu.memory_space<vmem>>, %arg5: memref<6x512xf32, #tpu.memory_space<vmem>>, %arg6: memref<6x512xf32, #tpu.memory_space<vmem>>) attributes {dimension_semantics = [#tpu.dimension_semantics<parallel>], iteration_bounds = array<i64: 2>, scalar_prefetch = 0 : i64, scratch_operands = 0 : i64, tpu.core_type = #tpu.core_type<tc>, window_params = [{pipeline_mode = #tpu.pipeline_mode<synchronous>, transform_indices = @transform_0, window_bounds = array<i64: 6, 6>}, {transform_indices = @transform_1, window_bounds = array<i64: 6, 512>}, {pipeline_mode = #tpu.pipeline_mode<synchronous>, transform_indices = @transform_2, window_bounds = array<i64: 6, 1>}, {pipeline_mode = #tpu.pipeline_mode<synchronous>, transform_indices = @transform_3, window_bounds = array<i64: 6, 1>}, {transform_indices = @transform_4, window_bounds = array<i64: 6, 512>}, {transform_indices = @transform_5, window_bounds = array<i64: 6, 512>}]} {
    %c0 = arith.constant 0 : index
    %c0_0 = arith.constant 0 : index
    %0 = vector.load %arg1[%c0, %c0_0] : memref<6x6xbf16, #tpu.memory_space<vmem>>, vector<6x6xbf16>
    %c0_1 = arith.constant 0 : index
    %c0_2 = arith.constant 0 : index
    %1 = vector.load %arg2[%c0_1, %c0_2] : memref<6x512xbf16, #tpu.memory_space<vmem>>, vector<6x512xbf16>
    %cst = arith.constant dense<0.000000e+00> : vector<6x512xf32>
    %2 = tpu.matmul %0, %1, %cst {dimension_numbers = #tpu.dot_dimension_numbers<[1], [0], [0], [1], [0, 0, 1, 1], [], []>} : vector<6x6xbf16>, vector<6x512xbf16>, vector<6x512xf32> -> vector<6x512xf32>
    %c0_3 = arith.constant 0 : index
    %c0_4 = arith.constant 0 : index
    %3 = vector.load %arg3[%c0_3, %c0_4] : memref<6x1xf32, #tpu.memory_space<vmem>>, vector<6x1xf32>
    %4 = vector.broadcast %3 : vector<6x1xf32> to vector<6x512xf32>
    %5 = arith.mulf %2, %4 : vector<6x512xf32>
    %c0_5 = arith.constant 0 : index
    %c0_6 = arith.constant 0 : index
    %6 = vector.load %arg4[%c0_5, %c0_6] : memref<6x1xf32, #tpu.memory_space<vmem>>, vector<6x1xf32>
    %7 = vector.broadcast %6 : vector<6x1xf32> to vector<6x512xf32>
    %8 = arith.addf %5, %7 : vector<6x512xf32>
    %c0_7 = arith.constant 0 : index
    %c0_8 = arith.constant 0 : index
    %9 = vector.load %arg5[%c0_7, %c0_8] : memref<6x512xf32, #tpu.memory_space<vmem>>, vector<6x512xf32>
    %10 = arith.addf %8, %9 : vector<6x512xf32>
    %c0_9 = arith.constant 0 : index
    %c0_10 = arith.constant 0 : index
    %11 = vector.load %arg6[%c0_9, %c0_10] : memref<6x512xf32, #tpu.memory_space<vmem>>, vector<6x512xf32>
    tpu.vector_store %arg6[%c0_9, %c0_10], %10 {strides = array<i32>} : memref<6x512xf32, #tpu.memory_space<vmem>>, vector<6x512xf32>,
    return
  }
  func.func @transform_0(%arg0: i32) -> (i32, i32) {
    %c0_i32 = arith.constant 0 : i32
    %c0_i32_0 = arith.constant 0 : i32
    %c0_i32_1 = arith.constant 0 : i32
    return %c0_i32, %c0_i32_0 : i32, i32
  }
  func.func @transform_1(%arg0: i32) -> (i32, i32) {
    %c0_i32 = arith.constant 0 : i32
    %c0_i32_0 = arith.constant 0 : i32
    return %c0_i32, %arg0 : i32, i32
  }
  func.func @transform_2(%arg0: i32) -> (i32, i32) {
    %c0_i32 = arith.constant 0 : i32
    %c0_i32_0 = arith.constant 0 : i32
    %c0_i32_1 = arith.constant 0 : i32
    return %c0_i32, %c0_i32_0 : i32, i32
  }
  func.func @transform_3(%arg0: i32) -> (i32, i32) {
    %c0_i32 = arith.constant 0 : i32
    %c0_i32_0 = arith.constant 0 : i32
    %c0_i32_1 = arith.constant 0 : i32
    return %c0_i32, %c0_i32_0 : i32, i32
  }
  func.func @transform_4(%arg0: i32) -> (i32, i32) {
    %c0_i32 = arith.constant 0 : i32
    %c0_i32_0 = arith.constant 0 : i32
    return %c0_i32, %arg0 : i32, i32
  }
  func.func @transform_5(%arg0: i32) -> (i32, i32) {
    %c0_i32 = arith.constant 0 : i32
    %c0_i32_0 = arith.constant 0 : i32
    return %c0_i32, %arg0 : i32, i32
  }
}

module attributes {stable_mosaic.version = 11 : i64} {
  func.func @_gemm_cf_kernel(%arg0: i32, %arg1: memref<12x6xbf16, #tpu.memory_space<vmem>>, %arg2: memref<6x512xbf16, #tpu.memory_space<vmem>>, %arg3: memref<12x1xf32, #tpu.memory_space<vmem>>, %arg4: memref<12x1xf32, #tpu.memory_space<vmem>>, %arg5: memref<12x512xf32, #tpu.memory_space<vmem>>) attributes {dimension_semantics = [#tpu.dimension_semantics<parallel>], iteration_bounds = array<i64: 2>, scalar_prefetch = 0 : i64, scratch_operands = 0 : i64, tpu.core_type = #tpu.core_type<tc>, window_params = [{pipeline_mode = #tpu.pipeline_mode<synchronous>, transform_indices = @transform_0, window_bounds = array<i64: 12, 6>}, {transform_indices = @transform_1, window_bounds = array<i64: 6, 512>}, {pipeline_mode = #tpu.pipeline_mode<synchronous>, transform_indices = @transform_2, window_bounds = array<i64: 12, 1>}, {pipeline_mode = #tpu.pipeline_mode<synchronous>, transform_indices = @transform_3, window_bounds = array<i64: 12, 1>}, {transform_indices = @transform_4, window_bounds = array<i64: 12, 512>}]} {
    %c0 = arith.constant 0 : index
    %c0_0 = arith.constant 0 : index
    %0 = vector.load %arg1[%c0, %c0_0] : memref<12x6xbf16, #tpu.memory_space<vmem>>, vector<12x6xbf16>
    %c0_1 = arith.constant 0 : index
    %c0_2 = arith.constant 0 : index
    %1 = vector.load %arg2[%c0_1, %c0_2] : memref<6x512xbf16, #tpu.memory_space<vmem>>, vector<6x512xbf16>
    %cst = arith.constant dense<0.000000e+00> : vector<12x512xf32>
    %2 = tpu.matmul %0, %1, %cst {dimension_numbers = #tpu.dot_dimension_numbers<[1], [0], [0], [1], [0, 0, 1, 1], [], []>} : vector<12x6xbf16>, vector<6x512xbf16>, vector<12x512xf32> -> vector<12x512xf32>
    %c0_3 = arith.constant 0 : index
    %c0_4 = arith.constant 0 : index
    %3 = vector.load %arg3[%c0_3, %c0_4] : memref<12x1xf32, #tpu.memory_space<vmem>>, vector<12x1xf32>
    %4 = vector.broadcast %3 : vector<12x1xf32> to vector<12x512xf32>
    %5 = arith.mulf %2, %4 : vector<12x512xf32>
    %c0_5 = arith.constant 0 : index
    %c0_6 = arith.constant 0 : index
    %6 = vector.load %arg4[%c0_5, %c0_6] : memref<12x1xf32, #tpu.memory_space<vmem>>, vector<12x1xf32>
    %7 = vector.broadcast %6 : vector<12x1xf32> to vector<12x512xf32>
    %8 = arith.addf %5, %7 : vector<12x512xf32>
    %c0_7 = arith.constant 0 : index
    %c0_8 = arith.constant 0 : index
    %9 = vector.load %arg5[%c0_7, %c0_8] : memref<12x512xf32, #tpu.memory_space<vmem>>, vector<12x512xf32>
    tpu.vector_store %arg5[%c0_7, %c0_8], %8 {strides = array<i32>} : memref<12x512xf32, #tpu.memory_space<vmem>>, vector<12x512xf32>,
    return
  }
  func.func @transform_0(%arg0: i32) -> (i32, i32) {
    %c0_i32 = arith.constant 0 : i32
    %c0_i32_0 = arith.constant 0 : i32
    %c0_i32_1 = arith.constant 0 : i32
    return %c0_i32, %c0_i32_0 : i32, i32
  }
  func.func @transform_1(%arg0: i32) -> (i32, i32) {
    %c0_i32 = arith.constant 0 : i32
    %c0_i32_0 = arith.constant 0 : i32
    return %c0_i32, %arg0 : i32, i32
  }
  func.func @transform_2(%arg0: i32) -> (i32, i32) {
    %c0_i32 = arith.constant 0 : i32
    %c0_i32_0 = arith.constant 0 : i32
    %c0_i32_1 = arith.constant 0 : i32
    return %c0_i32, %c0_i32_0 : i32, i32
  }
  func.func @transform_3(%arg0: i32) -> (i32, i32) {
    %c0_i32 = arith.constant 0 : i32
    %c0_i32_0 = arith.constant 0 : i32
    %c0_i32_1 = arith.constant 0 : i32
    return %c0_i32, %c0_i32_0 : i32, i32
  }
  func.func @transform_4(%arg0: i32) -> (i32, i32) {
    %c0_i32 = arith.constant 0 : i32
    %c0_i32_0 = arith.constant 0 : i32
    return %c0_i32, %arg0 : i32, i32
  }
}

module attributes {stable_mosaic.version = 11 : i64} {
  func.func @_gemm_cf_kernel(%arg0: i32, %arg1: memref<12x324xbf16, #tpu.memory_space<vmem>>, %arg2: memref<324x128xbf16, #tpu.memory_space<vmem>>, %arg3: memref<12x1xf32, #tpu.memory_space<vmem>>, %arg4: memref<12x1xf32, #tpu.memory_space<vmem>>, %arg5: memref<12x128xf32, #tpu.memory_space<vmem>>) attributes {dimension_semantics = [#tpu.dimension_semantics<parallel>], iteration_bounds = array<i64: 1>, scalar_prefetch = 0 : i64, scratch_operands = 0 : i64, tpu.core_type = #tpu.core_type<tc>, window_params = [{pipeline_mode = #tpu.pipeline_mode<synchronous>, transform_indices = @transform_0, window_bounds = array<i64: 12, 324>}, {transform_indices = @transform_1, window_bounds = array<i64: 324, 128>}, {pipeline_mode = #tpu.pipeline_mode<synchronous>, transform_indices = @transform_2, window_bounds = array<i64: 12, 1>}, {pipeline_mode = #tpu.pipeline_mode<synchronous>, transform_indices = @transform_3, window_bounds = array<i64: 12, 1>}, {transform_indices = @transform_4, window_bounds = array<i64: 12, 128>}]} {
    %c0 = arith.constant 0 : index
    %c0_0 = arith.constant 0 : index
    %0 = vector.load %arg1[%c0, %c0_0] : memref<12x324xbf16, #tpu.memory_space<vmem>>, vector<12x324xbf16>
    %c0_1 = arith.constant 0 : index
    %c0_2 = arith.constant 0 : index
    %1 = vector.load %arg2[%c0_1, %c0_2] : memref<324x128xbf16, #tpu.memory_space<vmem>>, vector<324x128xbf16>
    %cst = arith.constant dense<0.000000e+00> : vector<12x128xf32>
    %2 = tpu.matmul %0, %1, %cst {dimension_numbers = #tpu.dot_dimension_numbers<[1], [0], [0], [1], [0, 0, 1, 1], [], []>} : vector<12x324xbf16>, vector<324x128xbf16>, vector<12x128xf32> -> vector<12x128xf32>
    %c0_3 = arith.constant 0 : index
    %c0_4 = arith.constant 0 : index
    %3 = vector.load %arg3[%c0_3, %c0_4] : memref<12x1xf32, #tpu.memory_space<vmem>>, vector<12x1xf32>
    %4 = vector.broadcast %3 : vector<12x1xf32> to vector<12x128xf32>
    %5 = arith.mulf %2, %4 : vector<12x128xf32>
    %c0_5 = arith.constant 0 : index
    %c0_6 = arith.constant 0 : index
    %6 = vector.load %arg4[%c0_5, %c0_6] : memref<12x1xf32, #tpu.memory_space<vmem>>, vector<12x1xf32>
    %7 = vector.broadcast %6 : vector<12x1xf32> to vector<12x128xf32>
    %8 = arith.addf %5, %7 : vector<12x128xf32>
    %c0_7 = arith.constant 0 : index
    %c0_8 = arith.constant 0 : index
    %9 = vector.load %arg5[%c0_7, %c0_8] : memref<12x128xf32, #tpu.memory_space<vmem>>, vector<12x128xf32>
    tpu.vector_store %arg5[%c0_7, %c0_8], %8 {strides = array<i32>} : memref<12x128xf32, #tpu.memory_space<vmem>>, vector<12x128xf32>,
    return
  }
  func.func @transform_0(%arg0: i32) -> (i32, i32) {
    %c0_i32 = arith.constant 0 : i32
    %c0_i32_0 = arith.constant 0 : i32
    %c0_i32_1 = arith.constant 0 : i32
    return %c0_i32, %c0_i32_0 : i32, i32
  }
  func.func @transform_1(%arg0: i32) -> (i32, i32) {
    %c0_i32 = arith.constant 0 : i32
    %c0_i32_0 = arith.constant 0 : i32
    return %c0_i32, %arg0 : i32, i32
  }
  func.func @transform_2(%arg0: i32) -> (i32, i32) {
    %c0_i32 = arith.constant 0 : i32
    %c0_i32_0 = arith.constant 0 : i32
    %c0_i32_1 = arith.constant 0 : i32
    return %c0_i32, %c0_i32_0 : i32, i32
  }
  func.func @transform_3(%arg0: i32) -> (i32, i32) {
    %c0_i32 = arith.constant 0 : i32
    %c0_i32_0 = arith.constant 0 : i32
    %c0_i32_1 = arith.constant 0 : i32
    return %c0_i32, %c0_i32_0 : i32, i32
  }
  func.func @transform_4(%arg0: i32) -> (i32, i32) {
    %c0_i32 = arith.constant 0 : i32
    %c0_i32_0 = arith.constant 0 : i32
    return %c0_i32, %arg0 : i32, i32
  }
}

module attributes {stable_mosaic.version = 11 : i64} {
  func.func @_gemm_cf_kernel(%arg0: i32, %arg1: memref<6x12xbf16, #tpu.memory_space<vmem>>, %arg2: memref<12x128xbf16, #tpu.memory_space<vmem>>, %arg3: memref<6x1xf32, #tpu.memory_space<vmem>>, %arg4: memref<6x1xf32, #tpu.memory_space<vmem>>, %arg5: memref<6x128xf32, #tpu.memory_space<vmem>>, %arg6: memref<6x128xf32, #tpu.memory_space<vmem>>) attributes {dimension_semantics = [#tpu.dimension_semantics<parallel>], iteration_bounds = array<i64: 1>, scalar_prefetch = 0 : i64, scratch_operands = 0 : i64, tpu.core_type = #tpu.core_type<tc>, window_params = [{pipeline_mode = #tpu.pipeline_mode<synchronous>, transform_indices = @transform_0, window_bounds = array<i64: 6, 12>}, {transform_indices = @transform_1, window_bounds = array<i64: 12, 128>}, {pipeline_mode = #tpu.pipeline_mode<synchronous>, transform_indices = @transform_2, window_bounds = array<i64: 6, 1>}, {pipeline_mode = #tpu.pipeline_mode<synchronous>, transform_indices = @transform_3, window_bounds = array<i64: 6, 1>}, {transform_indices = @transform_4, window_bounds = array<i64: 6, 128>}, {transform_indices = @transform_5, window_bounds = array<i64: 6, 128>}]} {
    %c0 = arith.constant 0 : index
    %c0_0 = arith.constant 0 : index
    %0 = vector.load %arg1[%c0, %c0_0] : memref<6x12xbf16, #tpu.memory_space<vmem>>, vector<6x12xbf16>
    %c0_1 = arith.constant 0 : index
    %c0_2 = arith.constant 0 : index
    %1 = vector.load %arg2[%c0_1, %c0_2] : memref<12x128xbf16, #tpu.memory_space<vmem>>, vector<12x128xbf16>
    %cst = arith.constant dense<0.000000e+00> : vector<6x128xf32>
    %2 = tpu.matmul %0, %1, %cst {dimension_numbers = #tpu.dot_dimension_numbers<[1], [0], [0], [1], [0, 0, 1, 1], [], []>} : vector<6x12xbf16>, vector<12x128xbf16>, vector<6x128xf32> -> vector<6x128xf32>
    %c0_3 = arith.constant 0 : index
    %c0_4 = arith.constant 0 : index
    %3 = vector.load %arg3[%c0_3, %c0_4] : memref<6x1xf32, #tpu.memory_space<vmem>>, vector<6x1xf32>
    %4 = vector.broadcast %3 : vector<6x1xf32> to vector<6x128xf32>
    %5 = arith.mulf %2, %4 : vector<6x128xf32>
    %c0_5 = arith.constant 0 : index
    %c0_6 = arith.constant 0 : index
    %6 = vector.load %arg4[%c0_5, %c0_6] : memref<6x1xf32, #tpu.memory_space<vmem>>, vector<6x1xf32>
    %7 = vector.broadcast %6 : vector<6x1xf32> to vector<6x128xf32>
    %8 = arith.addf %5, %7 : vector<6x128xf32>
    %c0_7 = arith.constant 0 : index
    %c0_8 = arith.constant 0 : index
    %9 = vector.load %arg5[%c0_7, %c0_8] : memref<6x128xf32, #tpu.memory_space<vmem>>, vector<6x128xf32>
    %10 = arith.addf %8, %9 : vector<6x128xf32>
    %c0_9 = arith.constant 0 : index
    %c0_10 = arith.constant 0 : index
    %11 = vector.load %arg6[%c0_9, %c0_10] : memref<6x128xf32, #tpu.memory_space<vmem>>, vector<6x128xf32>
    tpu.vector_store %arg6[%c0_9, %c0_10], %10 {strides = array<i32>} : memref<6x128xf32, #tpu.memory_space<vmem>>, vector<6x128xf32>,
    return
  }
  func.func @transform_0(%arg0: i32) -> (i32, i32) {
    %c0_i32 = arith.constant 0 : i32
    %c0_i32_0 = arith.constant 0 : i32
    %c0_i32_1 = arith.constant 0 : i32
    return %c0_i32, %c0_i32_0 : i32, i32
  }
  func.func @transform_1(%arg0: i32) -> (i32, i32) {
    %c0_i32 = arith.constant 0 : i32
    %c0_i32_0 = arith.constant 0 : i32
    return %c0_i32, %arg0 : i32, i32
  }
  func.func @transform_2(%arg0: i32) -> (i32, i32) {
    %c0_i32 = arith.constant 0 : i32
    %c0_i32_0 = arith.constant 0 : i32
    %c0_i32_1 = arith.constant 0 : i32
    return %c0_i32, %c0_i32_0 : i32, i32
  }
  func.func @transform_3(%arg0: i32) -> (i32, i32) {
    %c0_i32 = arith.constant 0 : i32
    %c0_i32_0 = arith.constant 0 : i32
    %c0_i32_1 = arith.constant 0 : i32
    return %c0_i32, %c0_i32_0 : i32, i32
  }
  func.func @transform_4(%arg0: i32) -> (i32, i32) {
    %c0_i32 = arith.constant 0 : i32
    %c0_i32_0 = arith.constant 0 : i32
    return %c0_i32, %arg0 : i32, i32
  }
  func.func @transform_5(%arg0: i32) -> (i32, i32) {
    %c0_i32 = arith.constant 0 : i32
    %c0_i32_0 = arith.constant 0 : i32
    return %c0_i32, %arg0 : i32, i32
  }
}

module attributes {stable_mosaic.version = 11 : i64} {
  func.func @_gemm_cf_kernel(%arg0: i32, %arg1: memref<12x6xbf16, #tpu.memory_space<vmem>>, %arg2: memref<6x128xbf16, #tpu.memory_space<vmem>>, %arg3: memref<12x1xf32, #tpu.memory_space<vmem>>, %arg4: memref<12x1xf32, #tpu.memory_space<vmem>>, %arg5: memref<12x128xf32, #tpu.memory_space<vmem>>) attributes {dimension_semantics = [#tpu.dimension_semantics<parallel>], iteration_bounds = array<i64: 1>, scalar_prefetch = 0 : i64, scratch_operands = 0 : i64, tpu.core_type = #tpu.core_type<tc>, window_params = [{pipeline_mode = #tpu.pipeline_mode<synchronous>, transform_indices = @transform_0, window_bounds = array<i64: 12, 6>}, {transform_indices = @transform_1, window_bounds = array<i64: 6, 128>}, {pipeline_mode = #tpu.pipeline_mode<synchronous>, transform_indices = @transform_2, window_bounds = array<i64: 12, 1>}, {pipeline_mode = #tpu.pipeline_mode<synchronous>, transform_indices = @transform_3, window_bounds = array<i64: 12, 1>}, {transform_indices = @transform_4, window_bounds = array<i64: 12, 128>}]} {
    %c0 = arith.constant 0 : index
    %c0_0 = arith.constant 0 : index
    %0 = vector.load %arg1[%c0, %c0_0] : memref<12x6xbf16, #tpu.memory_space<vmem>>, vector<12x6xbf16>
    %c0_1 = arith.constant 0 : index
    %c0_2 = arith.constant 0 : index
    %1 = vector.load %arg2[%c0_1, %c0_2] : memref<6x128xbf16, #tpu.memory_space<vmem>>, vector<6x128xbf16>
    %cst = arith.constant dense<0.000000e+00> : vector<12x128xf32>
    %2 = tpu.matmul %0, %1, %cst {dimension_numbers = #tpu.dot_dimension_numbers<[1], [0], [0], [1], [0, 0, 1, 1], [], []>} : vector<12x6xbf16>, vector<6x128xbf16>, vector<12x128xf32> -> vector<12x128xf32>
    %c0_3 = arith.constant 0 : index
    %c0_4 = arith.constant 0 : index
    %3 = vector.load %arg3[%c0_3, %c0_4] : memref<12x1xf32, #tpu.memory_space<vmem>>, vector<12x1xf32>
    %4 = vector.broadcast %3 : vector<12x1xf32> to vector<12x128xf32>
    %5 = arith.mulf %2, %4 : vector<12x128xf32>
    %c0_5 = arith.constant 0 : index
    %c0_6 = arith.constant 0 : index
    %6 = vector.load %arg4[%c0_5, %c0_6] : memref<12x1xf32, #tpu.memory_space<vmem>>, vector<12x1xf32>
    %7 = vector.broadcast %6 : vector<12x1xf32> to vector<12x128xf32>
    %8 = arith.addf %5, %7 : vector<12x128xf32>
    %c0_7 = arith.constant 0 : index
    %c0_8 = arith.constant 0 : index
    %9 = vector.load %arg5[%c0_7, %c0_8] : memref<12x128xf32, #tpu.memory_space<vmem>>, vector<12x128xf32>
    tpu.vector_store %arg5[%c0_7, %c0_8], %8 {strides = array<i32>} : memref<12x128xf32, #tpu.memory_space<vmem>>, vector<12x128xf32>,
    return
  }
  func.func @transform_0(%arg0: i32) -> (i32, i32) {
    %c0_i32 = arith.constant 0 : i32
    %c0_i32_0 = arith.constant 0 : i32
    %c0_i32_1 = arith.constant 0 : i32
    return %c0_i32, %c0_i32_0 : i32, i32
  }
  func.func @transform_1(%arg0: i32) -> (i32, i32) {
    %c0_i32 = arith.constant 0 : i32
    %c0_i32_0 = arith.constant 0 : i32
    return %c0_i32, %arg0 : i32, i32
  }
  func.func @transform_2(%arg0: i32) -> (i32, i32) {
    %c0_i32 = arith.constant 0 : i32
    %c0_i32_0 = arith.constant 0 : i32
    %c0_i32_1 = arith.constant 0 : i32
    return %c0_i32, %c0_i32_0 : i32, i32
  }
  func.func @transform_3(%arg0: i32) -> (i32, i32) {
    %c0_i32 = arith.constant 0 : i32
    %c0_i32_0 = arith.constant 0 : i32
    %c0_i32_1 = arith.constant 0 : i32
    return %c0_i32, %c0_i32_0 : i32, i32
  }
  func.func @transform_4(%arg0: i32) -> (i32, i32) {
    %c0_i32 = arith.constant 0 : i32
    %c0_i32_0 = arith.constant 0 : i32
    return %c0_i32, %arg0 : i32, i32
  }
}

module attributes {stable_mosaic.version = 11 : i64} {
  func.func @_tail_kernel(%arg0: memref<8x6xf32, #tpu.memory_space<vmem>>, %arg1: memref<6x320xf32, #tpu.memory_space<vmem>>, %arg2: memref<1x320xf32, #tpu.memory_space<vmem>>, %arg3: memref<1x320xf32, #tpu.memory_space<vmem>>, %arg4: memref<320x16xf32, #tpu.memory_space<vmem>>, %arg5: memref<1x16xf32, #tpu.memory_space<vmem>>, %arg6: memref<8x16xf32, #tpu.memory_space<vmem>>) attributes {dimension_semantics = [], scalar_prefetch = 0 : i64, scratch_operands = 0 : i64, tpu.core_type = #tpu.core_type<tc>} {
    %c0 = arith.constant 0 : index
    %c0_0 = arith.constant 0 : index
    %0 = vector.load %arg0[%c0, %c0_0] : memref<8x6xf32, #tpu.memory_space<vmem>>, vector<8x6xf32>
    %c0_1 = arith.constant 0 : index
    %c0_2 = arith.constant 0 : index
    %1 = vector.load %arg1[%c0_1, %c0_2] : memref<6x320xf32, #tpu.memory_space<vmem>>, vector<6x320xf32>
    %cst = arith.constant dense<0.000000e+00> : vector<8x320xf32>
    %2 = tpu.matmul %0, %1, %cst {dimension_numbers = #tpu.dot_dimension_numbers<[1], [0], [0], [1], [0, 0, 1, 1], [], []>} : vector<8x6xf32>, vector<6x320xf32>, vector<8x320xf32> -> vector<8x320xf32>
    %c0_3 = arith.constant 0 : index
    %c0_4 = arith.constant 0 : index
    %3 = vector.load %arg2[%c0_3, %c0_4] : memref<1x320xf32, #tpu.memory_space<vmem>>, vector<1x320xf32>
    %4 = vector.broadcast %3 : vector<1x320xf32> to vector<8x320xf32>
    %5 = arith.mulf %2, %4 : vector<8x320xf32>
    %c0_5 = arith.constant 0 : index
    %c0_6 = arith.constant 0 : index
    %6 = vector.load %arg3[%c0_5, %c0_6] : memref<1x320xf32, #tpu.memory_space<vmem>>, vector<1x320xf32>
    %7 = vector.broadcast %6 : vector<1x320xf32> to vector<8x320xf32>
    %8 = arith.addf %5, %7 : vector<8x320xf32>
    %cst_7 = arith.constant 0.000000e+00 : f32
    %cst_8 = arith.constant 6.000000e+00 : f32
    %9 = vector.broadcast %cst_7 : f32 to vector<8x320xf32>
    %10 = arith.maximumf %9, %8 : vector<8x320xf32>
    %11 = vector.broadcast %cst_8 : f32 to vector<8x320xf32>
    %12 = arith.minimumf %11, %10 : vector<8x320xf32>
    %c0_9 = arith.constant 0 : index
    %c0_10 = arith.constant 0 : index
    %13 = vector.load %arg4[%c0_9, %c0_10] : memref<320x16xf32, #tpu.memory_space<vmem>>, vector<320x16xf32>
    %cst_11 = arith.constant dense<0.000000e+00> : vector<8x16xf32>
    %14 = tpu.matmul %12, %13, %cst_11 {dimension_numbers = #tpu.dot_dimension_numbers<[1], [0], [0], [1], [0, 0, 1, 1], [], []>} : vector<8x320xf32>, vector<320x16xf32>, vector<8x16xf32> -> vector<8x16xf32>
    %c0_12 = arith.constant 0 : index
    %c0_13 = arith.constant 0 : index
    %15 = vector.load %arg5[%c0_12, %c0_13] : memref<1x16xf32, #tpu.memory_space<vmem>>, vector<1x16xf32>
    %16 = vector.broadcast %15 : vector<1x16xf32> to vector<8x16xf32>
    %17 = arith.addf %14, %16 : vector<8x16xf32>
    %c0_14 = arith.constant 0 : index
    %c0_15 = arith.constant 0 : index
    %18 = vector.load %arg6[%c0_14, %c0_15] : memref<8x16xf32, #tpu.memory_space<vmem>>, vector<8x16xf32>
    tpu.vector_store %arg6[%c0_14, %c0_15], %17 {strides = array<i32>} : memref<8x16xf32, #tpu.memory_space<vmem>>, vector<8x16xf32>,
    return
  }
}

</mosaic_0001>

<llo_original>
// kernel: eeegnet_b_forward.10
$region0: #{eeegnet_b_forward.10}
  #allocation0 [shape = 'u32[]', space=smem, size = 0x4, offset = 0x4, fixed_abs, tag = 'smem constant byte address 0x4 - core index']
  #allocation1 [shape = 'u32[144,128]{1,0:T(1,128)}', space=vmem, size = 0x12000, scoped, tag = 'internal scratch']
  %s0 = inlined_call_operand.vmem [shape: f32[6,27], index: 0, kind: input, shape index: {}]
  %s1 = inlined_call_operand.vmem [shape: f32[27,1024], index: 1, kind: input, shape index: {}]
  %s2 = inlined_call_operand.vmem [shape: f32[6,1], index: 2, kind: input, shape index: {}]
  %s3 = inlined_call_operand.vmem [shape: f32[6,1], index: 3, kind: input, shape index: {}]
  %s4 = inlined_call_operand.vmem [shape: f32[6,1024], index: 4, kind: output, shape index: {}]
  %s5 = sld [smem:[#allocation0]]
  $region72: #{eeegnet_b_forward.10} parent=0
    _
  %s7 = ssub.s32 1, %s5
  %s8 = scalar_select 0, %s7, %s5
  $region1: #{eeegnet_b_forward.10} parent=0
    #allocation2 [shape = 'u8[131072]{0}', space=vmem, size = 0x20000, scoped, tag = 'input window, operand 1']
    loop: start=0, step=1, limit=4
    $region2: #{eeegnet_b_forward.10} parent=1 // loop_pre_header
      _
    $region3: #{eeegnet_b_forward.10} parent=1 // loop_header
      %s10 = sphi 0, %s14
      %p11 = scmp.ge.s32.totalorder %s10, 4
      %s18 = sphi 0, %s18
      %s20 = sphi 0, %s18
      %s21 = sphi 0, %s20
      %s35 = sphi 0, %s21
      %s41 = sphi 0, %s43
      %s44 = sphi 0, %s41
      %s45 = sphi 0, %s44
      %s61 = sphi 0, %s45
      %s65 = sphi 0, %s65
      %s67 = sphi 0, %s65
      %s68 = sphi 0, %s67
      %s82 = sphi 0, %s68
      %s86 = sphi 0, %s86
      %s88 = sphi 0, %s86
      %s89 = sphi 0, %s88
      %s103 = sphi 0, %s89
      %s109 = sphi 0, %s111
      %s112 = sphi 0, %s109
      %s113 = sphi 0, %s112
      %s129 = sphi 0, %s113
    $region4: #{eeegnet_b_forward.10} parent=1 // loop_header_branch
      %13 = sbr.rel (%p11) target = $region8
    $region5: #{eeegnet_b_forward.10} parent=1 // loop_body
      %s15 = ssub.s32 %s10, 1
      %s16 = ssub.s32 %s10, 2
      %s17 = sadd.s32 %s10, 1
      %s19 = sadd.s32 %s18, 1
      %p22 = scmp.eq.s32.totalorder %s10, 1
      %p23 = scmp.ne.s32.totalorder %s18, %s20
      %p24 = scmp.eq.s32.totalorder %s10, 0
      %p25 = por %p23, %p24
      %p26 = scmp.ne.s32.totalorder %s18, %s20
      %p27 = scmp.eq.s32.totalorder %s15, 1
      %p28 = por %p26, %p27
      %p29 = scmp.ne.s32.totalorder %s20, %s21
      %p30 = scmp.eq.s32.totalorder %s15, 0
      %p31 = por %p29, %p30
      %p32 = scmp.ne.s32.totalorder %s20, %s21
      %p33 = scmp.eq.s32.totalorder %s16, 1
      %p34 = por %p32, %p33
      %p36 = scmp.ne.s32.totalorder %s21, %s35
      %p37 = scmp.eq.s32.totalorder %s16, 0
      %p38 = por %p36, %p37
      %s39 = ssub.s32 %s10, %s17
      %p40 = scmp.eq.s32.totalorder %s39, 0
      %s42 = sadd.s32 %s41, 1
      %s43 = scalar_select %p40, %s41, %s42
      %p46 = pneg %p40
      %p47 = scmp.eq.s32.totalorder %s10, 1
      %p48 = por %p46, %p47
      %p49 = scmp.ne.s32.totalorder %s41, %s44
      %p50 = scmp.eq.s32.totalorder %s10, 0
      %p51 = por %p49, %p50
      %p52 = scmp.ne.s32.totalorder %s41, %s44
      %p53 = scmp.eq.s32.totalorder %s15, 1
      %p54 = por %p52, %p53
      %p55 = scmp.ne.s32.totalorder %s44, %s45
      %p56 = scmp.eq.s32.totalorder %s15, 0
      %p57 = por %p55, %p56
      %p58 = scmp.ne.s32.totalorder %s44, %s45
      %p59 = scmp.eq.s32.totalorder %s16, 1
      %p60 = por %p58, %p59
      %p62 = scmp.ne.s32.totalorder %s45, %s61
      %p63 = scmp.eq.s32.totalorder %s16, 0
      %p64 = por %p62, %p63
      %s66 = sadd.s32 %s65, 1
      %p69 = scmp.eq.s32.totalorder %s10, 1
      %p70 = scmp.ne.s32.totalorder %s65, %s67
      %p71 = scmp.eq.s32.totalorder %s10, 0
      %p72 = por %p70, %p71
      %p73 = scmp.ne.s32.totalorder %s65, %s67
      %p74 = scmp.eq.s32.totalorder %s15, 1
      %p75 = por %p73, %p74
      %p76 = scmp.ne.s32.totalorder %s67, %s68
      %p77 = scmp.eq.s32.totalorder %s15, 0
      %p78 = por %p76, %p77
      %p79 = scmp.ne.s32.totalorder %s67, %s68
      %p80 = scmp.eq.s32.totalorder %s16, 1
      %p81 = por %p79, %p80
      %p83 = scmp.ne.s32.totalorder %s68, %s82
      %p84 = scmp.eq.s32.totalorder %s16, 0
      %p85 = por %p83, %p84
      %s87 = sadd.s32 %s86, 1
      %p90 = scmp.eq.s32.totalorder %s10, 1
      %p91 = scmp.ne.s32.totalorder %s86, %s88
      %p92 = scmp.eq.s32.totalorder %s10, 0
      %p93 = por %p91, %p92
      %p94 = scmp.ne.s32.totalorder %s86, %s88
      %p95 = scmp.eq.s32.totalorder %s15, 1
      %p96 = por %p94, %p95
      %p97 = scmp.ne.s32.totalorder %s88, %s89
      %p98 = scmp.eq.s32.totalorder %s15, 0
      %p99 = por %p97, %p98
      %p100 = scmp.ne.s32.totalorder %s88, %s89
      %p101 = scmp.eq.s32.totalorder %s16, 1
      %p102 = por %p100, %p101
      %p104 = scmp.ne.s32.totalorder %s89, %s103
      %p105 = scmp.eq.s32.totalorder %s16, 0
      %p106 = por %p104, %p105
      %s107 = ssub.s32 %s10, %s17
      %p108 = scmp.eq.s32.totalorder %s107, 0
      %s110 = sadd.s32 %s109, 1
      %s111 = scalar_select %p108, %s109, %s110
      %p114 = pneg %p108
      %p115 = scmp.eq.s32.totalorder %s10, 1
      %p116 = por %p114, %p115
      %p117 = scmp.ne.s32.totalorder %s109, %s112
      %p118 = scmp.eq.s32.totalorder %s10, 0
      %p119 = por %p117, %p118
      %p120 = scmp.ne.s32.totalorder %s109, %s112
      %p121 = scmp.eq.s32.totalorder %s15, 1
      %p122 = por %p120, %p121
      %p123 = scmp.ne.s32.totalorder %s112, %s113
      %p124 = scmp.eq.s32.totalorder %s15, 0
      %p125 = por %p123, %p124
      %p126 = scmp.ne.s32.totalorder %s112, %s113
      %p127 = scmp.eq.s32.totalorder %s16, 1
      %p128 = por %p126, %p127
      %p130 = scmp.ne.s32.totalorder %s113, %s129
      %p131 = scmp.eq.s32.totalorder %s16, 0
      %p132 = por %p130, %p131
      %p133 = scmp.le.s32.totalorder 1, %s10
      %p134 = scmp.lt.s32.totalorder %s10, 3
      %p135 = pnand %p133, %p134
      %p136 = pneg %p135
      // Predicated region
      $region9: #{eeegnet_b_forward.10} parent=5 // pred_check
        _
      $region10: #{eeegnet_b_forward.10} parent=5 // pred_check_branch
        %138 = sbr.rel (%p135) target = $region12
      $region11: #{eeegnet_b_forward.10} parent=5 // pred_region
        %s139 = ssub.s32 %s10, 1
        // Predicated region
        $region13: #{eeegnet_b_forward.10} parent=11 // pred_check
          %p140 = pneg %p31
        $region14: #{eeegnet_b_forward.10} parent=11 // pred_check_branch
          %142 = sbr.rel (%p140) target = $region16
        $region15: #{eeegnet_b_forward.10} parent=11 // pred_region
          _
        $region16: #{eeegnet_b_forward.10} parent=11 // pred_fallthru
          _
        // Predicated region
        $region17: #{eeegnet_b_forward.10} parent=11 // pred_check
          %p143 = pneg %p78
        $region18: #{eeegnet_b_forward.10} parent=11 // pred_check_branch
          %145 = sbr.rel (%p143) target = $region20
        $region19: #{eeegnet_b_forward.10} parent=11 // pred_region
          _
        $region20: #{eeegnet_b_forward.10} parent=11 // pred_fallthru
          _
        // Predicated region
        $region21: #{eeegnet_b_forward.10} parent=11 // pred_check
          %p146 = pneg %p99
        $region22: #{eeegnet_b_forward.10} parent=11 // pred_check_branch
          %148 = sbr.rel (%p146) target = $region24
        $region23: #{eeegnet_b_forward.10} parent=11 // pred_region
          _
        $region24: #{eeegnet_b_forward.10} parent=11 // pred_fallthru
          _
      $region12: #{eeegnet_b_forward.10} parent=5 // pred_fallthru
        _
      %p149 = scmp.lt.s32.totalorder %s10, 2
      // Predicated region
      $region25: #{eeegnet_b_forward.10} parent=5 // pred_check
        %p150 = pneg %p149
      $region26: #{eeegnet_b_forward.10} parent=5 // pred_check_branch
        %152 = sbr.rel (%p150) target = $region28
      $region27: #{eeegnet_b_forward.10} parent=5 // pred_region
        // Predicated region
        $region29: #{eeegnet_b_forward.10} parent=27 // pred_check
          %p153 = pneg %p51
        $region30: #{eeegnet_b_forward.10} parent=27 // pred_check_branch
          %155 = sbr.rel (%p153) target = $region32
        $region31: #{eeegnet_b_forward.10} parent=27 // pred_region
          %s156 = sand.u32 %s41, 1
          %s157 = sand.u32 %s41, 1
          %s158 = smul.addr %s157, 128
          %s159 = scalar_lea.vmem [#allocation2], %s158
          %s160 = smul.u32 4, %s10
          %s161 = smul.addr %s160, 8
          %s162 = scalar_lea.vmem %s1, %s161
          // Predicated region
          $region33: #{eeegnet_b_forward.10} parent=31 // pred_check
            _
          $region34: #{eeegnet_b_forward.10} parent=31 // pred_check_branch
            %164 = sbr.rel (0) target = $region36
          $region35: #{eeegnet_b_forward.10} parent=31 // pred_region
            // Predicated region
            $region37: #{eeegnet_b_forward.10} parent=35 // pred_check
              _
            $region38: #{eeegnet_b_forward.10} parent=35 // pred_check_branch
              %166 = sbr.rel (0) target = $region40
            $region39: #{eeegnet_b_forward.10} parent=35 // pred_region
              loop: start=0, step=1, limit=1
              $region41: #{eeegnet_b_forward.10} parent=39 // loop_pre_header
                _
              $region42: #{eeegnet_b_forward.10} parent=39 // loop_header
                %s168 = sphi 0, %s172
                %p169 = scmp.ge.s32.totalorder %s168, 1
                %s173 = sphi %s162, %s162
                %s174 = sphi %s159, %s159
              $region43: #{eeegnet_b_forward.10} parent=39 // loop_header_branch
                %171 = sbr.rel (%p169) target = $region47
              $region44: #{eeegnet_b_forward.10} parent=39 // loop_body
                %v175 = vld [vmem:[%s173] sm:$0xff]
                %176 = vst [vmem:[%s174] sm:$0xff] %v175
                %v177 = vld [vmem:[%s173 + $0x8] sm:$0xff]
                %178 = vst [vmem:[%s174 + $0x8] sm:$0xff] %v177
                %v179 = vld [vmem:[%s173 + $0x10] sm:$0xff]
                %180 = vst [vmem:[%s174 + $0x10] sm:$0xff] %v179
                %v181 = vld [vmem:[%s173 + $0x18] sm:$0xff]
                %182 = vst [vmem:[%s174 + $0x18] sm:$0xff] %v181
                %v183 = vld [vmem:[%s173 + $0x40] sm:$0xff]
                %184 = vst [vmem:[%s174 + $0x20] sm:$0xff] %v183
                %v185 = vld [vmem:[%s173 + $0x48] sm:$0xff]
                %186 = vst [vmem:[%s174 + $0x28] sm:$0xff] %v185
                %v187 = vld [vmem:[%s173 + $0x50] sm:$0xff]
                %188 = vst [vmem:[%s174 + $0x30] sm:$0xff] %v187
                %v189 = vld [vmem:[%s173 + $0x58] sm:$0xff]
                %190 = vst [vmem:[%s174 + $0x38] sm:$0xff] %v189
                %v191 = vld [vmem:[%s173 + $0x80] sm:$0xff]
                %192 = vst [vmem:[%s174 + $0x40] sm:$0xff] %v191
                %v193 = vld [vmem:[%s173 + $0x88] sm:$0xff]
                %194 = vst [vmem:[%s174 + $0x48] sm:$0xff] %v193
                %v195 = vld [vmem:[%s173 + $0x90] sm:$0xff]
                %196 = vst [vmem:[%s174 + $0x50] sm:$0xff] %v195
                %v197 = vld [vmem:[%s173 + $0x98] sm:$0xff]
                %198 = vst [vmem:[%s174 + $0x58] sm:$0xff] %v197
                %v199 = vld [vmem:[%s173 + $0xc0] sm:$0xff]
                %200 = vst [vmem:[%s174 + $0x60] sm:$0xff] %v199
                %v201 = vld [vmem:[%s173 + $0xc8] sm:$0xff]
                %202 = vst [vmem:[%s174 + $0x68] sm:$0xff] %v201
                %v203 = vld [vmem:[%s173 + $0xd0] sm:$0xff]
                %204 = vst [vmem:[%s174 + $0x70] sm:$0xff] %v203
                %v205 = vld [vmem:[%s173 + $0xd8] sm:$0xff]
                %206 = vst [vmem:[%s174 + $0x78] sm:$0xff] %v205
              $region45: #{eeegnet_b_forward.10} parent=39 // loop_footer
                %s172 = sadd.s32 1, %s168
              $region46: #{eeegnet_b_forward.10} parent=39 // loop_footer_branch
                %167 = sbr.rel target = $region42
              $region47: #{eeegnet_b_forward.10} parent=39 // loop_exit
                _
            $region40: #{eeegnet_b_forward.10} parent=35 // pred_fallthru
              _
            // Predicated region
            $region48: #{eeegnet_b_forward.10} parent=35 // pred_check
              _
            $region49: #{eeegnet_b_forward.10} parent=35 // pred_check_branch
              %208 = sbr.rel target = $region51
            $region50: #{eeegnet_b_forward.10} parent=35 // pred_region
              _
            $region51: #{eeegnet_b_forward.10} parent=35 // pred_fallthru
              _
          $region36: #{eeegnet_b_forward.10} parent=31 // pred_fallthru
            _
          %209 = vnop
        $region32: #{eeegnet_b_forward.10} parent=27 // pred_fallthru
          _
      $region28: #{eeegnet_b_forward.10} parent=5 // pred_fallthru
        _
      %p210 = scmp.le.s32.totalorder 1, %s10
      %p211 = scmp.lt.s32.totalorder %s10, 3
      %p212 = pnand %p210, %p211
      %p213 = pneg %p212
      // Predicated region
      $region52: #{eeegnet_b_forward.10} parent=5 // pred_check
        _
      $region53: #{eeegnet_b_forward.10} parent=5 // pred_check_branch
        %215 = sbr.rel (%p212) target = $region55
      $region54: #{eeegnet_b_forward.10} parent=5 // pred_region
        %s216 = ssub.s32 %s10, 1
        %s217 = sand.u32 %s44, 1
        %s218 = sand.u32 %s44, 1
        %s219 = smul.addr %s218, 128
        %s220 = scalar_lea.vmem [#allocation2], %s219
        // Predicated region
        $region56: #{eeegnet_b_forward.10} parent=54 // pred_check
          %p221 = pneg %p57
        $region57: #{eeegnet_b_forward.10} parent=54 // pred_check_branch
          %223 = sbr.rel (%p221) target = $region59
        $region58: #{eeegnet_b_forward.10} parent=54 // pred_region
          _
        $region59: #{eeegnet_b_forward.10} parent=54 // pred_fallthru
          _
        %p224 = pneg %p31
        %p225 = pneg %p28
        %s226 = sand.u32 %s44, 1
        %s227 = sand.u32 %s44, 1
        %s228 = smul.addr %s227, 128
        %s229 = scalar_lea.vmem [#allocation2], %s228
        %p230 = pneg %p57
        %p231 = pneg %p54
        %p232 = pneg %p78
        %p233 = pneg %p75
        %p234 = pneg %p99
        %p235 = pneg %p96
        %p236 = pneg %p125
        %p237 = pneg %p122
        %s238 = smul.u32 4, %s15
        %p239 = scmp.lt.s32.totalorder %s238, 7
        %s240 = scalar_select %p239, %s238, 7
        %s241 = smul.addr %s240, 8
        %s242 = scalar_lea.vmem %s4, %s241
        %s243 = smul.u32 4, %s15
        %s244 = smul.u32 4, %s15
        %p245 = scmp.lt.s32.totalorder %s244, 7
        %s246 = scalar_select %p245, %s244, 7
        %s247 = smul.addr %s246, 8
        %s248 = scalar_lea.vmem %s4, %s247
        %s249 = smul.u32 4, %s15
        %v250 = vld [vmem:[%s0] sm:$0x3f]
        %v251 = vld [vmem:[%s220] sm:$0xff]
        %v252 = vld [vmem:[%s220 + $0x8] sm:$0xff]
        %v253 = vld [vmem:[%s220 + $0x10] sm:$0xff]
        %v254 = vld [vmem:[%s220 + $0x18] sm:$0xff]
        %v255 = vld [vmem:[%s220 + $0x20] sm:$0xff]
        %v256 = vld [vmem:[%s220 + $0x28] sm:$0xff]
        %v257 = vld [vmem:[%s220 + $0x30] sm:$0xff]
        %v258 = vld [vmem:[%s220 + $0x38] sm:$0xff]
        %v259 = vld [vmem:[%s220 + $0x40] sm:$0xff]
        %v260 = vld [vmem:[%s220 + $0x48] sm:$0xff]
        %v261 = vld [vmem:[%s220 + $0x50] sm:$0xff]
        %v262 = vld [vmem:[%s220 + $0x58] sm:$0xff]
        %v263 = vld [vmem:[%s220 + $0x60] sm:$0x7]
        %v264 = vld [vmem:[%s220 + $0x68] sm:$0x7]
        %v265 = vld [vmem:[%s220 + $0x70] sm:$0x7]
        %v266 = vld [vmem:[%s220 + $0x78] sm:$0x7]
        %vm267 = vcmask 220160
        %v269 = vsel %vm267, %v250, 0
        %vm271 = vcmask 1042432
        %v273 = vsel %vm271, %v263, 0
        %v276 = vsel %vm271, %v264, 0
        %v279 = vsel %vm271, %v265, 0
        %v282 = vsel %vm271, %v266, 0
        %284 = vmatprep.subr.mxu0 %v252
        %285 = vmatpush1.msra.mxu0 %v251
        %286 = vmatprep.subr.mxu0 %v256
        %287 = vmatpush1.msra.mxu0 %v255
        %288 = vmatprep.subr.mxu0 %v260
        %289 = vmatpush1.msra.mxu0 %v259
        %290 = vmatprep.subr.mxu0 %v276
        %291 = vmatpush1.msra.mxu0 %v273
        %292 = vmatprep.subr.mxu0 0.0
        %293 = vmatpush1.msra.mxu0 0.0
        %294 = vmatprep.subr.mxu0 0.0
        %295 = vmatpush1.msra.mxu0 0.0
        %296 = vmatprep.subr.mxu0 0.0
        %297 = vmatpush1.msra.mxu0 0.0
        %298 = vmatprep.subr.mxu0 0.0
        %299 = vmatpush1.msra.mxu0 0.0
        %300 = vmatprep.subr.mxu0 0.0
        %301 = vmatpush1.msra.mxu0 0.0
        %302 = vmatprep.subr.mxu0 0.0
        %303 = vmatpush1.msra.mxu0 0.0
        %304 = vmatprep.subr.mxu0 0.0
        %305 = vmatpush1.msra.mxu0 0.0
        %306 = vmatprep.subr.mxu0 0.0
        %307 = vmatpush1.msra.mxu0 0.0
        %308 = vmatprep.subr.mxu0 0.0
        %309 = vmatpush1.msra.mxu0 0.0
        %310 = vmatprep.subr.mxu0 0.0
        %311 = vmatpush1.msra.mxu0 0.0
        %312 = vmatprep.subr.mxu0 0.0
        %313 = vmatpush1.msra.mxu0 0.0
        %314 = vmatprep.subr.mxu0 0.0
        %315 = vmatpush1.msra.mxu0 0.0
        %316 = vmatprep.subr.mxu0 0.0
        %317 = vmatpush1.msra.mxu0 0.0
        %318 = vmatprep.subr.mxu0 0.0
        %319 = vmatpush1.msra.mxu0 0.0
        %320 = vmatprep.subr.mxu0 0.0
        %321 = vmatpush1.msra.mxu0 0.0
        %322 = vmatprep.subr.mxu0 0.0
        %323 = vmatpush1.msra.mxu0 0.0
        %324 = vmatprep.subr.mxu0 0.0
        %325 = vmatpush1.msra.mxu0 0.0
        %326 = vmatprep.subr.mxu0 0.0
        %327 = vmatpush1.msra.mxu0 0.0
        %328 = vmatprep.subr.mxu0 0.0
        %329 = vmatpush1.msra.mxu0 0.0
        %330 = vmatprep.subr.mxu0 0.0
        %331 = vmatpush1.msra.mxu0 0.0
        %332 = vmatprep.subr.mxu0 0.0
        %333 = vmatpush1.msra.mxu0 0.0
        %334 = vmatprep.subr.mxu0 0.0
        %335 = vmatpush1.msra.mxu0 0.0
        %336 = vmatprep.subr.mxu0 0.0
        %337 = vmatpush1.msra.mxu0 0.0
        %338 = vmatprep.subr.mxu0 0.0
        %339 = vmatpush1.msra.mxu0 0.0
        %340 = vmatprep.subr.mxu0 0.0
        %341 = vmatpush1.msra.mxu0 0.0
        %342 = vmatprep.subr.mxu0 0.0
        %343 = vmatpush1.msra.mxu0 0.0
        %344 = vmatprep.subr.mxu0 0.0
        %345 = vmatpush1.msra.mxu0 0.0
        %346 = vmatprep.subr.mxu0 0.0
        %347 = vmatpush1.msra.mxu0 0.0
        %348 = vmatprep.mubr.f32.mxu0 0.0
        %349 = vmatmul.mubr.f32.gmra.mrb[0].mxu0 %v269
        %v350 = vpop.f32.mrb[0].mxu0
        %v351 = vadd.f32 0.0, %v350
        %v352 = vpop.f32.mrb[0].mxu0
        %v353 = vadd.f32 0.0, %v352
        %354 = vdwg.mxu0
        %355 = vmatprep.subr.mxu0 %v254
        %356 = vmatpush1.msra.mxu0 %v253
        %357 = vmatprep.subr.mxu0 %v258
        %358 = vmatpush1.msra.mxu0 %v257
        %359 = vmatprep.subr.mxu0 %v262
        %360 = vmatpush1.msra.mxu0 %v261
        %361 = vmatprep.subr.mxu0 %v282
        %362 = vmatpush1.msra.mxu0 %v279
        %363 = vmatprep.subr.mxu0 0.0
        %364 = vmatpush1.msra.mxu0 0.0
        %365 = vmatprep.subr.mxu0 0.0
        %366 = vmatpush1.msra.mxu0 0.0
        %367 = vmatprep.subr.mxu0 0.0
        %368 = vmatpush1.msra.mxu0 0.0
        %369 = vmatprep.subr.mxu0 0.0
        %370 = vmatpush1.msra.mxu0 0.0
        %371 = vmatprep.subr.mxu0 0.0
        %372 = vmatpush1.msra.mxu0 0.0
        %373 = vmatprep.subr.mxu0 0.0
        %374 = vmatpush1.msra.mxu0 0.0
        %375 = vmatprep.subr.mxu0 0.0
        %376 = vmatpush1.msra.mxu0 0.0
        %377 = vmatprep.subr.mxu0 0.0
        %378 = vmatpush1.msra.mxu0 0.0
        %379 = vmatprep.subr.mxu0 0.0
        %380 = vmatpush1.msra.mxu0 0.0
        %381 = vmatprep.subr.mxu0 0.0
        %382 = vmatpush1.msra.mxu0 0.0
        %383 = vmatprep.subr.mxu0 0.0
        %384 = vmatpush1.msra.mxu0 0.0
        %385 = vmatprep.subr.mxu0 0.0
        %386 = vmatpush1.msra.mxu0 0.0
        %387 = vmatprep.subr.mxu0 0.0
        %388 = vmatpush1.msra.mxu0 0.0
        %389 = vmatprep.subr.mxu0 0.0
        %390 = vmatpush1.msra.mxu0 0.0
        %391 = vmatprep.subr.mxu0 0.0
        %392 = vmatpush1.msra.mxu0 0.0
        %393 = vmatprep.subr.mxu0 0.0
        %394 = vmatpush1.msra.mxu0 0.0
        %395 = vmatprep.subr.mxu0 0.0
        %396 = vmatpush1.msra.mxu0 0.0
        %397 = vmatprep.subr.mxu0 0.0
        %398 = vmatpush1.msra.mxu0 0.0
        %399 = vmatprep.subr.mxu0 0.0
        %400 = vmatpush1.msra.mxu0 0.0
        %401 = vmatprep.subr.mxu0 0.0
        %402 = vmatpush1.msra.mxu0 0.0
        %403 = vmatprep.subr.mxu0 0.0
        %404 = vmatpush1.msra.mxu0 0.0
        %405 = vmatprep.subr.mxu0 0.0
        %406 = vmatpush1.msra.mxu0 0.0
        %407 = vmatprep.subr.mxu0 0.0
        %408 = vmatpush1.msra.mxu0 0.0
        %409 = vmatprep.subr.mxu0 0.0
        %410 = vmatpush1.msra.mxu0 0.0
        %411 = vmatprep.subr.mxu0 0.0
        %412 = vmatpush1.msra.mxu0 0.0
        %413 = vmatprep.subr.mxu0 0.0
        %414 = vmatpush1.msra.mxu0 0.0
        %415 = vmatprep.subr.mxu0 0.0
        %416 = vmatpush1.msra.mxu0 0.0
        %417 = vmatprep.subr.mxu0 0.0
        %418 = vmatpush1.msra.mxu0 0.0
        %419 = vmatprep.mubr.f32.mxu0 0.0
        %420 = vmatmul.mubr.f32.gmra.mrb[0].mxu0 %v269
        %v421 = vpop.f32.mrb[0].mxu0
        %v422 = vadd.f32 0.0, %v421
        %v423 = vpop.f32.mrb[0].mxu0
        %v424 = vadd.f32 0.0, %v423
        %425 = vdwg.mxu0
        %v426 = vld [vmem:[%s2] sm:$0x3f]
        %428 = vset.pattern.permute.xlu0 0
        %429 = vperm.xlu0 %428, %v426
        %v430 = vpop.permute.xlu0 %429
        %v432 = vmul.f32 %v351, %v430
        %v433 = vmul.f32 %v353, %v430
        %v434 = vmul.f32 %v422, %v430
        %v435 = vmul.f32 %v424, %v430
        %v436 = vld [vmem:[%s3] sm:$0x3f]
        %438 = vset.pattern.permute.xlu0 0
        %439 = vperm.xlu0 %438, %v436
        %v440 = vpop.permute.xlu0 %439
        %v442 = vadd.f32 %v432, %v440
        %v443 = vadd.f32 %v433, %v440
        %v444 = vadd.f32 %v434, %v440
        %v445 = vadd.f32 %v435, %v440
        %v446 = vmax.f32 %v442, 0.0
        %v447 = vmax.f32 %v443, 0.0
        %v448 = vmax.f32 %v444, 0.0
        %v449 = vmax.f32 %v445, 0.0
        %v450 = vmin.f32 %v446, 6.0
        %v451 = vmin.f32 %v447, 6.0
        %v452 = vmin.f32 %v448, 6.0
        %v453 = vmin.f32 %v449, 6.0
        %454 = vst [vmem:[%s248] sm:$0x3f] %v450
        %455 = vst [vmem:[%s248 + $0x8] sm:$0x3f] %v451
        %456 = vst [vmem:[%s248 + $0x10] sm:$0x3f] %v452
        %457 = vst [vmem:[%s248 + $0x18] sm:$0x3f] %v453
        %s458 = smul.u32 4, %s15
        %p459 = scmp.lt.s32.totalorder %s458, 7
        %s460 = scalar_select %p459, %s458, 7
        %s461 = smul.addr %s460, 8
        %s462 = scalar_lea.vmem %s4, %s461
        // Predicated region
        $region60: #{eeegnet_b_forward.10} parent=54 // pred_check
          %p463 = pneg %p122
        $region61: #{eeegnet_b_forward.10} parent=54 // pred_check_branch
          %465 = sbr.rel (%p463) target = $region63
        $region62: #{eeegnet_b_forward.10} parent=54 // pred_region
          %s466 = smul.u32 4, %s15
        $region63: #{eeegnet_b_forward.10} parent=54 // pred_fallthru
          _
      $region55: #{eeegnet_b_forward.10} parent=5 // pred_fallthru
        _
      %p467 = scmp.le.s32.totalorder 2, %s10
      // Predicated region
      $region64: #{eeegnet_b_forward.10} parent=5 // pred_check
        %p468 = pneg %p467
      $region65: #{eeegnet_b_forward.10} parent=5 // pred_check_branch
        %470 = sbr.rel (%p468) target = $region67
      $region66: #{eeegnet_b_forward.10} parent=5 // pred_region
        %s471 = ssub.s32 %s10, 2
        // Predicated region
        $region68: #{eeegnet_b_forward.10} parent=66 // pred_check
          %p472 = pneg %p128
        $region69: #{eeegnet_b_forward.10} parent=66 // pred_check_branch
          %474 = sbr.rel (%p472) target = $region71
        $region70: #{eeegnet_b_forward.10} parent=66 // pred_region
          %s475 = smul.u32 4, %s16
          %p476 = scmp.lt.s32.totalorder %s475, 7
          %s477 = scalar_select %p476, %s475, 7
          %s478 = smul.addr %s477, 8
          %s479 = scalar_lea.vmem %s4, %s478
        $region71: #{eeegnet_b_forward.10} parent=66 // pred_fallthru
          _
      $region67: #{eeegnet_b_forward.10} parent=5 // pred_fallthru
        _
    $region6: #{eeegnet_b_forward.10} parent=1 // loop_footer
      %s14 = sadd.s32 1, %s10
    $region7: #{eeegnet_b_forward.10} parent=1 // loop_footer_branch
      %9 = sbr.rel target = $region3
    $region8: #{eeegnet_b_forward.10} parent=1 // loop_exit
      _

// kernel: eeegnet_b_forward.11
$region0: #{eeegnet_b_forward.11}
  #allocation0 [shape = 'u32[]', space=smem, size = 0x4, offset = 0x4, fixed_abs, tag = 'smem constant byte address 0x4 - core index']
  #allocation1 [shape = 'u32[144,128]{1,0:T(1,128)}', space=vmem, size = 0x12000, scoped, tag = 'internal scratch']
  %s0 = inlined_call_operand.vmem [shape: bf16[6,162], index: 0, kind: input, shape index: {}]
  %s1 = inlined_call_operand.vmem [shape: bf16[162,1024], index: 1, kind: input, shape index: {}]
  %s2 = inlined_call_operand.vmem [shape: f32[6,1], index: 2, kind: input, shape index: {}]
  %s3 = inlined_call_operand.vmem [shape: f32[6,1], index: 3, kind: input, shape index: {}]
  %s4 = inlined_call_operand.vmem [shape: f32[6,1024], index: 4, kind: output, shape index: {}]
  %s5 = sld [smem:[#allocation0]]
  $region72: #{eeegnet_b_forward.11} parent=0
    _
  %s7 = ssub.s32 1, %s5
  %s8 = scalar_select 0, %s7, %s5
  $region1: #{eeegnet_b_forward.11} parent=0
    #allocation2 [shape = 'u8[344064]{0}', space=vmem, size = 0x54000, scoped, tag = 'input window, operand 1']
    loop: start=0, step=1, limit=4
    $region2: #{eeegnet_b_forward.11} parent=1 // loop_pre_header
      _
    $region3: #{eeegnet_b_forward.11} parent=1 // loop_header
      %s10 = sphi 0, %s14
      %p11 = scmp.ge.s32.totalorder %s10, 4
      %s18 = sphi 0, %s18
      %s20 = sphi 0, %s18
      %s21 = sphi 0, %s20
      %s35 = sphi 0, %s21
      %s41 = sphi 0, %s43
      %s44 = sphi 0, %s41
      %s45 = sphi 0, %s44
      %s61 = sphi 0, %s45
      %s65 = sphi 0, %s65
      %s67 = sphi 0, %s65
      %s68 = sphi 0, %s67
      %s82 = sphi 0, %s68
      %s86 = sphi 0, %s86
      %s88 = sphi 0, %s86
      %s89 = sphi 0, %s88
      %s103 = sphi 0, %s89
      %s109 = sphi 0, %s111
      %s112 = sphi 0, %s109
      %s113 = sphi 0, %s112
      %s129 = sphi 0, %s113
    $region4: #{eeegnet_b_forward.11} parent=1 // loop_header_branch
      %13 = sbr.rel (%p11) target = $region8
    $region5: #{eeegnet_b_forward.11} parent=1 // loop_body
      %s15 = ssub.s32 %s10, 1
      %s16 = ssub.s32 %s10, 2
      %s17 = sadd.s32 %s10, 1
      %s19 = sadd.s32 %s18, 1
      %p22 = scmp.eq.s32.totalorder %s10, 1
      %p23 = scmp.ne.s32.totalorder %s18, %s20
      %p24 = scmp.eq.s32.totalorder %s10, 0
      %p25 = por %p23, %p24
      %p26 = scmp.ne.s32.totalorder %s18, %s20
      %p27 = scmp.eq.s32.totalorder %s15, 1
      %p28 = por %p26, %p27
      %p29 = scmp.ne.s32.totalorder %s20, %s21
      %p30 = scmp.eq.s32.totalorder %s15, 0
      %p31 = por %p29, %p30
      %p32 = scmp.ne.s32.totalorder %s20, %s21
      %p33 = scmp.eq.s32.totalorder %s16, 1
      %p34 = por %p32, %p33
      %p36 = scmp.ne.s32.totalorder %s21, %s35
      %p37 = scmp.eq.s32.totalorder %s16, 0
      %p38 = por %p36, %p37
      %s39 = ssub.s32 %s10, %s17
      %p40 = scmp.eq.s32.totalorder %s39, 0
      %s42 = sadd.s32 %s41, 1
      %s43 = scalar_select %p40, %s41, %s42
      %p46 = pneg %p40
      %p47 = scmp.eq.s32.totalorder %s10, 1
      %p48 = por %p46, %p47
      %p49 = scmp.ne.s32.totalorder %s41, %s44
      %p50 = scmp.eq.s32.totalorder %s10, 0
      %p51 = por %p49, %p50
      %p52 = scmp.ne.s32.totalorder %s41, %s44
      %p53 = scmp.eq.s32.totalorder %s15, 1
      %p54 = por %p52, %p53
      %p55 = scmp.ne.s32.totalorder %s44, %s45
      %p56 = scmp.eq.s32.totalorder %s15, 0
      %p57 = por %p55, %p56
      %p58 = scmp.ne.s32.totalorder %s44, %s45
      %p59 = scmp.eq.s32.totalorder %s16, 1
      %p60 = por %p58, %p59
      %p62 = scmp.ne.s32.totalorder %s45, %s61
      %p63 = scmp.eq.s32.totalorder %s16, 0
      %p64 = por %p62, %p63
      %s66 = sadd.s32 %s65, 1
      %p69 = scmp.eq.s32.totalorder %s10, 1
      %p70 = scmp.ne.s32.totalorder %s65, %s67
      %p71 = scmp.eq.s32.totalorder %s10, 0
      %p72 = por %p70, %p71
      %p73 = scmp.ne.s32.totalorder %s65, %s67
      %p74 = scmp.eq.s32.totalorder %s15, 1
      %p75 = por %p73, %p74
      %p76 = scmp.ne.s32.totalorder %s67, %s68
      %p77 = scmp.eq.s32.totalorder %s15, 0
      %p78 = por %p76, %p77
      %p79 = scmp.ne.s32.totalorder %s67, %s68
      %p80 = scmp.eq.s32.totalorder %s16, 1
      %p81 = por %p79, %p80
      %p83 = scmp.ne.s32.totalorder %s68, %s82
      %p84 = scmp.eq.s32.totalorder %s16, 0
      %p85 = por %p83, %p84
      %s87 = sadd.s32 %s86, 1
      %p90 = scmp.eq.s32.totalorder %s10, 1
      %p91 = scmp.ne.s32.totalorder %s86, %s88
      %p92 = scmp.eq.s32.totalorder %s10, 0
      %p93 = por %p91, %p92
      %p94 = scmp.ne.s32.totalorder %s86, %s88
      %p95 = scmp.eq.s32.totalorder %s15, 1
      %p96 = por %p94, %p95
      %p97 = scmp.ne.s32.totalorder %s88, %s89
      %p98 = scmp.eq.s32.totalorder %s15, 0
      %p99 = por %p97, %p98
      %p100 = scmp.ne.s32.totalorder %s88, %s89
      %p101 = scmp.eq.s32.totalorder %s16, 1
      %p102 = por %p100, %p101
      %p104 = scmp.ne.s32.totalorder %s89, %s103
      %p105 = scmp.eq.s32.totalorder %s16, 0
      %p106 = por %p104, %p105
      %s107 = ssub.s32 %s10, %s17
      %p108 = scmp.eq.s32.totalorder %s107, 0
      %s110 = sadd.s32 %s109, 1
      %s111 = scalar_select %p108, %s109, %s110
      %p114 = pneg %p108
      %p115 = scmp.eq.s32.totalorder %s10, 1
      %p116 = por %p114, %p115
      %p117 = scmp.ne.s32.totalorder %s109, %s112
      %p118 = scmp.eq.s32.totalorder %s10, 0
      %p119 = por %p117, %p118
      %p120 = scmp.ne.s32.totalorder %s109, %s112
      %p121 = scmp.eq.s32.totalorder %s15, 1
      %p122 = por %p120, %p121
      %p123 = scmp.ne.s32.totalorder %s112, %s113
      %p124 = scmp.eq.s32.totalorder %s15, 0
      %p125 = por %p123, %p124
      %p126 = scmp.ne.s32.totalorder %s112, %s113
      %p127 = scmp.eq.s32.totalorder %s16, 1
      %p128 = por %p126, %p127
      %p130 = scmp.ne.s32.totalorder %s113, %s129
      %p131 = scmp.eq.s32.totalorder %s16, 0
      %p132 = por %p130, %p131
      %p133 = scmp.le.s32.totalorder 1, %s10
      %p134 = scmp.lt.s32.totalorder %s10, 3
      %p135 = pnand %p133, %p134
      %p136 = pneg %p135
      // Predicated region
      $region9: #{eeegnet_b_forward.11} parent=5 // pred_check
        _
      $region10: #{eeegnet_b_forward.11} parent=5 // pred_check_branch
        %138 = sbr.rel (%p135) target = $region12
      $region11: #{eeegnet_b_forward.11} parent=5 // pred_region
        %s139 = ssub.s32 %s10, 1
        // Predicated region
        $region13: #{eeegnet_b_forward.11} parent=11 // pred_check
          %p140 = pneg %p31
        $region14: #{eeegnet_b_forward.11} parent=11 // pred_check_branch
          %142 = sbr.rel (%p140) target = $region16
        $region15: #{eeegnet_b_forward.11} parent=11 // pred_region
          _
        $region16: #{eeegnet_b_forward.11} parent=11 // pred_fallthru
          _
        // Predicated region
        $region17: #{eeegnet_b_forward.11} parent=11 // pred_check
          %p143 = pneg %p78
        $region18: #{eeegnet_b_forward.11} parent=11 // pred_check_branch
          %145 = sbr.rel (%p143) target = $region20
        $region19: #{eeegnet_b_forward.11} parent=11 // pred_region
          _
        $region20: #{eeegnet_b_forward.11} parent=11 // pred_fallthru
          _
        // Predicated region
        $region21: #{eeegnet_b_forward.11} parent=11 // pred_check
          %p146 = pneg %p99
        $region22: #{eeegnet_b_forward.11} parent=11 // pred_check_branch
          %148 = sbr.rel (%p146) target = $region24
        $region23: #{eeegnet_b_forward.11} parent=11 // pred_region
          _
        $region24: #{eeegnet_b_forward.11} parent=11 // pred_fallthru
          _
      $region12: #{eeegnet_b_forward.11} parent=5 // pred_fallthru
        _
      %p149 = scmp.lt.s32.totalorder %s10, 2
      // Predicated region
      $region25: #{eeegnet_b_forward.11} parent=5 // pred_check
        %p150 = pneg %p149
      $region26: #{eeegnet_b_forward.11} parent=5 // pred_check_branch
        %152 = sbr.rel (%p150) target = $region28
      $region27: #{eeegnet_b_forward.11} parent=5 // pred_region
        // Predicated region
        $region29: #{eeegnet_b_forward.11} parent=27 // pred_check
          %p153 = pneg %p51
        $region30: #{eeegnet_b_forward.11} parent=27 // pred_check_branch
          %155 = sbr.rel (%p153) target = $region32
        $region31: #{eeegnet_b_forward.11} parent=27 // pred_region
          %s156 = sand.u32 %s41, 1
          %s157 = sand.u32 %s41, 1
          %s158 = smul.addr %s157, 336
          %s159 = scalar_lea.vmem [#allocation2], %s158
          %s160 = smul.u32 4, %s10
          %s161 = smul.addr %s160, 4
          %s162 = scalar_lea.vmem %s1, %s161
          // Predicated region
          $region33: #{eeegnet_b_forward.11} parent=31 // pred_check
            _
          $region34: #{eeegnet_b_forward.11} parent=31 // pred_check_branch
            %164 = sbr.rel (0) target = $region36
          $region35: #{eeegnet_b_forward.11} parent=31 // pred_region
            // Predicated region
            $region37: #{eeegnet_b_forward.11} parent=35 // pred_check
              _
            $region38: #{eeegnet_b_forward.11} parent=35 // pred_check_branch
              %166 = sbr.rel (0) target = $region40
            $region39: #{eeegnet_b_forward.11} parent=35 // pred_region
              loop: start=0, step=1, limit=1
              $region41: #{eeegnet_b_forward.11} parent=39 // loop_pre_header
                _
              $region42: #{eeegnet_b_forward.11} parent=39 // loop_header
                %s168 = sphi 0, %s172
                %p169 = scmp.ge.s32.totalorder %s168, 1
                %s173 = sphi %s162, %s162
                %s174 = sphi %s159, %s159
              $region43: #{eeegnet_b_forward.11} parent=39 // loop_header_branch
                %171 = sbr.rel (%p169) target = $region47
              $region44: #{eeegnet_b_forward.11} parent=39 // loop_body
                %v175 = vld [vmem:[%s173] sm:$0xff]
                %176 = vst [vmem:[%s174] sm:$0xff] %v175
                %v177 = vld [vmem:[%s173 + $0x8] sm:$0xff]
                %178 = vst [vmem:[%s174 + $0x8] sm:$0xff] %v177
                %v179 = vld [vmem:[%s173 + $0x20] sm:$0xff]
                %180 = vst [vmem:[%s174 + $0x10] sm:$0xff] %v179
                %v181 = vld [vmem:[%s173 + $0x28] sm:$0xff]
                %182 = vst [vmem:[%s174 + $0x18] sm:$0xff] %v181
                %v183 = vld [vmem:[%s173 + $0x40] sm:$0xff]
                %184 = vst [vmem:[%s174 + $0x20] sm:$0xff] %v183
                %v185 = vld [vmem:[%s173 + $0x48] sm:$0xff]
                %186 = vst [vmem:[%s174 + $0x28] sm:$0xff] %v185
                %v187 = vld [vmem:[%s173 + $0x60] sm:$0xff]
                %188 = vst [vmem:[%s174 + $0x30] sm:$0xff] %v187
                %v189 = vld [vmem:[%s173 + $0x68] sm:$0xff]
                %190 = vst [vmem:[%s174 + $0x38] sm:$0xff] %v189
                %v191 = vld [vmem:[%s173 + $0x80] sm:$0xff]
                %192 = vst [vmem:[%s174 + $0x40] sm:$0xff] %v191
                %v193 = vld [vmem:[%s173 + $0x88] sm:$0xff]
                %194 = vst [vmem:[%s174 + $0x48] sm:$0xff] %v193
                %v195 = vld [vmem:[%s173 + $0xa0] sm:$0xff]
                %196 = vst [vmem:[%s174 + $0x50] sm:$0xff] %v195
                %v197 = vld [vmem:[%s173 + $0xa8] sm:$0xff]
                %198 = vst [vmem:[%s174 + $0x58] sm:$0xff] %v197
                %v199 = vld [vmem:[%s173 + $0xc0] sm:$0xff]
                %200 = vst [vmem:[%s174 + $0x60] sm:$0xff] %v199
                %v201 = vld [vmem:[%s173 + $0xc8] sm:$0xff]
                %202 = vst [vmem:[%s174 + $0x68] sm:$0xff] %v201
                %v203 = vld [vmem:[%s173 + $0xe0] sm:$0xff]
                %204 = vst [vmem:[%s174 + $0x70] sm:$0xff] %v203
                %v205 = vld [vmem:[%s173 + $0xe8] sm:$0xff]
                %206 = vst [vmem:[%s174 + $0x78] sm:$0xff] %v205
                %v207 = vld [vmem:[%s173 + $0x100] sm:$0xff]
                %208 = vst [vmem:[%s174 + $0x80] sm:$0xff] %v207
                %v209 = vld [vmem:[%s173 + $0x108] sm:$0xff]
                %210 = vst [vmem:[%s174 + $0x88] sm:$0xff] %v209
                %v211 = vld [vmem:[%s173 + $0x120] sm:$0xff]
                %212 = vst [vmem:[%s174 + $0x90] sm:$0xff] %v211
                %v213 = vld [vmem:[%s173 + $0x128] sm:$0xff]
                %214 = vst [vmem:[%s174 + $0x98] sm:$0xff] %v213
                %v215 = vld [vmem:[%s173 + $0x140] sm:$0xff]
                %216 = vst [vmem:[%s174 + $0xa0] sm:$0xff] %v215
                %v217 = vld [vmem:[%s173 + $0x148] sm:$0xff]
                %218 = vst [vmem:[%s174 + $0xa8] sm:$0xff] %v217
                %v219 = vld [vmem:[%s173 + $0x160] sm:$0xff]
                %220 = vst [vmem:[%s174 + $0xb0] sm:$0xff] %v219
                %v221 = vld [vmem:[%s173 + $0x168] sm:$0xff]
                %222 = vst [vmem:[%s174 + $0xb8] sm:$0xff] %v221
                %v223 = vld [vmem:[%s173 + $0x180] sm:$0xff]
                %224 = vst [vmem:[%s174 + $0xc0] sm:$0xff] %v223
                %v225 = vld [vmem:[%s173 + $0x188] sm:$0xff]
                %226 = vst [vmem:[%s174 + $0xc8] sm:$0xff] %v225
                %v227 = vld [vmem:[%s173 + $0x1a0] sm:$0xff]
                %228 = vst [vmem:[%s174 + $0xd0] sm:$0xff] %v227
                %v229 = vld [vmem:[%s173 + $0x1a8] sm:$0xff]
                %230 = vst [vmem:[%s174 + $0xd8] sm:$0xff] %v229
                %v231 = vld [vmem:[%s173 + $0x1c0] sm:$0xff]
                %232 = vst [vmem:[%s174 + $0xe0] sm:$0xff] %v231
                %v233 = vld [vmem:[%s173 + $0x1c8] sm:$0xff]
                %234 = vst [vmem:[%s174 + $0xe8] sm:$0xff] %v233
                %v235 = vld [vmem:[%s173 + $0x1e0] sm:$0xff]
                %236 = vst [vmem:[%s174 + $0xf0] sm:$0xff] %v235
                %v237 = vld [vmem:[%s173 + $0x1e8] sm:$0xff]
                %238 = vst [vmem:[%s174 + $0xf8] sm:$0xff] %v237
                %v239 = vld [vmem:[%s173 + $0x200] sm:$0xff]
                %240 = vst [vmem:[%s174 + $0x100] sm:$0xff] %v239
                %v241 = vld [vmem:[%s173 + $0x208] sm:$0xff]
                %242 = vst [vmem:[%s174 + $0x108] sm:$0xff] %v241
                %v243 = vld [vmem:[%s173 + $0x220] sm:$0xff]
                %244 = vst [vmem:[%s174 + $0x110] sm:$0xff] %v243
                %v245 = vld [vmem:[%s173 + $0x228] sm:$0xff]
                %246 = vst [vmem:[%s174 + $0x118] sm:$0xff] %v245
                %v247 = vld [vmem:[%s173 + $0x240] sm:$0xff]
                %248 = vst [vmem:[%s174 + $0x120] sm:$0xff] %v247
                %v249 = vld [vmem:[%s173 + $0x248] sm:$0xff]
                %250 = vst [vmem:[%s174 + $0x128] sm:$0xff] %v249
                %v251 = vld [vmem:[%s173 + $0x260] sm:$0xff]
                %252 = vst [vmem:[%s174 + $0x130] sm:$0xff] %v251
                %v253 = vld [vmem:[%s173 + $0x268] sm:$0xff]
                %254 = vst [vmem:[%s174 + $0x138] sm:$0xff] %v253
                %v255 = vld [vmem:[%s173 + $0x280] sm:$0xff]
                %256 = vst [vmem:[%s174 + $0x140] sm:$0xff] %v255
                %v257 = vld [vmem:[%s173 + $0x288] sm:$0xff]
                %258 = vst [vmem:[%s174 + $0x148] sm:$0xff] %v257
              $region45: #{eeegnet_b_forward.11} parent=39 // loop_footer
                %s172 = sadd.s32 1, %s168
              $region46: #{eeegnet_b_forward.11} parent=39 // loop_footer_branch
                %167 = sbr.rel target = $region42
              $region47: #{eeegnet_b_forward.11} parent=39 // loop_exit
                _
            $region40: #{eeegnet_b_forward.11} parent=35 // pred_fallthru
              _
            // Predicated region
            $region48: #{eeegnet_b_forward.11} parent=35 // pred_check
              _
            $region49: #{eeegnet_b_forward.11} parent=35 // pred_check_branch
              %260 = sbr.rel target = $region51
            $region50: #{eeegnet_b_forward.11} parent=35 // pred_region
              _
            $region51: #{eeegnet_b_forward.11} parent=35 // pred_fallthru
              _
          $region36: #{eeegnet_b_forward.11} parent=31 // pred_fallthru
            _
          %261 = vnop
        $region32: #{eeegnet_b_forward.11} parent=27 // pred_fallthru
          _
      $region28: #{eeegnet_b_forward.11} parent=5 // pred_fallthru
        _
      %p262 = scmp.le.s32.totalorder 1, %s10
      %p263 = scmp.lt.s32.totalorder %s10, 3
      %p264 = pnand %p262, %p263
      %p265 = pneg %p264
      // Predicated region
      $region52: #{eeegnet_b_forward.11} parent=5 // pred_check
        _
      $region53: #{eeegnet_b_forward.11} parent=5 // pred_check_branch
        %267 = sbr.rel (%p264) target = $region55
      $region54: #{eeegnet_b_forward.11} parent=5 // pred_region
        %s268 = ssub.s32 %s10, 1
        %s269 = sand.u32 %s44, 1
        %s270 = sand.u32 %s44, 1
        %s271 = smul.addr %s270, 336
        %s272 = scalar_lea.vmem [#allocation2], %s271
        // Predicated region
        $region56: #{eeegnet_b_forward.11} parent=54 // pred_check
          %p273 = pneg %p57
        $region57: #{eeegnet_b_forward.11} parent=54 // pred_check_branch
          %275 = sbr.rel (%p273) target = $region59
        $region58: #{eeegnet_b_forward.11} parent=54 // pred_region
          _
        $region59: #{eeegnet_b_forward.11} parent=54 // pred_fallthru
          _
        %p276 = pneg %p31
        %p277 = pneg %p28
        %s278 = sand.u32 %s44, 1
        %s279 = sand.u32 %s44, 1
        %s280 = smul.addr %s279, 336
        %s281 = scalar_lea.vmem [#allocation2], %s280
        %p282 = pneg %p57
        %p283 = pneg %p54
        %p284 = pneg %p78
        %p285 = pneg %p75
        %p286 = pneg %p99
        %p287 = pneg %p96
        %p288 = pneg %p125
        %p289 = pneg %p122
        %s290 = smul.u32 4, %s15
        %p291 = scmp.lt.s32.totalorder %s290, 7
        %s292 = scalar_select %p291, %s290, 7
        %s293 = smul.addr %s292, 8
        %s294 = scalar_lea.vmem %s4, %s293
        %s295 = smul.u32 4, %s15
        %s296 = smul.u32 4, %s15
        %p297 = scmp.lt.s32.totalorder %s296, 7
        %s298 = scalar_select %p297, %s296, 7
        %s299 = smul.addr %s298, 8
        %s300 = scalar_lea.vmem %s4, %s299
        %s301 = smul.u32 4, %s15
        %v303 = vld [vmem:[%s0] sm:$0x77]
        %v304 = vld [vmem:[%s272] sm:$0xff]
        %v305 = vld [vmem:[%s272 + $0x8] sm:$0xff]
        %v306 = vld [vmem:[%s272 + $0x10] sm:$0xff]
        %v307 = vld [vmem:[%s272 + $0x18] sm:$0xff]
        %v308 = vld [vmem:[%s272 + $0x20] sm:$0xff]
        %v309 = vld [vmem:[%s272 + $0x28] sm:$0xff]
        %v310 = vld [vmem:[%s272 + $0x30] sm:$0xff]
        %v311 = vld [vmem:[%s272 + $0x38] sm:$0xff]
        %v312 = vld [vmem:[%s272 + $0x40] sm:$0xff]
        %v313 = vld [vmem:[%s272 + $0x48] sm:$0xff]
        %v314 = vld [vmem:[%s272 + $0x50] sm:$0xff]
        %v315 = vld [vmem:[%s272 + $0x58] sm:$0xff]
        %v316 = vld [vmem:[%s272 + $0x60] sm:$0xff]
        %v317 = vld [vmem:[%s272 + $0x68] sm:$0xff]
        %v318 = vld [vmem:[%s272 + $0x70] sm:$0xff]
        %v319 = vld [vmem:[%s272 + $0x78] sm:$0xff]
        %v320 = vld [vmem:[%s272 + $0x80] sm:$0xff]
        %v321 = vld [vmem:[%s272 + $0x88] sm:$0xff]
        %v322 = vld [vmem:[%s272 + $0x90] sm:$0xff]
        %v323 = vld [vmem:[%s272 + $0x98] sm:$0xff]
        %v324 = vld [vmem:[%s272 + $0xa0] sm:$0xff]
        %v325 = vld [vmem:[%s272 + $0xa8] sm:$0xff]
        %v326 = vld [vmem:[%s272 + $0xb0] sm:$0xff]
        %v327 = vld [vmem:[%s272 + $0xb8] sm:$0xff]
        %v328 = vld [vmem:[%s272 + $0xc0] sm:$0xff]
        %v329 = vld [vmem:[%s272 + $0xc8] sm:$0xff]
        %v330 = vld [vmem:[%s272 + $0xd0] sm:$0xff]
        %v331 = vld [vmem:[%s272 + $0xd8] sm:$0xff]
        %v332 = vld [vmem:[%s272 + $0xe0] sm:$0xff]
        %v333 = vld [vmem:[%s272 + $0xe8] sm:$0xff]
        %v334 = vld [vmem:[%s272 + $0xf0] sm:$0xff]
        %v335 = vld [vmem:[%s272 + $0xf8] sm:$0xff]
        %v336 = vld [vmem:[%s272 + $0x100] sm:$0xff]
        %v337 = vld [vmem:[%s272 + $0x108] sm:$0xff]
        %v338 = vld [vmem:[%s272 + $0x110] sm:$0xff]
        %v339 = vld [vmem:[%s272 + $0x118] sm:$0xff]
        %v340 = vld [vmem:[%s272 + $0x120] sm:$0xff]
        %v341 = vld [vmem:[%s272 + $0x128] sm:$0xff]
        %v342 = vld [vmem:[%s272 + $0x130] sm:$0xff]
        %v343 = vld [vmem:[%s272 + $0x138] sm:$0xff]
        %v344 = vld [vmem:[%s272 + $0x140] sm:$0x11]
        %v345 = vld [vmem:[%s272 + $0x148] sm:$0x11]
        %v347 = vunpack.c.l.b16 %v303
        %v348 = vunpack.c.h.b16 %v303
        %v349 = vpack.c.b16 %v347, %v347
        %v350 = vpack.c.b16 %v348, %v348
        %v394 = vunpack.c.l.b16 %v304
        %v395 = vunpack.c.h.b16 %v304
        %v396 = vunpack.c.l.b16 %v305
        %v397 = vunpack.c.h.b16 %v305
        %v398 = vunpack.c.l.b16 %v306
        %v399 = vunpack.c.h.b16 %v306
        %v400 = vunpack.c.l.b16 %v307
        %v401 = vunpack.c.h.b16 %v307
        %v402 = vunpack.c.l.b16 %v308
        %v403 = vunpack.c.h.b16 %v308
        %v404 = vunpack.c.l.b16 %v309
        %v405 = vunpack.c.h.b16 %v309
        %v406 = vunpack.c.l.b16 %v310
        %v407 = vunpack.c.h.b16 %v310
        %v408 = vunpack.c.l.b16 %v311
        %v409 = vunpack.c.h.b16 %v311
        %v410 = vunpack.c.l.b16 %v312
        %v411 = vunpack.c.h.b16 %v312
        %v412 = vunpack.c.l.b16 %v313
        %v413 = vunpack.c.h.b16 %v313
        %v414 = vunpack.c.l.b16 %v314
        %v415 = vunpack.c.h.b16 %v314
        %v416 = vunpack.c.l.b16 %v315
        %v417 = vunpack.c.h.b16 %v315
        %v418 = vunpack.c.l.b16 %v316
        %v419 = vunpack.c.h.b16 %v316
        %v420 = vunpack.c.l.b16 %v317
        %v421 = vunpack.c.h.b16 %v317
        %v422 = vunpack.c.l.b16 %v318
        %v423 = vunpack.c.h.b16 %v318
        %v424 = vunpack.c.l.b16 %v319
        %v425 = vunpack.c.h.b16 %v319
        %v426 = vunpack.c.l.b16 %v320
        %v427 = vunpack.c.h.b16 %v320
        %v428 = vunpack.c.l.b16 %v321
        %v429 = vunpack.c.h.b16 %v321
        %v430 = vunpack.c.l.b16 %v322
        %v431 = vunpack.c.h.b16 %v322
        %v432 = vunpack.c.l.b16 %v323
        %v433 = vunpack.c.h.b16 %v323
        %v434 = vunpack.c.l.b16 %v324
        %v435 = vunpack.c.h.b16 %v324
        %v436 = vunpack.c.l.b16 %v325
        %v437 = vunpack.c.h.b16 %v325
        %v438 = vunpack.c.l.b16 %v326
        %v439 = vunpack.c.h.b16 %v326
        %v440 = vunpack.c.l.b16 %v327
        %v441 = vunpack.c.h.b16 %v327
        %v442 = vunpack.c.l.b16 %v328
        %v443 = vunpack.c.h.b16 %v328
        %v444 = vunpack.c.l.b16 %v329
        %v445 = vunpack.c.h.b16 %v329
        %v446 = vunpack.c.l.b16 %v330
        %v447 = vunpack.c.h.b16 %v330
        %v448 = vunpack.c.l.b16 %v331
        %v449 = vunpack.c.h.b16 %v331
        %v450 = vunpack.c.l.b16 %v332
        %v451 = vunpack.c.h.b16 %v332
        %v452 = vunpack.c.l.b16 %v333
        %v453 = vunpack.c.h.b16 %v333
        %v454 = vunpack.c.l.b16 %v334
        %v455 = vunpack.c.h.b16 %v334
        %v456 = vunpack.c.l.b16 %v335
        %v457 = vunpack.c.h.b16 %v335
        %v458 = vunpack.c.l.b16 %v336
        %v459 = vunpack.c.h.b16 %v336
        %v460 = vunpack.c.l.b16 %v337
        %v461 = vunpack.c.h.b16 %v337
        %v462 = vunpack.c.l.b16 %v338
        %v463 = vunpack.c.h.b16 %v338
        %v464 = vunpack.c.l.b16 %v339
        %v465 = vunpack.c.h.b16 %v339
        %v466 = vunpack.c.l.b16 %v340
        %v467 = vunpack.c.h.b16 %v340
        %v468 = vunpack.c.l.b16 %v341
        %v469 = vunpack.c.h.b16 %v341
        %v470 = vunpack.c.l.b16 %v342
        %v471 = vunpack.c.h.b16 %v342
        %v472 = vunpack.c.l.b16 %v343
        %v473 = vunpack.c.h.b16 %v343
        %v474 = vunpack.c.l.b16 %v344
        %v475 = vunpack.c.h.b16 %v344
        %v476 = vunpack.c.l.b16 %v345
        %v477 = vunpack.c.h.b16 %v345
        %v478 = vpack.c.b16 %v398, %v394
        %v479 = vpack.c.b16 %v399, %v395
        %v480 = vpack.c.b16 %v400, %v396
        %v481 = vpack.c.b16 %v401, %v397
        %v482 = vpack.c.b16 %v406, %v402
        %v483 = vpack.c.b16 %v407, %v403
        %v484 = vpack.c.b16 %v408, %v404
        %v485 = vpack.c.b16 %v409, %v405
        %v486 = vpack.c.b16 %v414, %v410
        %v487 = vpack.c.b16 %v415, %v411
        %v488 = vpack.c.b16 %v416, %v412
        %v489 = vpack.c.b16 %v417, %v413
        %v490 = vpack.c.b16 %v422, %v418
        %v491 = vpack.c.b16 %v423, %v419
        %v492 = vpack.c.b16 %v424, %v420
        %v493 = vpack.c.b16 %v425, %v421
        %v494 = vpack.c.b16 %v430, %v426
        %v495 = vpack.c.b16 %v431, %v427
        %v496 = vpack.c.b16 %v432, %v428
        %v497 = vpack.c.b16 %v433, %v429
        %v498 = vpack.c.b16 %v438, %v434
        %v499 = vpack.c.b16 %v439, %v435
        %v500 = vpack.c.b16 %v440, %v436
        %v501 = vpack.c.b16 %v441, %v437
        %v502 = vpack.c.b16 %v446, %v442
        %v503 = vpack.c.b16 %v447, %v443
        %v504 = vpack.c.b16 %v448, %v444
        %v505 = vpack.c.b16 %v449, %v445
        %v506 = vpack.c.b16 %v454, %v450
        %v507 = vpack.c.b16 %v455, %v451
        %v508 = vpack.c.b16 %v456, %v452
        %v509 = vpack.c.b16 %v457, %v453
        %v510 = vpack.c.b16 %v462, %v458
        %v511 = vpack.c.b16 %v463, %v459
        %v512 = vpack.c.b16 %v464, %v460
        %v513 = vpack.c.b16 %v465, %v461
        %v514 = vpack.c.b16 %v470, %v466
        %v515 = vpack.c.b16 %v471, %v467
        %v516 = vpack.c.b16 %v472, %v468
        %v517 = vpack.c.b16 %v473, %v469
        %v518 = vpack.c.b16 %v474, %v474
        %v519 = vpack.c.b16 %v475, %v475
        %v520 = vpack.c.b16 %v476, %v476
        %v521 = vpack.c.b16 %v477, %v477
        %vm562 = vcmask 277504
        %v564 = vsel %vm562, %v350, 0
        %vm566 = vcmask 1040384
        %v568 = vsel %vm566, %v518, 0
        %v571 = vsel %vm566, %v519, 0
        %v574 = vsel %vm566, %v520, 0
        %v577 = vsel %vm566, %v521, 0
        %579 = vmatprep.subr.bf16.mxu0 %v479
        %580 = vmatpush1.bf16.msra.mxu0 %v478
        %581 = vmatprep.subr.bf16.mxu0 %v483
        %582 = vmatpush1.bf16.msra.mxu0 %v482
        %583 = vmatprep.subr.bf16.mxu0 %v487
        %584 = vmatpush1.bf16.msra.mxu0 %v486
        %585 = vmatprep.subr.bf16.mxu0 %v491
        %586 = vmatpush1.bf16.msra.mxu0 %v490
        %587 = vmatprep.subr.bf16.mxu0 %v495
        %588 = vmatpush1.bf16.msra.mxu0 %v494
        %589 = vmatprep.subr.bf16.mxu0 %v499
        %590 = vmatpush1.bf16.msra.mxu0 %v498
        %591 = vmatprep.subr.bf16.mxu0 %v503
        %592 = vmatpush1.bf16.msra.mxu0 %v502
        %593 = vmatprep.subr.bf16.mxu0 %v507
        %594 = vmatpush1.bf16.msra.mxu0 %v506
        %595 = vmatprep.subr.bf16.mxu0 %v511
        %596 = vmatpush1.bf16.msra.mxu0 %v510
        %597 = vmatprep.subr.bf16.mxu0 %v515
        %598 = vmatpush1.bf16.msra.mxu0 %v514
        %599 = vmatprep.subr.bf16.mxu0 %v571
        %600 = vmatpush1.bf16.msra.mxu0 %v568
        %601 = vmatprep.subr.bf16.mxu0 0
        %602 = vmatpush1.bf16.msra.mxu0 0
        %603 = vmatprep.subr.bf16.mxu0 0
        %604 = vmatpush1.bf16.msra.mxu0 0
        %605 = vmatprep.subr.bf16.mxu0 0
        %606 = vmatpush1.bf16.msra.mxu0 0
        %607 = vmatprep.subr.bf16.mxu0 0
        %608 = vmatpush1.bf16.msra.mxu0 0
        %609 = vmatprep.subr.bf16.mxu0 0
        %610 = vmatpush1.bf16.msra.mxu0 0
        %611 = vmatprep.mubr.bf16.mxu0 %v564
        %612 = vmatmul.mubr.bf16.gmra.mrb[0].mxu0 %v349
        %v613 = vpop.f32.mrb[0].mxu0
        %v614 = vadd.f32 0.0, %v613
        %v615 = vpop.f32.mrb[0].mxu0
        %v616 = vadd.f32 0.0, %v615
        %v617 = vpop.f32.mrb[0].mxu0
        %v618 = vpop.f32.mrb[0].mxu0
        %619 = vdwg.mxu0
        %620 = vmatprep.subr.bf16.mxu0 %v481
        %621 = vmatpush1.bf16.msra.mxu0 %v480
        %622 = vmatprep.subr.bf16.mxu0 %v485
        %623 = vmatpush1.bf16.msra.mxu0 %v484
        %624 = vmatprep.subr.bf16.mxu0 %v489
        %625 = vmatpush1.bf16.msra.mxu0 %v488
        %626 = vmatprep.subr.bf16.mxu0 %v493
        %627 = vmatpush1.bf16.msra.mxu0 %v492
        %628 = vmatprep.subr.bf16.mxu0 %v497
        %629 = vmatpush1.bf16.msra.mxu0 %v496
        %630 = vmatprep.subr.bf16.mxu0 %v501
        %631 = vmatpush1.bf16.msra.mxu0 %v500
        %632 = vmatprep.subr.bf16.mxu0 %v505
        %633 = vmatpush1.bf16.msra.mxu0 %v504
        %634 = vmatprep.subr.bf16.mxu0 %v509
        %635 = vmatpush1.bf16.msra.mxu0 %v508
        %636 = vmatprep.subr.bf16.mxu0 %v513
        %637 = vmatpush1.bf16.msra.mxu0 %v512
        %638 = vmatprep.subr.bf16.mxu0 %v517
        %639 = vmatpush1.bf16.msra.mxu0 %v516
        %640 = vmatprep.subr.bf16.mxu0 %v577
        %641 = vmatpush1.bf16.msra.mxu0 %v574
        %642 = vmatprep.subr.bf16.mxu0 0
        %643 = vmatpush1.bf16.msra.mxu0 0
        %644 = vmatprep.subr.bf16.mxu0 0
        %645 = vmatpush1.bf16.msra.mxu0 0
        %646 = vmatprep.subr.bf16.mxu0 0
        %647 = vmatpush1.bf16.msra.mxu0 0
        %648 = vmatprep.subr.bf16.mxu0 0
        %649 = vmatpush1.bf16.msra.mxu0 0
        %650 = vmatprep.subr.bf16.mxu0 0
        %651 = vmatpush1.bf16.msra.mxu0 0
        %652 = vmatprep.mubr.bf16.mxu0 %v564
        %653 = vmatmul.mubr.bf16.gmra.mrb[0].mxu0 %v349
        %v654 = vpop.f32.mrb[0].mxu0
        %v655 = vadd.f32 0.0, %v654
        %v656 = vpop.f32.mrb[0].mxu0
        %v657 = vadd.f32 0.0, %v656
        %v658 = vpop.f32.mrb[0].mxu0
        %v659 = vpop.f32.mrb[0].mxu0
        %660 = vdwg.mxu0
        %v661 = vld [vmem:[%s2] sm:$0x3f]
        %663 = vset.pattern.permute.xlu0 0
        %664 = vperm.xlu0 %663, %v661
        %v665 = vpop.permute.xlu0 %664
        %v667 = vmul.f32 %v614, %v665
        %v668 = vmul.f32 %v616, %v665
        %v669 = vmul.f32 %v655, %v665
        %v670 = vmul.f32 %v657, %v665
        %v671 = vld [vmem:[%s3] sm:$0x3f]
        %673 = vset.pattern.permute.xlu0 0
        %674 = vperm.xlu0 %673, %v671
        %v675 = vpop.permute.xlu0 %674
        %v677 = vadd.f32 %v667, %v675
        %v678 = vadd.f32 %v668, %v675
        %v679 = vadd.f32 %v669, %v675
        %v680 = vadd.f32 %v670, %v675
        %681 = vst [vmem:[%s300] sm:$0x3f] %v677
        %682 = vst [vmem:[%s300 + $0x8] sm:$0x3f] %v678
        %683 = vst [vmem:[%s300 + $0x10] sm:$0x3f] %v679
        %684 = vst [vmem:[%s300 + $0x18] sm:$0x3f] %v680
        %s685 = smul.u32 4, %s15
        %p686 = scmp.lt.s32.totalorder %s685, 7
        %s687 = scalar_select %p686, %s685, 7
        %s688 = smul.addr %s687, 8
        %s689 = scalar_lea.vmem %s4, %s688
        // Predicated region
        $region60: #{eeegnet_b_forward.11} parent=54 // pred_check
          %p690 = pneg %p122
        $region61: #{eeegnet_b_forward.11} parent=54 // pred_check_branch
          %692 = sbr.rel (%p690) target = $region63
        $region62: #{eeegnet_b_forward.11} parent=54 // pred_region
          %s693 = smul.u32 4, %s15
        $region63: #{eeegnet_b_forward.11} parent=54 // pred_fallthru
          _
      $region55: #{eeegnet_b_forward.11} parent=5 // pred_fallthru
        _
      %p694 = scmp.le.s32.totalorder 2, %s10
      // Predicated region
      $region64: #{eeegnet_b_forward.11} parent=5 // pred_check
        %p695 = pneg %p694
      $region65: #{eeegnet_b_forward.11} parent=5 // pred_check_branch
        %697 = sbr.rel (%p695) target = $region67
      $region66: #{eeegnet_b_forward.11} parent=5 // pred_region
        %s698 = ssub.s32 %s10, 2
        // Predicated region
        $region68: #{eeegnet_b_forward.11} parent=66 // pred_check
          %p699 = pneg %p128
        $region69: #{eeegnet_b_forward.11} parent=66 // pred_check_branch
          %701 = sbr.rel (%p699) target = $region71
        $region70: #{eeegnet_b_forward.11} parent=66 // pred_region
          %s702 = smul.u32 4, %s16
          %p703 = scmp.lt.s32.totalorder %s702, 7
          %s704 = scalar_select %p703, %s702, 7
          %s705 = smul.addr %s704, 8
          %s706 = scalar_lea.vmem %s4, %s705
        $region71: #{eeegnet_b_forward.11} parent=66 // pred_fallthru
          _
      $region67: #{eeegnet_b_forward.11} parent=5 // pred_fallthru
        _
    $region6: #{eeegnet_b_forward.11} parent=1 // loop_footer
      %s14 = sadd.s32 1, %s10
    $region7: #{eeegnet_b_forward.11} parent=1 // loop_footer_branch
      %9 = sbr.rel target = $region3
    $region8: #{eeegnet_b_forward.11} parent=1 // loop_exit
      _

// kernel: eeegnet_b_forward.12
$region0: #{eeegnet_b_forward.12}
  #allocation0 [shape = 'u32[]', space=smem, size = 0x4, offset = 0x4, fixed_abs, tag = 'smem constant byte address 0x4 - core index']
  #allocation1 [shape = 'u32[144,128]{1,0:T(1,128)}', space=vmem, size = 0x12000, scoped, tag = 'internal scratch']
  %s0 = inlined_call_operand.vmem [shape: bf16[6,6], index: 0, kind: input, shape index: {}]
  %s1 = inlined_call_operand.vmem [shape: bf16[6,1024], index: 1, kind: input, shape index: {}]
  %s2 = inlined_call_operand.vmem [shape: f32[6,1], index: 2, kind: input, shape index: {}]
  %s3 = inlined_call_operand.vmem [shape: f32[6,1], index: 3, kind: input, shape index: {}]
  %s4 = inlined_call_operand.vmem [shape: f32[6,1024], index: 4, kind: input, shape index: {}]
  %s5 = inlined_call_operand.vmem [shape: f32[6,1024], index: 5, kind: output, shape index: {}]
  %s6 = sld [smem:[#allocation0]]
  $region53: #{eeegnet_b_forward.12} parent=0
    _
  %s8 = ssub.s32 1, %s6
  %s9 = scalar_select 0, %s8, %s6
  loop: start=0, step=1, limit=4
  $region2: #{eeegnet_b_forward.12} parent=0 // loop_pre_header
    _
  $region3: #{eeegnet_b_forward.12} parent=0 // loop_header
    %s11 = sphi 0, %s15
    %p12 = scmp.ge.s32.totalorder %s11, 4
    %s19 = sphi 0, %s19
    %s21 = sphi 0, %s19
    %s22 = sphi 0, %s21
    %s36 = sphi 0, %s22
    %s42 = sphi 0, %s44
    %s45 = sphi 0, %s42
    %s46 = sphi 0, %s45
    %s62 = sphi 0, %s46
    %s66 = sphi 0, %s66
    %s68 = sphi 0, %s66
    %s69 = sphi 0, %s68
    %s83 = sphi 0, %s69
    %s87 = sphi 0, %s87
    %s89 = sphi 0, %s87
    %s90 = sphi 0, %s89
    %s104 = sphi 0, %s90
    %s110 = sphi 0, %s112
    %s113 = sphi 0, %s110
    %s114 = sphi 0, %s113
    %s130 = sphi 0, %s114
    %s136 = sphi 0, %s138
    %s139 = sphi 0, %s136
    %s140 = sphi 0, %s139
    %s156 = sphi 0, %s140
  $region4: #{eeegnet_b_forward.12} parent=0 // loop_header_branch
    %14 = sbr.rel (%p12) target = $region8
  $region5: #{eeegnet_b_forward.12} parent=0 // loop_body
    %s16 = ssub.s32 %s11, 1
    %s17 = ssub.s32 %s11, 2
    %s18 = sadd.s32 %s11, 1
    %s20 = sadd.s32 %s19, 1
    %p23 = scmp.eq.s32.totalorder %s11, 1
    %p24 = scmp.ne.s32.totalorder %s19, %s21
    %p25 = scmp.eq.s32.totalorder %s11, 0
    %p26 = por %p24, %p25
    %p27 = scmp.ne.s32.totalorder %s19, %s21
    %p28 = scmp.eq.s32.totalorder %s16, 1
    %p29 = por %p27, %p28
    %p30 = scmp.ne.s32.totalorder %s21, %s22
    %p31 = scmp.eq.s32.totalorder %s16, 0
    %p32 = por %p30, %p31
    %p33 = scmp.ne.s32.totalorder %s21, %s22
    %p34 = scmp.eq.s32.totalorder %s17, 1
    %p35 = por %p33, %p34
    %p37 = scmp.ne.s32.totalorder %s22, %s36
    %p38 = scmp.eq.s32.totalorder %s17, 0
    %p39 = por %p37, %p38
    %s40 = ssub.s32 %s11, %s18
    %p41 = scmp.eq.s32.totalorder %s40, 0
    %s43 = sadd.s32 %s42, 1
    %s44 = scalar_select %p41, %s42, %s43
    %p47 = pneg %p41
    %p48 = scmp.eq.s32.totalorder %s11, 1
    %p49 = por %p47, %p48
    %p50 = scmp.ne.s32.totalorder %s42, %s45
    %p51 = scmp.eq.s32.totalorder %s11, 0
    %p52 = por %p50, %p51
    %p53 = scmp.ne.s32.totalorder %s42, %s45
    %p54 = scmp.eq.s32.totalorder %s16, 1
    %p55 = por %p53, %p54
    %p56 = scmp.ne.s32.totalorder %s45, %s46
    %p57 = scmp.eq.s32.totalorder %s16, 0
    %p58 = por %p56, %p57
    %p59 = scmp.ne.s32.totalorder %s45, %s46
    %p60 = scmp.eq.s32.totalorder %s17, 1
    %p61 = por %p59, %p60
    %p63 = scmp.ne.s32.totalorder %s46, %s62
    %p64 = scmp.eq.s32.totalorder %s17, 0
    %p65 = por %p63, %p64
    %s67 = sadd.s32 %s66, 1
    %p70 = scmp.eq.s32.totalorder %s11, 1
    %p71 = scmp.ne.s32.totalorder %s66, %s68
    %p72 = scmp.eq.s32.totalorder %s11, 0
    %p73 = por %p71, %p72
    %p74 = scmp.ne.s32.totalorder %s66, %s68
    %p75 = scmp.eq.s32.totalorder %s16, 1
    %p76 = por %p74, %p75
    %p77 = scmp.ne.s32.totalorder %s68, %s69
    %p78 = scmp.eq.s32.totalorder %s16, 0
    %p79 = por %p77, %p78
    %p80 = scmp.ne.s32.totalorder %s68, %s69
    %p81 = scmp.eq.s32.totalorder %s17, 1
    %p82 = por %p80, %p81
    %p84 = scmp.ne.s32.totalorder %s69, %s83
    %p85 = scmp.eq.s32.totalorder %s17, 0
    %p86 = por %p84, %p85
    %s88 = sadd.s32 %s87, 1
    %p91 = scmp.eq.s32.totalorder %s11, 1
    %p92 = scmp.ne.s32.totalorder %s87, %s89
    %p93 = scmp.eq.s32.totalorder %s11, 0
    %p94 = por %p92, %p93
    %p95 = scmp.ne.s32.totalorder %s87, %s89
    %p96 = scmp.eq.s32.totalorder %s16, 1
    %p97 = por %p95, %p96
    %p98 = scmp.ne.s32.totalorder %s89, %s90
    %p99 = scmp.eq.s32.totalorder %s16, 0
    %p100 = por %p98, %p99
    %p101 = scmp.ne.s32.totalorder %s89, %s90
    %p102 = scmp.eq.s32.totalorder %s17, 1
    %p103 = por %p101, %p102
    %p105 = scmp.ne.s32.totalorder %s90, %s104
    %p106 = scmp.eq.s32.totalorder %s17, 0
    %p107 = por %p105, %p106
    %s108 = ssub.s32 %s11, %s18
    %p109 = scmp.eq.s32.totalorder %s108, 0
    %s111 = sadd.s32 %s110, 1
    %s112 = scalar_select %p109, %s110, %s111
    %p115 = pneg %p109
    %p116 = scmp.eq.s32.totalorder %s11, 1
    %p117 = por %p115, %p116
    %p118 = scmp.ne.s32.totalorder %s110, %s113
    %p119 = scmp.eq.s32.totalorder %s11, 0
    %p120 = por %p118, %p119
    %p121 = scmp.ne.s32.totalorder %s110, %s113
    %p122 = scmp.eq.s32.totalorder %s16, 1
    %p123 = por %p121, %p122
    %p124 = scmp.ne.s32.totalorder %s113, %s114
    %p125 = scmp.eq.s32.totalorder %s16, 0
    %p126 = por %p124, %p125
    %p127 = scmp.ne.s32.totalorder %s113, %s114
    %p128 = scmp.eq.s32.totalorder %s17, 1
    %p129 = por %p127, %p128
    %p131 = scmp.ne.s32.totalorder %s114, %s130
    %p132 = scmp.eq.s32.totalorder %s17, 0
    %p133 = por %p131, %p132
    %s134 = ssub.s32 %s11, %s18
    %p135 = scmp.eq.s32.totalorder %s134, 0
    %s137 = sadd.s32 %s136, 1
    %s138 = scalar_select %p135, %s136, %s137
    %p141 = pneg %p135
    %p142 = scmp.eq.s32.totalorder %s11, 1
    %p143 = por %p141, %p142
    %p144 = scmp.ne.s32.totalorder %s136, %s139
    %p145 = scmp.eq.s32.totalorder %s11, 0
    %p146 = por %p144, %p145
    %p147 = scmp.ne.s32.totalorder %s136, %s139
    %p148 = scmp.eq.s32.totalorder %s16, 1
    %p149 = por %p147, %p148
    %p150 = scmp.ne.s32.totalorder %s139, %s140
    %p151 = scmp.eq.s32.totalorder %s16, 0
    %p152 = por %p150, %p151
    %p153 = scmp.ne.s32.totalorder %s139, %s140
    %p154 = scmp.eq.s32.totalorder %s17, 1
    %p155 = por %p153, %p154
    %p157 = scmp.ne.s32.totalorder %s140, %s156
    %p158 = scmp.eq.s32.totalorder %s17, 0
    %p159 = por %p157, %p158
    %p160 = scmp.le.s32.totalorder 1, %s11
    %p161 = scmp.lt.s32.totalorder %s11, 3
    %p162 = pnand %p160, %p161
    %p163 = pneg %p162
    // Predicated region
    $region9: #{eeegnet_b_forward.12} parent=5 // pred_check
      _
    $region10: #{eeegnet_b_forward.12} parent=5 // pred_check_branch
      %165 = sbr.rel (%p162) target = $region12
    $region11: #{eeegnet_b_forward.12} parent=5 // pred_region
      %s166 = ssub.s32 %s11, 1
      // Predicated region
      $region13: #{eeegnet_b_forward.12} parent=11 // pred_check
        %p167 = pneg %p32
      $region14: #{eeegnet_b_forward.12} parent=11 // pred_check_branch
        %169 = sbr.rel (%p167) target = $region16
      $region15: #{eeegnet_b_forward.12} parent=11 // pred_region
        _
      $region16: #{eeegnet_b_forward.12} parent=11 // pred_fallthru
        _
      // Predicated region
      $region17: #{eeegnet_b_forward.12} parent=11 // pred_check
        %p170 = pneg %p79
      $region18: #{eeegnet_b_forward.12} parent=11 // pred_check_branch
        %172 = sbr.rel (%p170) target = $region20
      $region19: #{eeegnet_b_forward.12} parent=11 // pred_region
        _
      $region20: #{eeegnet_b_forward.12} parent=11 // pred_fallthru
        _
      // Predicated region
      $region21: #{eeegnet_b_forward.12} parent=11 // pred_check
        %p173 = pneg %p100
      $region22: #{eeegnet_b_forward.12} parent=11 // pred_check_branch
        %175 = sbr.rel (%p173) target = $region24
      $region23: #{eeegnet_b_forward.12} parent=11 // pred_region
        _
      $region24: #{eeegnet_b_forward.12} parent=11 // pred_fallthru
        _
    $region12: #{eeegnet_b_forward.12} parent=5 // pred_fallthru
      _
    %p176 = scmp.lt.s32.totalorder %s11, 2
    // Predicated region
    $region25: #{eeegnet_b_forward.12} parent=5 // pred_check
      %p177 = pneg %p176
    $region26: #{eeegnet_b_forward.12} parent=5 // pred_check_branch
      %179 = sbr.rel (%p177) target = $region28
    $region27: #{eeegnet_b_forward.12} parent=5 // pred_region
      // Predicated region
      $region29: #{eeegnet_b_forward.12} parent=27 // pred_check
        %p180 = pneg %p52
      $region30: #{eeegnet_b_forward.12} parent=27 // pred_check_branch
        %182 = sbr.rel (%p180) target = $region32
      $region31: #{eeegnet_b_forward.12} parent=27 // pred_region
        %s183 = smul.u32 4, %s11
        %p184 = scmp.lt.s32.totalorder %s183, 7
        %s185 = scalar_select %p184, %s183, 7
        %s186 = smul.addr %s185, 4
        %s187 = scalar_lea.vmem %s1, %s186
        %s188 = smul.u32 4, %s11
      $region32: #{eeegnet_b_forward.12} parent=27 // pred_fallthru
        _
      // Predicated region
      $region33: #{eeegnet_b_forward.12} parent=27 // pred_check
        %p189 = pneg %p120
      $region34: #{eeegnet_b_forward.12} parent=27 // pred_check_branch
        %191 = sbr.rel (%p189) target = $region36
      $region35: #{eeegnet_b_forward.12} parent=27 // pred_region
        %s192 = smul.u32 4, %s11
        %p193 = scmp.lt.s32.totalorder %s192, 7
        %s194 = scalar_select %p193, %s192, 7
        %s195 = smul.addr %s194, 8
        %s196 = scalar_lea.vmem %s4, %s195
        %s197 = smul.u32 4, %s11
      $region36: #{eeegnet_b_forward.12} parent=27 // pred_fallthru
        _
    $region28: #{eeegnet_b_forward.12} parent=5 // pred_fallthru
      _
    %p198 = scmp.le.s32.totalorder 1, %s11
    %p199 = scmp.lt.s32.totalorder %s11, 3
    %p200 = pnand %p198, %p199
    %p201 = pneg %p200
    // Predicated region
    $region37: #{eeegnet_b_forward.12} parent=5 // pred_check
      _
    $region38: #{eeegnet_b_forward.12} parent=5 // pred_check_branch
      %203 = sbr.rel (%p200) target = $region40
    $region39: #{eeegnet_b_forward.12} parent=5 // pred_region
      %s204 = ssub.s32 %s11, 1
      %p205 = pneg %p32
      %p206 = pneg %p29
      %s207 = smul.u32 4, %s16
      %p208 = scmp.lt.s32.totalorder %s207, 7
      %s209 = scalar_select %p208, %s207, 7
      %s210 = smul.addr %s209, 4
      %s211 = scalar_lea.vmem %s1, %s210
      %p212 = pneg %p58
      %p213 = pneg %p55
      %p214 = pneg %p79
      %p215 = pneg %p76
      %p216 = pneg %p100
      %p217 = pneg %p97
      %s218 = smul.u32 4, %s16
      %p219 = scmp.lt.s32.totalorder %s218, 7
      %s220 = scalar_select %p219, %s218, 7
      %s221 = smul.addr %s220, 8
      %s222 = scalar_lea.vmem %s4, %s221
      %p223 = pneg %p126
      %p224 = pneg %p123
      %p225 = pneg %p152
      %p226 = pneg %p149
      %s227 = smul.u32 4, %s16
      %p228 = scmp.lt.s32.totalorder %s227, 7
      %s229 = scalar_select %p228, %s227, 7
      %s230 = smul.addr %s229, 8
      %s231 = scalar_lea.vmem %s5, %s230
      %s232 = smul.u32 4, %s16
      %p233 = scmp.lt.s32.totalorder %s232, 7
      %s234 = scalar_select %p233, %s232, 7
      %s235 = smul.addr %s234, 4
      %s236 = scalar_lea.vmem %s1, %s235
      %s237 = smul.u32 4, %s16
      %s238 = smul.u32 4, %s16
      %p239 = scmp.lt.s32.totalorder %s238, 7
      %s240 = scalar_select %p239, %s238, 7
      %s241 = smul.addr %s240, 8
      %s242 = scalar_lea.vmem %s4, %s241
      %s243 = smul.u32 4, %s16
      %s244 = smul.u32 4, %s16
      %p245 = scmp.lt.s32.totalorder %s244, 7
      %s246 = scalar_select %p245, %s244, 7
      %s247 = smul.addr %s246, 8
      %s248 = scalar_lea.vmem %s5, %s247
      %s249 = smul.u32 4, %s16
      %v251 = vld [vmem:[%s0] sm:$0x7]
      %v252 = vld [vmem:[%s236] sm:$0x77]
      %v253 = vld [vmem:[%s236 + $0x8] sm:$0x77]
      %v256 = vunpack.c.l.b16 %v252
      %v257 = vunpack.c.h.b16 %v252
      %v258 = vunpack.c.l.b16 %v253
      %v259 = vunpack.c.h.b16 %v253
      %v260 = vpack.c.b16 %v256, %v256
      %v261 = vpack.c.b16 %v257, %v257
      %v262 = vpack.c.b16 %v258, %v258
      %v263 = vpack.c.b16 %v259, %v259
      %vm264 = vcmask 48128
      %v266 = vsel %vm264, %v251, 0
      %vm268 = vcmask 1042432
      %v270 = vsel %vm268, %v260, 0
      %v273 = vsel %vm268, %v261, 0
      %v276 = vsel %vm268, %v262, 0
      %v279 = vsel %vm268, %v263, 0
      %281 = vmatprep.subr.bf16.mxu0 %v273
      %282 = vmatpush1.bf16.msra.mxu0 %v270
      %283 = vmatprep.subr.bf16.mxu0 0
      %284 = vmatpush1.bf16.msra.mxu0 0
      %285 = vmatprep.subr.bf16.mxu0 0
      %286 = vmatpush1.bf16.msra.mxu0 0
      %287 = vmatprep.subr.bf16.mxu0 0
      %288 = vmatpush1.bf16.msra.mxu0 0
      %289 = vmatprep.subr.bf16.mxu0 0
      %290 = vmatpush1.bf16.msra.mxu0 0
      %291 = vmatprep.subr.bf16.mxu0 0
      %292 = vmatpush1.bf16.msra.mxu0 0
      %293 = vmatprep.subr.bf16.mxu0 0
      %294 = vmatpush1.bf16.msra.mxu0 0
      %295 = vmatprep.subr.bf16.mxu0 0
      %296 = vmatpush1.bf16.msra.mxu0 0
      %297 = vmatprep.subr.bf16.mxu0 0
      %298 = vmatpush1.bf16.msra.mxu0 0
      %299 = vmatprep.subr.bf16.mxu0 0
      %300 = vmatpush1.bf16.msra.mxu0 0
      %301 = vmatprep.subr.bf16.mxu0 0
      %302 = vmatpush1.bf16.msra.mxu0 0
      %303 = vmatprep.subr.bf16.mxu0 0
      %304 = vmatpush1.bf16.msra.mxu0 0
      %305 = vmatprep.subr.bf16.mxu0 0
      %306 = vmatpush1.bf16.msra.mxu0 0
      %307 = vmatprep.subr.bf16.mxu0 0
      %308 = vmatpush1.bf16.msra.mxu0 0
      %309 = vmatprep.subr.bf16.mxu0 0
      %310 = vmatpush1.bf16.msra.mxu0 0
      %311 = vmatprep.subr.bf16.mxu0 0
      %312 = vmatpush1.bf16.msra.mxu0 0
      %313 = vmatprep.mubr.bf16.mxu0 0
      %314 = vmatmul.mubr.bf16.gmra.mrb[0].mxu0 %v266
      %v315 = vpop.f32.mrb[0].mxu0
      %v316 = vadd.f32 0.0, %v315
      %v317 = vpop.f32.mrb[0].mxu0
      %v318 = vadd.f32 0.0, %v317
      %v319 = vpop.f32.mrb[0].mxu0
      %v320 = vpop.f32.mrb[0].mxu0
      %321 = vdwg.mxu0
      %322 = vmatprep.subr.bf16.mxu0 %v279
      %323 = vmatpush1.bf16.msra.mxu0 %v276
      %324 = vmatprep.subr.bf16.mxu0 0
      %325 = vmatpush1.bf16.msra.mxu0 0
      %326 = vmatprep.subr.bf16.mxu0 0
      %327 = vmatpush1.bf16.msra.mxu0 0
      %328 = vmatprep.subr.bf16.mxu0 0
      %329 = vmatpush1.bf16.msra.mxu0 0
      %330 = vmatprep.subr.bf16.mxu0 0
      %331 = vmatpush1.bf16.msra.mxu0 0
      %332 = vmatprep.subr.bf16.mxu0 0
      %333 = vmatpush1.bf16.msra.mxu0 0
      %334 = vmatprep.subr.bf16.mxu0 0
      %335 = vmatpush1.bf16.msra.mxu0 0
      %336 = vmatprep.subr.bf16.mxu0 0
      %337 = vmatpush1.bf16.msra.mxu0 0
      %338 = vmatprep.subr.bf16.mxu0 0
      %339 = vmatpush1.bf16.msra.mxu0 0
      %340 = vmatprep.subr.bf16.mxu0 0
      %341 = vmatpush1.bf16.msra.mxu0 0
      %342 = vmatprep.subr.bf16.mxu0 0
      %343 = vmatpush1.bf16.msra.mxu0 0
      %344 = vmatprep.subr.bf16.mxu0 0
      %345 = vmatpush1.bf16.msra.mxu0 0
      %346 = vmatprep.subr.bf16.mxu0 0
      %347 = vmatpush1.bf16.msra.mxu0 0
      %348 = vmatprep.subr.bf16.mxu0 0
      %349 = vmatpush1.bf16.msra.mxu0 0
      %350 = vmatprep.subr.bf16.mxu0 0
      %351 = vmatpush1.bf16.msra.mxu0 0
      %352 = vmatprep.subr.bf16.mxu0 0
      %353 = vmatpush1.bf16.msra.mxu0 0
      %354 = vmatprep.mubr.bf16.mxu0 0
      %355 = vmatmul.mubr.bf16.gmra.mrb[0].mxu0 %v266
      %v356 = vpop.f32.mrb[0].mxu0
      %v357 = vadd.f32 0.0, %v356
      %v358 = vpop.f32.mrb[0].mxu0
      %v359 = vadd.f32 0.0, %v358
      %v360 = vpop.f32.mrb[0].mxu0
      %v361 = vpop.f32.mrb[0].mxu0
      %362 = vdwg.mxu0
      %v363 = vld [vmem:[%s2] sm:$0x3f]
      %365 = vset.pattern.permute.xlu0 0
      %366 = vperm.xlu0 %365, %v363
      %v367 = vpop.permute.xlu0 %366
      %v369 = vmul.f32 %v316, %v367
      %v370 = vmul.f32 %v318, %v367
      %v371 = vmul.f32 %v357, %v367
      %v372 = vmul.f32 %v359, %v367
      %v373 = vld [vmem:[%s3] sm:$0x3f]
      %375 = vset.pattern.permute.xlu0 0
      %376 = vperm.xlu0 %375, %v373
      %v377 = vpop.permute.xlu0 %376
      %v379 = vadd.f32 %v369, %v377
      %v380 = vadd.f32 %v370, %v377
      %v381 = vadd.f32 %v371, %v377
      %v382 = vadd.f32 %v372, %v377
      %v383 = vld [vmem:[%s242] sm:$0x3f]
      %v384 = vld [vmem:[%s242 + $0x8] sm:$0x3f]
      %v385 = vld [vmem:[%s242 + $0x10] sm:$0x3f]
      %v386 = vld [vmem:[%s242 + $0x18] sm:$0x3f]
      %v387 = vadd.f32 %v379, %v383
      %v388 = vadd.f32 %v380, %v384
      %v389 = vadd.f32 %v381, %v385
      %v390 = vadd.f32 %v382, %v386
      %391 = vst [vmem:[%s248] sm:$0x3f] %v387
      %392 = vst [vmem:[%s248 + $0x8] sm:$0x3f] %v388
      %393 = vst [vmem:[%s248 + $0x10] sm:$0x3f] %v389
      %394 = vst [vmem:[%s248 + $0x18] sm:$0x3f] %v390
      %s395 = smul.u32 4, %s16
      %p396 = scmp.lt.s32.totalorder %s395, 7
      %s397 = scalar_select %p396, %s395, 7
      %s398 = smul.addr %s397, 8
      %s399 = scalar_lea.vmem %s5, %s398
      // Predicated region
      $region41: #{eeegnet_b_forward.12} parent=39 // pred_check
        %p400 = pneg %p149
      $region42: #{eeegnet_b_forward.12} parent=39 // pred_check_branch
        %402 = sbr.rel (%p400) target = $region44
      $region43: #{eeegnet_b_forward.12} parent=39 // pred_region
        %s403 = smul.u32 4, %s16
      $region44: #{eeegnet_b_forward.12} parent=39 // pred_fallthru
        _
    $region40: #{eeegnet_b_forward.12} parent=5 // pred_fallthru
      _
    %p404 = scmp.le.s32.totalorder 2, %s11
    // Predicated region
    $region45: #{eeegnet_b_forward.12} parent=5 // pred_check
      %p405 = pneg %p404
    $region46: #{eeegnet_b_forward.12} parent=5 // pred_check_branch
      %407 = sbr.rel (%p405) target = $region48
    $region47: #{eeegnet_b_forward.12} parent=5 // pred_region
      %s408 = ssub.s32 %s11, 2
      // Predicated region
      $region49: #{eeegnet_b_forward.12} parent=47 // pred_check
        %p409 = pneg %p155
      $region50: #{eeegnet_b_forward.12} parent=47 // pred_check_branch
        %411 = sbr.rel (%p409) target = $region52
      $region51: #{eeegnet_b_forward.12} parent=47 // pred_region
        %s412 = smul.u32 4, %s17
        %p413 = scmp.lt.s32.totalorder %s412, 7
        %s414 = scalar_select %p413, %s412, 7
        %s415 = smul.addr %s414, 8
        %s416 = scalar_lea.vmem %s5, %s415
      $region52: #{eeegnet_b_forward.12} parent=47 // pred_fallthru
        _
    $region48: #{eeegnet_b_forward.12} parent=5 // pred_fallthru
      _
  $region6: #{eeegnet_b_forward.12} parent=0 // loop_footer
    %s15 = sadd.s32 1, %s11
  $region7: #{eeegnet_b_forward.12} parent=0 // loop_footer_branch
    %10 = sbr.rel target = $region3
  $region8: #{eeegnet_b_forward.12} parent=0 // loop_exit
    _

// kernel: eeegnet_b_forward.13
$region0: #{eeegnet_b_forward.13}
  #allocation0 [shape = 'u32[]', space=smem, size = 0x4, offset = 0x4, fixed_abs, tag = 'smem constant byte address 0x4 - core index']
  #allocation1 [shape = 'u32[144,128]{1,0:T(1,128)}', space=vmem, size = 0x12000, scoped, tag = 'internal scratch']
  %s0 = inlined_call_operand.vmem [shape: bf16[12,6], index: 0, kind: input, shape index: {}]
  %s1 = inlined_call_operand.vmem [shape: bf16[6,1024], index: 1, kind: input, shape index: {}]
  %s2 = inlined_call_operand.vmem [shape: f32[12,1], index: 2, kind: input, shape index: {}]
  %s3 = inlined_call_operand.vmem [shape: f32[12,1], index: 3, kind: input, shape index: {}]
  %s4 = inlined_call_operand.vmem [shape: f32[12,1024], index: 4, kind: output, shape index: {}]
  %s5 = sld [smem:[#allocation0]]
  $region68: #{eeegnet_b_forward.13} parent=0
    _
  %s7 = ssub.s32 1, %s5
  %s8 = scalar_select 0, %s7, %s5
  $region1: #{eeegnet_b_forward.13} parent=0
    #allocation2 [shape = 'u8[65536]{0}', space=vmem, size = 0x10000, scoped, tag = 'output window, operand 0']
    loop: start=0, step=1, limit=4
    $region2: #{eeegnet_b_forward.13} parent=1 // loop_pre_header
      _
    $region3: #{eeegnet_b_forward.13} parent=1 // loop_header
      %s10 = sphi 0, %s14
      %p11 = scmp.ge.s32.totalorder %s10, 4
      %s18 = sphi 0, %s18
      %s20 = sphi 0, %s18
      %s21 = sphi 0, %s20
      %s35 = sphi 0, %s21
      %s41 = sphi 0, %s43
      %s44 = sphi 0, %s41
      %s45 = sphi 0, %s44
      %s61 = sphi 0, %s45
      %s65 = sphi 0, %s65
      %s67 = sphi 0, %s65
      %s68 = sphi 0, %s67
      %s82 = sphi 0, %s68
      %s86 = sphi 0, %s86
      %s88 = sphi 0, %s86
      %s89 = sphi 0, %s88
      %s103 = sphi 0, %s89
      %s109 = sphi 0, %s111
      %s112 = sphi 0, %s109
      %s113 = sphi 0, %s112
      %s129 = sphi 0, %s113
    $region4: #{eeegnet_b_forward.13} parent=1 // loop_header_branch
      %13 = sbr.rel (%p11) target = $region8
    $region5: #{eeegnet_b_forward.13} parent=1 // loop_body
      %s15 = ssub.s32 %s10, 1
      %s16 = ssub.s32 %s10, 2
      %s17 = sadd.s32 %s10, 1
      %s19 = sadd.s32 %s18, 1
      %p22 = scmp.eq.s32.totalorder %s10, 1
      %p23 = scmp.ne.s32.totalorder %s18, %s20
      %p24 = scmp.eq.s32.totalorder %s10, 0
      %p25 = por %p23, %p24
      %p26 = scmp.ne.s32.totalorder %s18, %s20
      %p27 = scmp.eq.s32.totalorder %s15, 1
      %p28 = por %p26, %p27
      %p29 = scmp.ne.s32.totalorder %s20, %s21
      %p30 = scmp.eq.s32.totalorder %s15, 0
      %p31 = por %p29, %p30
      %p32 = scmp.ne.s32.totalorder %s20, %s21
      %p33 = scmp.eq.s32.totalorder %s16, 1
      %p34 = por %p32, %p33
      %p36 = scmp.ne.s32.totalorder %s21, %s35
      %p37 = scmp.eq.s32.totalorder %s16, 0
      %p38 = por %p36, %p37
      %s39 = ssub.s32 %s10, %s17
      %p40 = scmp.eq.s32.totalorder %s39, 0
      %s42 = sadd.s32 %s41, 1
      %s43 = scalar_select %p40, %s41, %s42
      %p46 = pneg %p40
      %p47 = scmp.eq.s32.totalorder %s10, 1
      %p48 = por %p46, %p47
      %p49 = scmp.ne.s32.totalorder %s41, %s44
      %p50 = scmp.eq.s32.totalorder %s10, 0
      %p51 = por %p49, %p50
      %p52 = scmp.ne.s32.totalorder %s41, %s44
      %p53 = scmp.eq.s32.totalorder %s15, 1
      %p54 = por %p52, %p53
      %p55 = scmp.ne.s32.totalorder %s44, %s45
      %p56 = scmp.eq.s32.totalorder %s15, 0
      %p57 = por %p55, %p56
      %p58 = scmp.ne.s32.totalorder %s44, %s45
      %p59 = scmp.eq.s32.totalorder %s16, 1
      %p60 = por %p58, %p59
      %p62 = scmp.ne.s32.totalorder %s45, %s61
      %p63 = scmp.eq.s32.totalorder %s16, 0
      %p64 = por %p62, %p63
      %s66 = sadd.s32 %s65, 1
      %p69 = scmp.eq.s32.totalorder %s10, 1
      %p70 = scmp.ne.s32.totalorder %s65, %s67
      %p71 = scmp.eq.s32.totalorder %s10, 0
      %p72 = por %p70, %p71
      %p73 = scmp.ne.s32.totalorder %s65, %s67
      %p74 = scmp.eq.s32.totalorder %s15, 1
      %p75 = por %p73, %p74
      %p76 = scmp.ne.s32.totalorder %s67, %s68
      %p77 = scmp.eq.s32.totalorder %s15, 0
      %p78 = por %p76, %p77
      %p79 = scmp.ne.s32.totalorder %s67, %s68
      %p80 = scmp.eq.s32.totalorder %s16, 1
      %p81 = por %p79, %p80
      %p83 = scmp.ne.s32.totalorder %s68, %s82
      %p84 = scmp.eq.s32.totalorder %s16, 0
      %p85 = por %p83, %p84
      %s87 = sadd.s32 %s86, 1
      %p90 = scmp.eq.s32.totalorder %s10, 1
      %p91 = scmp.ne.s32.totalorder %s86, %s88
      %p92 = scmp.eq.s32.totalorder %s10, 0
      %p93 = por %p91, %p92
      %p94 = scmp.ne.s32.totalorder %s86, %s88
      %p95 = scmp.eq.s32.totalorder %s15, 1
      %p96 = por %p94, %p95
      %p97 = scmp.ne.s32.totalorder %s88, %s89
      %p98 = scmp.eq.s32.totalorder %s15, 0
      %p99 = por %p97, %p98
      %p100 = scmp.ne.s32.totalorder %s88, %s89
      %p101 = scmp.eq.s32.totalorder %s16, 1
      %p102 = por %p100, %p101
      %p104 = scmp.ne.s32.totalorder %s89, %s103
      %p105 = scmp.eq.s32.totalorder %s16, 0
      %p106 = por %p104, %p105
      %s107 = ssub.s32 %s10, %s17
      %p108 = scmp.eq.s32.totalorder %s107, 0
      %s110 = sadd.s32 %s109, 1
      %s111 = scalar_select %p108, %s109, %s110
      %p114 = pneg %p108
      %p115 = scmp.eq.s32.totalorder %s10, 1
      %p116 = por %p114, %p115
      %p117 = scmp.ne.s32.totalorder %s109, %s112
      %p118 = scmp.eq.s32.totalorder %s10, 0
      %p119 = por %p117, %p118
      %p120 = scmp.ne.s32.totalorder %s109, %s112
      %p121 = scmp.eq.s32.totalorder %s15, 1
      %p122 = por %p120, %p121
      %p123 = scmp.ne.s32.totalorder %s112, %s113
      %p124 = scmp.eq.s32.totalorder %s15, 0
      %p125 = por %p123, %p124
      %p126 = scmp.ne.s32.totalorder %s112, %s113
      %p127 = scmp.eq.s32.totalorder %s16, 1
      %p128 = por %p126, %p127
      %p130 = scmp.ne.s32.totalorder %s113, %s129
      %p131 = scmp.eq.s32.totalorder %s16, 0
      %p132 = por %p130, %p131
      %p133 = scmp.le.s32.totalorder 1, %s10
      %p134 = scmp.lt.s32.totalorder %s10, 3
      %p135 = pnand %p133, %p134
      %p136 = pneg %p135
      // Predicated region
      $region9: #{eeegnet_b_forward.13} parent=5 // pred_check
        _
      $region10: #{eeegnet_b_forward.13} parent=5 // pred_check_branch
        %138 = sbr.rel (%p135) target = $region12
      $region11: #{eeegnet_b_forward.13} parent=5 // pred_region
        %s139 = ssub.s32 %s10, 1
        // Predicated region
        $region13: #{eeegnet_b_forward.13} parent=11 // pred_check
          %p140 = pneg %p31
        $region14: #{eeegnet_b_forward.13} parent=11 // pred_check_branch
          %142 = sbr.rel (%p140) target = $region16
        $region15: #{eeegnet_b_forward.13} parent=11 // pred_region
          _
        $region16: #{eeegnet_b_forward.13} parent=11 // pred_fallthru
          _
        // Predicated region
        $region17: #{eeegnet_b_forward.13} parent=11 // pred_check
          %p143 = pneg %p78
        $region18: #{eeegnet_b_forward.13} parent=11 // pred_check_branch
          %145 = sbr.rel (%p143) target = $region20
        $region19: #{eeegnet_b_forward.13} parent=11 // pred_region
          _
        $region20: #{eeegnet_b_forward.13} parent=11 // pred_fallthru
          _
        // Predicated region
        $region21: #{eeegnet_b_forward.13} parent=11 // pred_check
          %p146 = pneg %p99
        $region22: #{eeegnet_b_forward.13} parent=11 // pred_check_branch
          %148 = sbr.rel (%p146) target = $region24
        $region23: #{eeegnet_b_forward.13} parent=11 // pred_region
          _
        $region24: #{eeegnet_b_forward.13} parent=11 // pred_fallthru
          _
      $region12: #{eeegnet_b_forward.13} parent=5 // pred_fallthru
        _
      %p149 = scmp.lt.s32.totalorder %s10, 2
      // Predicated region
      $region25: #{eeegnet_b_forward.13} parent=5 // pred_check
        %p150 = pneg %p149
      $region26: #{eeegnet_b_forward.13} parent=5 // pred_check_branch
        %152 = sbr.rel (%p150) target = $region28
      $region27: #{eeegnet_b_forward.13} parent=5 // pred_region
        // Predicated region
        $region29: #{eeegnet_b_forward.13} parent=27 // pred_check
          %p153 = pneg %p51
        $region30: #{eeegnet_b_forward.13} parent=27 // pred_check_branch
          %155 = sbr.rel (%p153) target = $region32
        $region31: #{eeegnet_b_forward.13} parent=27 // pred_region
          %s156 = smul.u32 4, %s10
          %p157 = scmp.lt.s32.totalorder %s156, 7
          %s158 = scalar_select %p157, %s156, 7
          %s159 = smul.addr %s158, 4
          %s160 = scalar_lea.vmem %s1, %s159
          %s161 = smul.u32 4, %s10
        $region32: #{eeegnet_b_forward.13} parent=27 // pred_fallthru
          _
      $region28: #{eeegnet_b_forward.13} parent=5 // pred_fallthru
        _
      %p162 = scmp.le.s32.totalorder 1, %s10
      %p163 = scmp.lt.s32.totalorder %s10, 3
      %p164 = pnand %p162, %p163
      %p165 = pneg %p164
      // Predicated region
      $region33: #{eeegnet_b_forward.13} parent=5 // pred_check
        _
      $region34: #{eeegnet_b_forward.13} parent=5 // pred_check_branch
        %167 = sbr.rel (%p164) target = $region36
      $region35: #{eeegnet_b_forward.13} parent=5 // pred_region
        %s168 = ssub.s32 %s10, 1
        %p169 = pneg %p31
        %p170 = pneg %p28
        %s171 = smul.u32 4, %s15
        %p172 = scmp.lt.s32.totalorder %s171, 7
        %s173 = scalar_select %p172, %s171, 7
        %s174 = smul.addr %s173, 4
        %s175 = scalar_lea.vmem %s1, %s174
        %p176 = pneg %p57
        %p177 = pneg %p54
        %p178 = pneg %p78
        %p179 = pneg %p75
        %p180 = pneg %p99
        %p181 = pneg %p96
        %p182 = pneg %p125
        %p183 = pneg %p122
        %s184 = sand.u32 %s112, 1
        %s185 = sand.u32 %s112, 1
        %s186 = smul.addr %s185, 64
        %s187 = scalar_lea.vmem [#allocation2], %s186
        %s188 = smul.u32 4, %s15
        %p189 = scmp.lt.s32.totalorder %s188, 7
        %s190 = scalar_select %p189, %s188, 7
        %s191 = smul.addr %s190, 4
        %s192 = scalar_lea.vmem %s1, %s191
        %s193 = smul.u32 4, %s15
        %s194 = smul.u32 4, %s15
        %v196 = vld [vmem:[%s0] sm:$0xf]
        %v197 = vld [vmem:[%s0 + $0x4] sm:$0x3]
        %v198 = vld [vmem:[%s192] sm:$0x77]
        %v199 = vld [vmem:[%s192 + $0x8] sm:$0x77]
        %v202 = vunpack.c.l.b16 %v196
        %v203 = vunpack.c.l.b16 %v197
        %v204 = vpack.c.b16 %v203, %v202
        %v207 = vunpack.c.l.b16 %v198
        %v208 = vunpack.c.h.b16 %v198
        %v209 = vunpack.c.l.b16 %v199
        %v210 = vunpack.c.h.b16 %v199
        %v211 = vpack.c.b16 %v207, %v207
        %v212 = vpack.c.b16 %v208, %v208
        %v213 = vpack.c.b16 %v209, %v209
        %v214 = vpack.c.b16 %v210, %v210
        %vm215 = vcmask 48128
        %v217 = vsel %vm215, %v204, 0
        %vm219 = vcmask 1042432
        %v221 = vsel %vm219, %v211, 0
        %v224 = vsel %vm219, %v212, 0
        %v227 = vsel %vm219, %v213, 0
        %v230 = vsel %vm219, %v214, 0
        %232 = vmatprep.subr.bf16.mxu0 %v224
        %233 = vmatpush1.bf16.msra.mxu0 %v221
        %234 = vmatprep.subr.bf16.mxu0 0
        %235 = vmatpush1.bf16.msra.mxu0 0
        %236 = vmatprep.subr.bf16.mxu0 0
        %237 = vmatpush1.bf16.msra.mxu0 0
        %238 = vmatprep.subr.bf16.mxu0 0
        %239 = vmatpush1.bf16.msra.mxu0 0
        %240 = vmatprep.subr.bf16.mxu0 0
        %241 = vmatpush1.bf16.msra.mxu0 0
        %242 = vmatprep.subr.bf16.mxu0 0
        %243 = vmatpush1.bf16.msra.mxu0 0
        %244 = vmatprep.subr.bf16.mxu0 0
        %245 = vmatpush1.bf16.msra.mxu0 0
        %246 = vmatprep.subr.bf16.mxu0 0
        %247 = vmatpush1.bf16.msra.mxu0 0
        %248 = vmatprep.subr.bf16.mxu0 0
        %249 = vmatpush1.bf16.msra.mxu0 0
        %250 = vmatprep.subr.bf16.mxu0 0
        %251 = vmatpush1.bf16.msra.mxu0 0
        %252 = vmatprep.subr.bf16.mxu0 0
        %253 = vmatpush1.bf16.msra.mxu0 0
        %254 = vmatprep.subr.bf16.mxu0 0
        %255 = vmatpush1.bf16.msra.mxu0 0
        %256 = vmatprep.subr.bf16.mxu0 0
        %257 = vmatpush1.bf16.msra.mxu0 0
        %258 = vmatprep.subr.bf16.mxu0 0
        %259 = vmatpush1.bf16.msra.mxu0 0
        %260 = vmatprep.subr.bf16.mxu0 0
        %261 = vmatpush1.bf16.msra.mxu0 0
        %262 = vmatprep.subr.bf16.mxu0 0
        %263 = vmatpush1.bf16.msra.mxu0 0
        %264 = vmatprep.mubr.bf16.mxu0 0
        %265 = vmatmul.mubr.bf16.gmra.mrb[0].mxu0 %v217
        %v266 = vpop.f32.mrb[0].mxu0
        %v267 = vadd.f32 0.0, %v266
        %v268 = vpop.f32.mrb[0].mxu0
        %v269 = vadd.f32 0.0, %v268
        %v270 = vpop.f32.mrb[0].mxu0
        %v271 = vadd.f32 0.0, %v270
        %v272 = vpop.f32.mrb[0].mxu0
        %v273 = vadd.f32 0.0, %v272
        %274 = vdwg.mxu0
        %275 = vmatprep.subr.bf16.mxu0 %v230
        %276 = vmatpush1.bf16.msra.mxu0 %v227
        %277 = vmatprep.subr.bf16.mxu0 0
        %278 = vmatpush1.bf16.msra.mxu0 0
        %279 = vmatprep.subr.bf16.mxu0 0
        %280 = vmatpush1.bf16.msra.mxu0 0
        %281 = vmatprep.subr.bf16.mxu0 0
        %282 = vmatpush1.bf16.msra.mxu0 0
        %283 = vmatprep.subr.bf16.mxu0 0
        %284 = vmatpush1.bf16.msra.mxu0 0
        %285 = vmatprep.subr.bf16.mxu0 0
        %286 = vmatpush1.bf16.msra.mxu0 0
        %287 = vmatprep.subr.bf16.mxu0 0
        %288 = vmatpush1.bf16.msra.mxu0 0
        %289 = vmatprep.subr.bf16.mxu0 0
        %290 = vmatpush1.bf16.msra.mxu0 0
        %291 = vmatprep.subr.bf16.mxu0 0
        %292 = vmatpush1.bf16.msra.mxu0 0
        %293 = vmatprep.subr.bf16.mxu0 0
        %294 = vmatpush1.bf16.msra.mxu0 0
        %295 = vmatprep.subr.bf16.mxu0 0
        %296 = vmatpush1.bf16.msra.mxu0 0
        %297 = vmatprep.subr.bf16.mxu0 0
        %298 = vmatpush1.bf16.msra.mxu0 0
        %299 = vmatprep.subr.bf16.mxu0 0
        %300 = vmatpush1.bf16.msra.mxu0 0
        %301 = vmatprep.subr.bf16.mxu0 0
        %302 = vmatpush1.bf16.msra.mxu0 0
        %303 = vmatprep.subr.bf16.mxu0 0
        %304 = vmatpush1.bf16.msra.mxu0 0
        %305 = vmatprep.subr.bf16.mxu0 0
        %306 = vmatpush1.bf16.msra.mxu0 0
        %307 = vmatprep.mubr.bf16.mxu0 0
        %308 = vmatmul.mubr.bf16.gmra.mrb[0].mxu0 %v217
        %v309 = vpop.f32.mrb[0].mxu0
        %v310 = vadd.f32 0.0, %v309
        %v311 = vpop.f32.mrb[0].mxu0
        %v312 = vadd.f32 0.0, %v311
        %v313 = vpop.f32.mrb[0].mxu0
        %v314 = vadd.f32 0.0, %v313
        %v315 = vpop.f32.mrb[0].mxu0
        %v316 = vadd.f32 0.0, %v315
        %317 = vdwg.mxu0
        %v318 = vld [vmem:[%s2] sm:$0xff]
        %v319 = vld [vmem:[%s2 + $0x8] sm:$0xf]
        %321 = vset.pattern.permute.xlu0 0
        %322 = vperm.xlu0 %321, %v318
        %v323 = vpop.permute.xlu0 %322
        %326 = vset.pattern.permute.xlu0 0
        %327 = vperm.xlu0 %326, %v319
        %v328 = vpop.permute.xlu0 %327
        %v330 = vmul.f32 %v267, %v323
        %v331 = vmul.f32 %v269, %v323
        %v332 = vmul.f32 %v310, %v323
        %v333 = vmul.f32 %v312, %v323
        %v334 = vmul.f32 %v271, %v328
        %v335 = vmul.f32 %v273, %v328
        %v336 = vmul.f32 %v314, %v328
        %v337 = vmul.f32 %v316, %v328
        %v338 = vld [vmem:[%s3] sm:$0xff]
        %v339 = vld [vmem:[%s3 + $0x8] sm:$0xf]
        %341 = vset.pattern.permute.xlu0 0
        %342 = vperm.xlu0 %341, %v338
        %v343 = vpop.permute.xlu0 %342
        %346 = vset.pattern.permute.xlu0 0
        %347 = vperm.xlu0 %346, %v339
        %v348 = vpop.permute.xlu0 %347
        %v350 = vadd.f32 %v330, %v343
        %v351 = vadd.f32 %v331, %v343
        %v352 = vadd.f32 %v332, %v343
        %v353 = vadd.f32 %v333, %v343
        %v354 = vadd.f32 %v334, %v348
        %v355 = vadd.f32 %v335, %v348
        %v356 = vadd.f32 %v336, %v348
        %v357 = vadd.f32 %v337, %v348
        %358 = vst [vmem:[%s187] sm:$0xff] %v350
        %359 = vst [vmem:[%s187 + $0x8] sm:$0xff] %v351
        %360 = vst [vmem:[%s187 + $0x10] sm:$0xff] %v352
        %361 = vst [vmem:[%s187 + $0x18] sm:$0xff] %v353
        %362 = vst [vmem:[%s187 + $0x20] sm:$0xf] %v354
        %363 = vst [vmem:[%s187 + $0x28] sm:$0xf] %v355
        %364 = vst [vmem:[%s187 + $0x30] sm:$0xf] %v356
        %365 = vst [vmem:[%s187 + $0x38] sm:$0xf] %v357
        %s366 = sand.u32 %s112, 1
        %s367 = sand.u32 %s112, 1
        %s368 = smul.addr %s367, 64
        %s369 = scalar_lea.vmem [#allocation2], %s368
        // Predicated region
        $region37: #{eeegnet_b_forward.13} parent=35 // pred_check
          %p370 = pneg %p122
        $region38: #{eeegnet_b_forward.13} parent=35 // pred_check_branch
          %372 = sbr.rel (%p370) target = $region40
        $region39: #{eeegnet_b_forward.13} parent=35 // pred_region
          %s373 = smul.u32 4, %s15
          %s374 = smul.addr %s373, 8
          %s375 = scalar_lea.vmem %s4, %s374
          // Predicated region
          $region41: #{eeegnet_b_forward.13} parent=39 // pred_check
            _
          $region42: #{eeegnet_b_forward.13} parent=39 // pred_check_branch
            %377 = sbr.rel (0) target = $region44
          $region43: #{eeegnet_b_forward.13} parent=39 // pred_region
            // Predicated region
            $region45: #{eeegnet_b_forward.13} parent=43 // pred_check
              _
            $region46: #{eeegnet_b_forward.13} parent=43 // pred_check_branch
              %379 = sbr.rel (0) target = $region48
            $region47: #{eeegnet_b_forward.13} parent=43 // pred_region
              loop: start=0, step=1, limit=1
              $region49: #{eeegnet_b_forward.13} parent=47 // loop_pre_header
                _
              $region50: #{eeegnet_b_forward.13} parent=47 // loop_header
                %s381 = sphi 0, %s385
                %p382 = scmp.ge.s32.totalorder %s381, 1
                %s386 = sphi %s369, %s369
                %s387 = sphi %s375, %s375
              $region51: #{eeegnet_b_forward.13} parent=47 // loop_header_branch
                %384 = sbr.rel (%p382) target = $region55
              $region52: #{eeegnet_b_forward.13} parent=47 // loop_body
                %v388 = vld [vmem:[%s386] sm:$0xff]
                %389 = vst [vmem:[%s387] sm:$0xff] %v388
                %v390 = vld [vmem:[%s386 + $0x8] sm:$0xff]
                %391 = vst [vmem:[%s387 + $0x8] sm:$0xff] %v390
                %v392 = vld [vmem:[%s386 + $0x10] sm:$0xff]
                %393 = vst [vmem:[%s387 + $0x10] sm:$0xff] %v392
                %v394 = vld [vmem:[%s386 + $0x18] sm:$0xff]
                %395 = vst [vmem:[%s387 + $0x18] sm:$0xff] %v394
                %v396 = vld [vmem:[%s386 + $0x20] sm:$0xff]
                %397 = vst [vmem:[%s387 + $0x40] sm:$0xff] %v396
                %v398 = vld [vmem:[%s386 + $0x28] sm:$0xff]
                %399 = vst [vmem:[%s387 + $0x48] sm:$0xff] %v398
                %v400 = vld [vmem:[%s386 + $0x30] sm:$0xff]
                %401 = vst [vmem:[%s387 + $0x50] sm:$0xff] %v400
                %v402 = vld [vmem:[%s386 + $0x38] sm:$0xff]
                %403 = vst [vmem:[%s387 + $0x58] sm:$0xff] %v402
              $region53: #{eeegnet_b_forward.13} parent=47 // loop_footer
                %s385 = sadd.s32 1, %s381
              $region54: #{eeegnet_b_forward.13} parent=47 // loop_footer_branch
                %380 = sbr.rel target = $region50
              $region55: #{eeegnet_b_forward.13} parent=47 // loop_exit
                _
            $region48: #{eeegnet_b_forward.13} parent=43 // pred_fallthru
              _
            // Predicated region
            $region56: #{eeegnet_b_forward.13} parent=43 // pred_check
              _
            $region57: #{eeegnet_b_forward.13} parent=43 // pred_check_branch
              %405 = sbr.rel target = $region59
            $region58: #{eeegnet_b_forward.13} parent=43 // pred_region
              _
            $region59: #{eeegnet_b_forward.13} parent=43 // pred_fallthru
              _
          $region44: #{eeegnet_b_forward.13} parent=39 // pred_fallthru
            _
          %406 = vnop
        $region40: #{eeegnet_b_forward.13} parent=35 // pred_fallthru
          _
      $region36: #{eeegnet_b_forward.13} parent=5 // pred_fallthru
        _
      %p407 = scmp.le.s32.totalorder 2, %s10
      // Predicated region
      $region60: #{eeegnet_b_forward.13} parent=5 // pred_check
        %p408 = pneg %p407
      $region61: #{eeegnet_b_forward.13} parent=5 // pred_check_branch
        %410 = sbr.rel (%p408) target = $region63
      $region62: #{eeegnet_b_forward.13} parent=5 // pred_region
        %s411 = ssub.s32 %s10, 2
        // Predicated region
        $region64: #{eeegnet_b_forward.13} parent=62 // pred_check
          %p412 = pneg %p128
        $region65: #{eeegnet_b_forward.13} parent=62 // pred_check_branch
          %414 = sbr.rel (%p412) target = $region67
        $region66: #{eeegnet_b_forward.13} parent=62 // pred_region
          %s415 = sand.u32 %s113, 1
          %s416 = sand.u32 %s113, 1
          %s417 = smul.addr %s416, 64
          %s418 = scalar_lea.vmem [#allocation2], %s417
        $region67: #{eeegnet_b_forward.13} parent=62 // pred_fallthru
          _
      $region63: #{eeegnet_b_forward.13} parent=5 // pred_fallthru
        _
    $region6: #{eeegnet_b_forward.13} parent=1 // loop_footer
      %s14 = sadd.s32 1, %s10
    $region7: #{eeegnet_b_forward.13} parent=1 // loop_footer_branch
      %9 = sbr.rel target = $region3
    $region8: #{eeegnet_b_forward.13} parent=1 // loop_exit
      _

// kernel: eeegnet_b_forward.14
$region0: #{eeegnet_b_forward.14}
  #allocation0 [shape = 'u32[]', space=smem, size = 0x4, offset = 0x4, fixed_abs, tag = 'smem constant byte address 0x4 - core index']
  #allocation1 [shape = 'u32[144,128]{1,0:T(1,128)}', space=vmem, size = 0x12000, scoped, tag = 'internal scratch']
  %s0 = inlined_call_operand.vmem [shape: bf16[12,324], index: 0, kind: input, shape index: {}]
  %s1 = inlined_call_operand.vmem [shape: bf16[324,128], index: 1, kind: input, shape index: {}]
  %s2 = inlined_call_operand.vmem [shape: f32[12,1], index: 2, kind: input, shape index: {}]
  %s3 = inlined_call_operand.vmem [shape: f32[12,1], index: 3, kind: input, shape index: {}]
  %s4 = inlined_call_operand.vmem [shape: f32[12,128], index: 4, kind: output, shape index: {}]
  %s5 = sld [smem:[#allocation0]]
  $region26: #{eeegnet_b_forward.14} parent=0
    _
  %s7 = ssub.s32 1, %s5
  %s8 = scalar_select 0, %s7, %s5
  // Predicated region
  $region2: #{eeegnet_b_forward.14} parent=0 // pred_check
    _
  $region3: #{eeegnet_b_forward.14} parent=0 // pred_check_branch
    %10 = sbr.rel (0) target = $region5
  $region4: #{eeegnet_b_forward.14} parent=0 // pred_region
    _
  $region5: #{eeegnet_b_forward.14} parent=0 // pred_fallthru
    _
  // Predicated region
  $region6: #{eeegnet_b_forward.14} parent=0 // pred_check
    _
  $region7: #{eeegnet_b_forward.14} parent=0 // pred_check_branch
    %12 = sbr.rel (0) target = $region9
  $region8: #{eeegnet_b_forward.14} parent=0 // pred_region
    _
  $region9: #{eeegnet_b_forward.14} parent=0 // pred_fallthru
    _
  // Predicated region
  $region10: #{eeegnet_b_forward.14} parent=0 // pred_check
    _
  $region11: #{eeegnet_b_forward.14} parent=0 // pred_check_branch
    %14 = sbr.rel (0) target = $region13
  $region12: #{eeegnet_b_forward.14} parent=0 // pred_region
    _
  $region13: #{eeegnet_b_forward.14} parent=0 // pred_fallthru
    _
  // Predicated region
  $region14: #{eeegnet_b_forward.14} parent=0 // pred_check
    _
  $region15: #{eeegnet_b_forward.14} parent=0 // pred_check_branch
    %16 = sbr.rel (0) target = $region17
  $region16: #{eeegnet_b_forward.14} parent=0 // pred_region
    _
  $region17: #{eeegnet_b_forward.14} parent=0 // pred_fallthru
    _
  %v18 = vld [vmem:[%s0] sm:$0xff]
  %v19 = vld [vmem:[%s0 + $0x8] sm:$0xf]
  %v20 = vld [vmem:[%s0 + $0xc] sm:$0x33]
  %v21 = vld [vmem:[%s0 + $0x14] sm:$0x3]
  %v22 = vld [vmem:[%s1] sm:$0xf]
  %v23 = vld [vmem:[%s1 + $0x4] sm:$0xf]
  %v24 = vld [vmem:[%s1 + $0x8] sm:$0xf]
  %v25 = vld [vmem:[%s1 + $0xc] sm:$0xf]
  %v26 = vld [vmem:[%s1 + $0x10] sm:$0xf]
  %v27 = vld [vmem:[%s1 + $0x14] sm:$0xf]
  %v28 = vld [vmem:[%s1 + $0x18] sm:$0xf]
  %v29 = vld [vmem:[%s1 + $0x1c] sm:$0xf]
  %v30 = vld [vmem:[%s1 + $0x20] sm:$0xf]
  %v31 = vld [vmem:[%s1 + $0x24] sm:$0xf]
  %v32 = vld [vmem:[%s1 + $0x28] sm:$0xf]
  %v33 = vld [vmem:[%s1 + $0x2c] sm:$0xf]
  %v34 = vld [vmem:[%s1 + $0x30] sm:$0xf]
  %v35 = vld [vmem:[%s1 + $0x34] sm:$0xf]
  %v36 = vld [vmem:[%s1 + $0x38] sm:$0xf]
  %v37 = vld [vmem:[%s1 + $0x3c] sm:$0xf]
  %v38 = vld [vmem:[%s1 + $0x40] sm:$0xf]
  %v39 = vld [vmem:[%s1 + $0x44] sm:$0xf]
  %v40 = vld [vmem:[%s1 + $0x48] sm:$0xf]
  %v41 = vld [vmem:[%s1 + $0x4c] sm:$0xf]
  %v42 = vld [vmem:[%s1 + $0x50] sm:$0xf]
  %v43 = vld [vmem:[%s1 + $0x54] sm:$0xf]
  %v44 = vld [vmem:[%s1 + $0x58] sm:$0xf]
  %v45 = vld [vmem:[%s1 + $0x5c] sm:$0xf]
  %v46 = vld [vmem:[%s1 + $0x60] sm:$0xf]
  %v47 = vld [vmem:[%s1 + $0x64] sm:$0xf]
  %v48 = vld [vmem:[%s1 + $0x68] sm:$0xf]
  %v49 = vld [vmem:[%s1 + $0x6c] sm:$0xf]
  %v50 = vld [vmem:[%s1 + $0x70] sm:$0xf]
  %v51 = vld [vmem:[%s1 + $0x74] sm:$0xf]
  %v52 = vld [vmem:[%s1 + $0x78] sm:$0xf]
  %v53 = vld [vmem:[%s1 + $0x7c] sm:$0xf]
  %v54 = vld [vmem:[%s1 + $0x80] sm:$0xf]
  %v55 = vld [vmem:[%s1 + $0x84] sm:$0xf]
  %v56 = vld [vmem:[%s1 + $0x88] sm:$0xf]
  %v57 = vld [vmem:[%s1 + $0x8c] sm:$0xf]
  %v58 = vld [vmem:[%s1 + $0x90] sm:$0xf]
  %v59 = vld [vmem:[%s1 + $0x94] sm:$0xf]
  %v60 = vld [vmem:[%s1 + $0x98] sm:$0xf]
  %v61 = vld [vmem:[%s1 + $0x9c] sm:$0xf]
  %v62 = vld [vmem:[%s1 + $0xa0] sm:$0x3]
  %v67 = vunpack.c.l.b16 %v18
  %v68 = vunpack.c.h.b16 %v18
  %v69 = vunpack.c.l.b16 %v19
  %v70 = vunpack.c.l.b16 %v20
  %v71 = vunpack.c.h.b16 %v20
  %v72 = vunpack.c.l.b16 %v21
  %v73 = vpack.c.b16 %v70, %v67
  %v74 = vpack.c.b16 %v71, %v68
  %v75 = vpack.c.b16 %v72, %v69
  %v119 = vunpack.c.l.b16 %v22
  %v120 = vunpack.c.l.b16 %v23
  %v121 = vunpack.c.l.b16 %v24
  %v122 = vunpack.c.l.b16 %v25
  %v123 = vunpack.c.l.b16 %v26
  %v124 = vunpack.c.l.b16 %v27
  %v125 = vunpack.c.l.b16 %v28
  %v126 = vunpack.c.l.b16 %v29
  %v127 = vunpack.c.l.b16 %v30
  %v128 = vunpack.c.l.b16 %v31
  %v129 = vunpack.c.l.b16 %v32
  %v130 = vunpack.c.l.b16 %v33
  %v131 = vunpack.c.l.b16 %v34
  %v132 = vunpack.c.l.b16 %v35
  %v133 = vunpack.c.l.b16 %v36
  %v134 = vunpack.c.l.b16 %v37
  %v135 = vunpack.c.l.b16 %v38
  %v136 = vunpack.c.l.b16 %v39
  %v137 = vunpack.c.l.b16 %v40
  %v138 = vunpack.c.l.b16 %v41
  %v139 = vunpack.c.l.b16 %v42
  %v140 = vunpack.c.l.b16 %v43
  %v141 = vunpack.c.l.b16 %v44
  %v142 = vunpack.c.l.b16 %v45
  %v143 = vunpack.c.l.b16 %v46
  %v144 = vunpack.c.l.b16 %v47
  %v145 = vunpack.c.l.b16 %v48
  %v146 = vunpack.c.l.b16 %v49
  %v147 = vunpack.c.l.b16 %v50
  %v148 = vunpack.c.l.b16 %v51
  %v149 = vunpack.c.l.b16 %v52
  %v150 = vunpack.c.l.b16 %v53
  %v151 = vunpack.c.l.b16 %v54
  %v152 = vunpack.c.l.b16 %v55
  %v153 = vunpack.c.l.b16 %v56
  %v154 = vunpack.c.l.b16 %v57
  %v155 = vunpack.c.l.b16 %v58
  %v156 = vunpack.c.l.b16 %v59
  %v157 = vunpack.c.l.b16 %v60
  %v158 = vunpack.c.l.b16 %v61
  %v159 = vunpack.c.l.b16 %v62
  %v160 = vpack.c.b16 %v120, %v119
  %v161 = vpack.c.b16 %v122, %v121
  %v162 = vpack.c.b16 %v124, %v123
  %v163 = vpack.c.b16 %v126, %v125
  %v164 = vpack.c.b16 %v128, %v127
  %v165 = vpack.c.b16 %v130, %v129
  %v166 = vpack.c.b16 %v132, %v131
  %v167 = vpack.c.b16 %v134, %v133
  %v168 = vpack.c.b16 %v136, %v135
  %v169 = vpack.c.b16 %v138, %v137
  %v170 = vpack.c.b16 %v140, %v139
  %v171 = vpack.c.b16 %v142, %v141
  %v172 = vpack.c.b16 %v144, %v143
  %v173 = vpack.c.b16 %v146, %v145
  %v174 = vpack.c.b16 %v148, %v147
  %v175 = vpack.c.b16 %v150, %v149
  %v176 = vpack.c.b16 %v152, %v151
  %v177 = vpack.c.b16 %v154, %v153
  %v178 = vpack.c.b16 %v156, %v155
  %v179 = vpack.c.b16 %v158, %v157
  %v180 = vpack.c.b16 %v159, %v159
  %vm201 = vcmask 556032
  %v203 = vsel %vm201, %v75, 0
  %vm205 = vcmask 1041408
  %v207 = vsel %vm205, %v180, 0
  %209 = vmatprep.subr.bf16.mxu0 0
  %210 = vmatpush1.bf16.msra.mxu0 %v160
  %211 = vmatprep.subr.bf16.mxu0 0
  %212 = vmatpush1.bf16.msra.mxu0 %v161
  %213 = vmatprep.subr.bf16.mxu0 0
  %214 = vmatpush1.bf16.msra.mxu0 %v162
  %215 = vmatprep.subr.bf16.mxu0 0
  %216 = vmatpush1.bf16.msra.mxu0 %v163
  %217 = vmatprep.subr.bf16.mxu0 0
  %218 = vmatpush1.bf16.msra.mxu0 %v164
  %219 = vmatprep.subr.bf16.mxu0 0
  %220 = vmatpush1.bf16.msra.mxu0 %v165
  %221 = vmatprep.subr.bf16.mxu0 0
  %222 = vmatpush1.bf16.msra.mxu0 %v166
  %223 = vmatprep.subr.bf16.mxu0 0
  %224 = vmatpush1.bf16.msra.mxu0 %v167
  %225 = vmatprep.subr.bf16.mxu0 0
  %226 = vmatpush1.bf16.msra.mxu0 %v168
  %227 = vmatprep.subr.bf16.mxu0 0
  %228 = vmatpush1.bf16.msra.mxu0 %v169
  %229 = vmatprep.subr.bf16.mxu0 0
  %230 = vmatpush1.bf16.msra.mxu0 %v170
  %231 = vmatprep.subr.bf16.mxu0 0
  %232 = vmatpush1.bf16.msra.mxu0 %v171
  %233 = vmatprep.subr.bf16.mxu0 0
  %234 = vmatpush1.bf16.msra.mxu0 %v172
  %235 = vmatprep.subr.bf16.mxu0 0
  %236 = vmatpush1.bf16.msra.mxu0 %v173
  %237 = vmatprep.subr.bf16.mxu0 0
  %238 = vmatpush1.bf16.msra.mxu0 %v174
  %239 = vmatprep.subr.bf16.mxu0 0
  %240 = vmatpush1.bf16.msra.mxu0 %v175
  %241 = vmatprep.mubr.bf16.mxu0 %v74
  %242 = vmatmul.mubr.bf16.gmra.mrb[0].mxu0 %v73
  %v243 = vpop.f32.mrb[0].mxu0
  %v244 = vadd.f32 0.0, %v243
  %v245 = vpop.f32.mrb[0].mxu0
  %v246 = vpop.f32.mrb[0].mxu0
  %v247 = vadd.f32 0.0, %v246
  %v248 = vpop.f32.mrb[0].mxu0
  %249 = vdwg.mxu0
  %250 = vmatprep.subr.bf16.mxu0 0
  %251 = vmatpush1.bf16.msra.mxu0 %v176
  %252 = vmatprep.subr.bf16.mxu0 0
  %253 = vmatpush1.bf16.msra.mxu0 %v177
  %254 = vmatprep.subr.bf16.mxu0 0
  %255 = vmatpush1.bf16.msra.mxu0 %v178
  %256 = vmatprep.subr.bf16.mxu0 0
  %257 = vmatpush1.bf16.msra.mxu0 %v179
  %258 = vmatprep.subr.bf16.mxu0 0
  %259 = vmatpush1.bf16.msra.mxu0 %v207
  %260 = vmatprep.subr.bf16.mxu0 0
  %261 = vmatpush1.bf16.msra.mxu0 0
  %262 = vmatprep.subr.bf16.mxu0 0
  %263 = vmatpush1.bf16.msra.mxu0 0
  %264 = vmatprep.subr.bf16.mxu0 0
  %265 = vmatpush1.bf16.msra.mxu0 0
  %266 = vmatprep.subr.bf16.mxu0 0
  %267 = vmatpush1.bf16.msra.mxu0 0
  %268 = vmatprep.subr.bf16.mxu0 0
  %269 = vmatpush1.bf16.msra.mxu0 0
  %270 = vmatprep.subr.bf16.mxu0 0
  %271 = vmatpush1.bf16.msra.mxu0 0
  %272 = vmatprep.subr.bf16.mxu0 0
  %273 = vmatpush1.bf16.msra.mxu0 0
  %274 = vmatprep.subr.bf16.mxu0 0
  %275 = vmatpush1.bf16.msra.mxu0 0
  %276 = vmatprep.subr.bf16.mxu0 0
  %277 = vmatpush1.bf16.msra.mxu0 0
  %278 = vmatprep.subr.bf16.mxu0 0
  %279 = vmatpush1.bf16.msra.mxu0 0
  %280 = vmatprep.subr.bf16.mxu0 0
  %281 = vmatpush1.bf16.msra.mxu0 0
  %282 = vmatprep.mubr.bf16.mxu0 0
  %283 = vmatmul.mubr.bf16.gmra.mrb[0].mxu0 %v203
  %v284 = vpop.f32.mrb[0].mxu0
  %v285 = vadd.f32 %v244, %v284
  %v286 = vpop.f32.mrb[0].mxu0
  %v287 = vpop.f32.mrb[0].mxu0
  %v288 = vadd.f32 %v247, %v287
  %v289 = vpop.f32.mrb[0].mxu0
  %290 = vdwg.mxu0
  %v291 = vld [vmem:[%s2] sm:$0xff]
  %v292 = vld [vmem:[%s2 + $0x8] sm:$0xf]
  %294 = vset.pattern.permute.xlu0 0
  %295 = vperm.xlu0 %294, %v291
  %v296 = vpop.permute.xlu0 %295
  %299 = vset.pattern.permute.xlu0 0
  %300 = vperm.xlu0 %299, %v292
  %v301 = vpop.permute.xlu0 %300
  %v303 = vmul.f32 %v285, %v296
  %v304 = vmul.f32 %v288, %v301
  %v305 = vld [vmem:[%s3] sm:$0xff]
  %v306 = vld [vmem:[%s3 + $0x8] sm:$0xf]
  %308 = vset.pattern.permute.xlu0 0
  %309 = vperm.xlu0 %308, %v305
  %v310 = vpop.permute.xlu0 %309
  %313 = vset.pattern.permute.xlu0 0
  %314 = vperm.xlu0 %313, %v306
  %v315 = vpop.permute.xlu0 %314
  %v317 = vadd.f32 %v303, %v310
  %v318 = vadd.f32 %v304, %v315
  %319 = vst [vmem:[%s4] sm:$0xff] %v317
  %320 = vst [vmem:[%s4 + $0x8] sm:$0xf] %v318
  // Predicated region
  $region18: #{eeegnet_b_forward.14} parent=0 // pred_check
    _
  $region19: #{eeegnet_b_forward.14} parent=0 // pred_check_branch
    %322 = sbr.rel (0) target = $region21
  $region20: #{eeegnet_b_forward.14} parent=0 // pred_region
    _
  $region21: #{eeegnet_b_forward.14} parent=0 // pred_fallthru
    _
  // Predicated region
  $region22: #{eeegnet_b_forward.14} parent=0 // pred_check
    _
  $region23: #{eeegnet_b_forward.14} parent=0 // pred_check_branch
    %324 = sbr.rel (0) target = $region25
  $region24: #{eeegnet_b_forward.14} parent=0 // pred_region
    _
  $region25: #{eeegnet_b_forward.14} parent=0 // pred_fallthru
    _

// kernel: eeegnet_b_forward.15
$region0: #{eeegnet_b_forward.15}
  #allocation0 [shape = 'u32[]', space=smem, size = 0x4, offset = 0x4, fixed_abs, tag = 'smem constant byte address 0x4 - core index']
  #allocation1 [shape = 'u32[144,128]{1,0:T(1,128)}', space=vmem, size = 0x12000, scoped, tag = 'internal scratch']
  %s0 = inlined_call_operand.vmem [shape: bf16[6,12], index: 0, kind: input, shape index: {}]
  %s1 = inlined_call_operand.vmem [shape: bf16[12,128], index: 1, kind: input, shape index: {}]
  %s2 = inlined_call_operand.vmem [shape: f32[6,1], index: 2, kind: input, shape index: {}]
  %s3 = inlined_call_operand.vmem [shape: f32[6,1], index: 3, kind: input, shape index: {}]
  %s4 = inlined_call_operand.vmem [shape: f32[6,128], index: 4, kind: input, shape index: {}]
  %s5 = inlined_call_operand.vmem [shape: f32[6,128], index: 5, kind: output, shape index: {}]
  %s6 = sld [smem:[#allocation0]]
  $region30: #{eeegnet_b_forward.15} parent=0
    _
  %s8 = ssub.s32 1, %s6
  %s9 = scalar_select 0, %s8, %s6
  // Predicated region
  $region2: #{eeegnet_b_forward.15} parent=0 // pred_check
    _
  $region3: #{eeegnet_b_forward.15} parent=0 // pred_check_branch
    %11 = sbr.rel (0) target = $region5
  $region4: #{eeegnet_b_forward.15} parent=0 // pred_region
    _
  $region5: #{eeegnet_b_forward.15} parent=0 // pred_fallthru
    _
  // Predicated region
  $region6: #{eeegnet_b_forward.15} parent=0 // pred_check
    _
  $region7: #{eeegnet_b_forward.15} parent=0 // pred_check_branch
    %13 = sbr.rel (0) target = $region9
  $region8: #{eeegnet_b_forward.15} parent=0 // pred_region
    _
  $region9: #{eeegnet_b_forward.15} parent=0 // pred_fallthru
    _
  // Predicated region
  $region10: #{eeegnet_b_forward.15} parent=0 // pred_check
    _
  $region11: #{eeegnet_b_forward.15} parent=0 // pred_check_branch
    %15 = sbr.rel (0) target = $region13
  $region12: #{eeegnet_b_forward.15} parent=0 // pred_region
    _
  $region13: #{eeegnet_b_forward.15} parent=0 // pred_fallthru
    _
  // Predicated region
  $region14: #{eeegnet_b_forward.15} parent=0 // pred_check
    _
  $region15: #{eeegnet_b_forward.15} parent=0 // pred_check_branch
    %17 = sbr.rel (0) target = $region17
  $region16: #{eeegnet_b_forward.15} parent=0 // pred_region
    _
  $region17: #{eeegnet_b_forward.15} parent=0 // pred_fallthru
    _
  // Predicated region
  $region18: #{eeegnet_b_forward.15} parent=0 // pred_check
    _
  $region19: #{eeegnet_b_forward.15} parent=0 // pred_check_branch
    %19 = sbr.rel (0) target = $region21
  $region20: #{eeegnet_b_forward.15} parent=0 // pred_region
    _
  $region21: #{eeegnet_b_forward.15} parent=0 // pred_fallthru
    _
  %v21 = vld [vmem:[%s0] sm:$0x7]
  %v22 = vld [vmem:[%s1] sm:$0xf]
  %v23 = vld [vmem:[%s1 + $0x4] sm:$0x3]
  %v26 = vunpack.c.l.b16 %v22
  %v27 = vunpack.c.l.b16 %v23
  %v28 = vpack.c.b16 %v27, %v26
  %vm29 = vcmask 97280
  %v31 = vsel %vm29, %v21, 0
  %vm33 = vcmask 1045504
  %v35 = vsel %vm33, %v28, 0
  %37 = vmatprep.subr.bf16.mxu0 0
  %38 = vmatpush1.bf16.msra.mxu0 %v35
  %39 = vmatprep.subr.bf16.mxu0 0
  %40 = vmatpush1.bf16.msra.mxu0 0
  %41 = vmatprep.subr.bf16.mxu0 0
  %42 = vmatpush1.bf16.msra.mxu0 0
  %43 = vmatprep.subr.bf16.mxu0 0
  %44 = vmatpush1.bf16.msra.mxu0 0
  %45 = vmatprep.subr.bf16.mxu0 0
  %46 = vmatpush1.bf16.msra.mxu0 0
  %47 = vmatprep.subr.bf16.mxu0 0
  %48 = vmatpush1.bf16.msra.mxu0 0
  %49 = vmatprep.subr.bf16.mxu0 0
  %50 = vmatpush1.bf16.msra.mxu0 0
  %51 = vmatprep.subr.bf16.mxu0 0
  %52 = vmatpush1.bf16.msra.mxu0 0
  %53 = vmatprep.subr.bf16.mxu0 0
  %54 = vmatpush1.bf16.msra.mxu0 0
  %55 = vmatprep.subr.bf16.mxu0 0
  %56 = vmatpush1.bf16.msra.mxu0 0
  %57 = vmatprep.subr.bf16.mxu0 0
  %58 = vmatpush1.bf16.msra.mxu0 0
  %59 = vmatprep.subr.bf16.mxu0 0
  %60 = vmatpush1.bf16.msra.mxu0 0
  %61 = vmatprep.subr.bf16.mxu0 0
  %62 = vmatpush1.bf16.msra.mxu0 0
  %63 = vmatprep.subr.bf16.mxu0 0
  %64 = vmatpush1.bf16.msra.mxu0 0
  %65 = vmatprep.subr.bf16.mxu0 0
  %66 = vmatpush1.bf16.msra.mxu0 0
  %67 = vmatprep.subr.bf16.mxu0 0
  %68 = vmatpush1.bf16.msra.mxu0 0
  %69 = vmatprep.mubr.bf16.mxu0 0
  %70 = vmatmul.mubr.bf16.gmra.mrb[0].mxu0 %v31
  %v71 = vpop.f32.mrb[0].mxu0
  %v72 = vadd.f32 0.0, %v71
  %v73 = vpop.f32.mrb[0].mxu0
  %v74 = vpop.f32.mrb[0].mxu0
  %v75 = vpop.f32.mrb[0].mxu0
  %76 = vdwg.mxu0
  %v77 = vld [vmem:[%s2] sm:$0x3f]
  %79 = vset.pattern.permute.xlu0 0
  %80 = vperm.xlu0 %79, %v77
  %v81 = vpop.permute.xlu0 %80
  %v83 = vmul.f32 %v72, %v81
  %v84 = vld [vmem:[%s3] sm:$0x3f]
  %86 = vset.pattern.permute.xlu0 0
  %87 = vperm.xlu0 %86, %v84
  %v88 = vpop.permute.xlu0 %87
  %v90 = vadd.f32 %v83, %v88
  %v91 = vld [vmem:[%s4] sm:$0x3f]
  %v92 = vadd.f32 %v90, %v91
  %93 = vst [vmem:[%s5] sm:$0x3f] %v92
  // Predicated region
  $region22: #{eeegnet_b_forward.15} parent=0 // pred_check
    _
  $region23: #{eeegnet_b_forward.15} parent=0 // pred_check_branch
    %95 = sbr.rel (0) target = $region25
  $region24: #{eeegnet_b_forward.15} parent=0 // pred_region
    _
  $region25: #{eeegnet_b_forward.15} parent=0 // pred_fallthru
    _
  // Predicated region
  $region26: #{eeegnet_b_forward.15} parent=0 // pred_check
    _
  $region27: #{eeegnet_b_forward.15} parent=0 // pred_check_branch
    %97 = sbr.rel (0) target = $region29
  $region28: #{eeegnet_b_forward.15} parent=0 // pred_region
    _
  $region29: #{eeegnet_b_forward.15} parent=0 // pred_fallthru
    _

// kernel: eeegnet_b_forward.16
$region0: #{eeegnet_b_forward.16}
  #allocation0 [shape = 'u32[]', space=smem, size = 0x4, offset = 0x4, fixed_abs, tag = 'smem constant byte address 0x4 - core index']
  #allocation1 [shape = 'u32[144,128]{1,0:T(1,128)}', space=vmem, size = 0x12000, scoped, tag = 'internal scratch']
  %s0 = inlined_call_operand.vmem [shape: bf16[12,6], index: 0, kind: input, shape index: {}]
  %s1 = inlined_call_operand.vmem [shape: bf16[6,128], index: 1, kind: input, shape index: {}]
  %s2 = inlined_call_operand.vmem [shape: f32[12,1], index: 2, kind: input, shape index: {}]
  %s3 = inlined_call_operand.vmem [shape: f32[12,1], index: 3, kind: input, shape index: {}]
  %s4 = inlined_call_operand.vmem [shape: f32[12,128], index: 4, kind: output, shape index: {}]
  %s5 = sld [smem:[#allocation0]]
  $region26: #{eeegnet_b_forward.16} parent=0
    _
  %s7 = ssub.s32 1, %s5
  %s8 = scalar_select 0, %s7, %s5
  // Predicated region
  $region2: #{eeegnet_b_forward.16} parent=0 // pred_check
    _
  $region3: #{eeegnet_b_forward.16} parent=0 // pred_check_branch
    %10 = sbr.rel (0) target = $region5
  $region4: #{eeegnet_b_forward.16} parent=0 // pred_region
    _
  $region5: #{eeegnet_b_forward.16} parent=0 // pred_fallthru
    _
  // Predicated region
  $region6: #{eeegnet_b_forward.16} parent=0 // pred_check
    _
  $region7: #{eeegnet_b_forward.16} parent=0 // pred_check_branch
    %12 = sbr.rel (0) target = $region9
  $region8: #{eeegnet_b_forward.16} parent=0 // pred_region
    _
  $region9: #{eeegnet_b_forward.16} parent=0 // pred_fallthru
    _
  // Predicated region
  $region10: #{eeegnet_b_forward.16} parent=0 // pred_check
    _
  $region11: #{eeegnet_b_forward.16} parent=0 // pred_check_branch
    %14 = sbr.rel (0) target = $region13
  $region12: #{eeegnet_b_forward.16} parent=0 // pred_region
    _
  $region13: #{eeegnet_b_forward.16} parent=0 // pred_fallthru
    _
  // Predicated region
  $region14: #{eeegnet_b_forward.16} parent=0 // pred_check
    _
  $region15: #{eeegnet_b_forward.16} parent=0 // pred_check_branch
    %16 = sbr.rel (0) target = $region17
  $region16: #{eeegnet_b_forward.16} parent=0 // pred_region
    _
  $region17: #{eeegnet_b_forward.16} parent=0 // pred_fallthru
    _
  %v18 = vld [vmem:[%s0] sm:$0xf]
  %v19 = vld [vmem:[%s0 + $0x4] sm:$0x3]
  %v20 = vld [vmem:[%s1] sm:$0x7]
  %v23 = vunpack.c.l.b16 %v18
  %v24 = vunpack.c.l.b16 %v19
  %v25 = vpack.c.b16 %v24, %v23
  %vm26 = vcmask 48128
  %v28 = vsel %vm26, %v25, 0
  %vm30 = vcmask 1042432
  %v32 = vsel %vm30, %v20, 0
  %34 = vmatprep.subr.bf16.mxu0 0
  %35 = vmatpush1.bf16.msra.mxu0 %v32
  %36 = vmatprep.subr.bf16.mxu0 0
  %37 = vmatpush1.bf16.msra.mxu0 0
  %38 = vmatprep.subr.bf16.mxu0 0
  %39 = vmatpush1.bf16.msra.mxu0 0
  %40 = vmatprep.subr.bf16.mxu0 0
  %41 = vmatpush1.bf16.msra.mxu0 0
  %42 = vmatprep.subr.bf16.mxu0 0
  %43 = vmatpush1.bf16.msra.mxu0 0
  %44 = vmatprep.subr.bf16.mxu0 0
  %45 = vmatpush1.bf16.msra.mxu0 0
  %46 = vmatprep.subr.bf16.mxu0 0
  %47 = vmatpush1.bf16.msra.mxu0 0
  %48 = vmatprep.subr.bf16.mxu0 0
  %49 = vmatpush1.bf16.msra.mxu0 0
  %50 = vmatprep.subr.bf16.mxu0 0
  %51 = vmatpush1.bf16.msra.mxu0 0
  %52 = vmatprep.subr.bf16.mxu0 0
  %53 = vmatpush1.bf16.msra.mxu0 0
  %54 = vmatprep.subr.bf16.mxu0 0
  %55 = vmatpush1.bf16.msra.mxu0 0
  %56 = vmatprep.subr.bf16.mxu0 0
  %57 = vmatpush1.bf16.msra.mxu0 0
  %58 = vmatprep.subr.bf16.mxu0 0
  %59 = vmatpush1.bf16.msra.mxu0 0
  %60 = vmatprep.subr.bf16.mxu0 0
  %61 = vmatpush1.bf16.msra.mxu0 0
  %62 = vmatprep.subr.bf16.mxu0 0
  %63 = vmatpush1.bf16.msra.mxu0 0
  %64 = vmatprep.subr.bf16.mxu0 0
  %65 = vmatpush1.bf16.msra.mxu0 0
  %66 = vmatprep.mubr.bf16.mxu0 0
  %67 = vmatmul.mubr.bf16.gmra.mrb[0].mxu0 %v28
  %v68 = vpop.f32.mrb[0].mxu0
  %v69 = vadd.f32 0.0, %v68
  %v70 = vpop.f32.mrb[0].mxu0
  %v71 = vpop.f32.mrb[0].mxu0
  %v72 = vadd.f32 0.0, %v71
  %v73 = vpop.f32.mrb[0].mxu0
  %74 = vdwg.mxu0
  %v75 = vld [vmem:[%s2] sm:$0xff]
  %v76 = vld [vmem:[%s2 + $0x8] sm:$0xf]
  %78 = vset.pattern.permute.xlu0 0
  %79 = vperm.xlu0 %78, %v75
  %v80 = vpop.permute.xlu0 %79
  %83 = vset.pattern.permute.xlu0 0
  %84 = vperm.xlu0 %83, %v76
  %v85 = vpop.permute.xlu0 %84
  %v87 = vmul.f32 %v69, %v80
  %v88 = vmul.f32 %v72, %v85
  %v89 = vld [vmem:[%s3] sm:$0xff]
  %v90 = vld [vmem:[%s3 + $0x8] sm:$0xf]
  %92 = vset.pattern.permute.xlu0 0
  %93 = vperm.xlu0 %92, %v89
  %v94 = vpop.permute.xlu0 %93
  %97 = vset.pattern.permute.xlu0 0
  %98 = vperm.xlu0 %97, %v90
  %v99 = vpop.permute.xlu0 %98
  %v101 = vadd.f32 %v87, %v94
  %v102 = vadd.f32 %v88, %v99
  %103 = vst [vmem:[%s4] sm:$0xff] %v101
  %104 = vst [vmem:[%s4 + $0x8] sm:$0xf] %v102
  // Predicated region
  $region18: #{eeegnet_b_forward.16} parent=0 // pred_check
    _
  $region19: #{eeegnet_b_forward.16} parent=0 // pred_check_branch
    %106 = sbr.rel (0) target = $region21
  $region20: #{eeegnet_b_forward.16} parent=0 // pred_region
    _
  $region21: #{eeegnet_b_forward.16} parent=0 // pred_fallthru
    _
  // Predicated region
  $region22: #{eeegnet_b_forward.16} parent=0 // pred_check
    _
  $region23: #{eeegnet_b_forward.16} parent=0 // pred_check_branch
    %108 = sbr.rel (0) target = $region25
  $region24: #{eeegnet_b_forward.16} parent=0 // pred_region
    _
  $region25: #{eeegnet_b_forward.16} parent=0 // pred_fallthru
    _

// kernel: eeegnet_b_forward.19
$region0: #{eeegnet_b_forward.19}
  #allocation0 [shape = 'u32[]', space=smem, size = 0x4, offset = 0x4, fixed_abs, tag = 'smem constant byte address 0x4 - core index']
  #allocation1 [shape = 'u32[144,128]{1,0:T(1,128)}', space=vmem, size = 0x12000, scoped, tag = 'internal scratch']
  %s0 = inlined_call_operand.vmem [shape: f32[8,6], index: 0, kind: input, shape index: {}]
  %s1 = inlined_call_operand.vmem [shape: f32[6,320], index: 1, kind: input, shape index: {}]
  %s2 = inlined_call_operand.vmem [shape: f32[1,320], index: 2, kind: input, shape index: {}]
  %s3 = inlined_call_operand.vmem [shape: f32[1,320], index: 3, kind: input, shape index: {}]
  %s4 = inlined_call_operand.vmem [shape: f32[320,16], index: 4, kind: input, shape index: {}]
  %s5 = inlined_call_operand.vmem [shape: f32[1,16], index: 5, kind: input, shape index: {}]
  %s6 = inlined_call_operand.vmem [shape: f32[8,16], index: 6, kind: output, shape index: {}]
  %s7 = sld [smem:[#allocation0]]
  $region34: #{eeegnet_b_forward.19} parent=0
    _
  %s9 = ssub.s32 1, %s7
  %s10 = scalar_select 0, %s9, %s7
  // Predicated region
  $region2: #{eeegnet_b_forward.19} parent=0 // pred_check
    _
  $region3: #{eeegnet_b_forward.19} parent=0 // pred_check_branch
    %12 = sbr.rel (0) target = $region5
  $region4: #{eeegnet_b_forward.19} parent=0 // pred_region
    _
  $region5: #{eeegnet_b_forward.19} parent=0 // pred_fallthru
    _
  // Predicated region
  $region6: #{eeegnet_b_forward.19} parent=0 // pred_check
    _
  $region7: #{eeegnet_b_forward.19} parent=0 // pred_check_branch
    %14 = sbr.rel (0) target = $region9
  $region8: #{eeegnet_b_forward.19} parent=0 // pred_region
    _
  $region9: #{eeegnet_b_forward.19} parent=0 // pred_fallthru
    _
  // Predicated region
  $region10: #{eeegnet_b_forward.19} parent=0 // pred_check
    _
  $region11: #{eeegnet_b_forward.19} parent=0 // pred_check_branch
    %16 = sbr.rel (0) target = $region13
  $region12: #{eeegnet_b_forward.19} parent=0 // pred_region
    _
  $region13: #{eeegnet_b_forward.19} parent=0 // pred_fallthru
    _
  // Predicated region
  $region14: #{eeegnet_b_forward.19} parent=0 // pred_check
    _
  $region15: #{eeegnet_b_forward.19} parent=0 // pred_check_branch
    %18 = sbr.rel (0) target = $region17
  $region16: #{eeegnet_b_forward.19} parent=0 // pred_region
    _
  $region17: #{eeegnet_b_forward.19} parent=0 // pred_fallthru
    _
  // Predicated region
  $region18: #{eeegnet_b_forward.19} parent=0 // pred_check
    _
  $region19: #{eeegnet_b_forward.19} parent=0 // pred_check_branch
    %20 = sbr.rel (0) target = $region21
  $region20: #{eeegnet_b_forward.19} parent=0 // pred_region
    _
  $region21: #{eeegnet_b_forward.19} parent=0 // pred_fallthru
    _
  // Predicated region
  $region22: #{eeegnet_b_forward.19} parent=0 // pred_check
    _
  $region23: #{eeegnet_b_forward.19} parent=0 // pred_check_branch
    %22 = sbr.rel (0) target = $region25
  $region24: #{eeegnet_b_forward.19} parent=0 // pred_region
    _
  $region25: #{eeegnet_b_forward.19} parent=0 // pred_fallthru
    _
  %v23 = vld [vmem:[%s0] sm:$0xff]
  %v24 = vld [vmem:[%s1] sm:$0x3f]
  %v25 = vld [vmem:[%s1 + $0x8] sm:$0x3f]
  %v26 = vld [vmem:[%s1 + $0x10] sm:$0x3f]
  %vm27 = vcmask 48128
  %v29 = vsel %vm27, %v23, 0
  %vm31 = vcmask 1045504
  %v33 = vsel %vm31, %v24, 0
  %v36 = vsel %vm31, %v25, 0
  %v39 = vsel %vm31, %v26, 0
  %41 = vmatprep.subr.mxu0 %v36
  %42 = vmatpush1.msra.mxu0 %v33
  %43 = vmatprep.subr.mxu0 0.0
  %44 = vmatpush1.msra.mxu0 0.0
  %45 = vmatprep.subr.mxu0 0.0
  %46 = vmatpush1.msra.mxu0 0.0
  %47 = vmatprep.subr.mxu0 0.0
  %48 = vmatpush1.msra.mxu0 0.0
  %49 = vmatprep.subr.mxu0 0.0
  %50 = vmatpush1.msra.mxu0 0.0
  %51 = vmatprep.subr.mxu0 0.0
  %52 = vmatpush1.msra.mxu0 0.0
  %53 = vmatprep.subr.mxu0 0.0
  %54 = vmatpush1.msra.mxu0 0.0
  %55 = vmatprep.subr.mxu0 0.0
  %56 = vmatpush1.msra.mxu0 0.0
  %57 = vmatprep.subr.mxu0 0.0
  %58 = vmatpush1.msra.mxu0 0.0
  %59 = vmatprep.subr.mxu0 0.0
  %60 = vmatpush1.msra.mxu0 0.0
  %61 = vmatprep.subr.mxu0 0.0
  %62 = vmatpush1.msra.mxu0 0.0
  %63 = vmatprep.subr.mxu0 0.0
  %64 = vmatpush1.msra.mxu0 0.0
  %65 = vmatprep.subr.mxu0 0.0
  %66 = vmatpush1.msra.mxu0 0.0
  %67 = vmatprep.subr.mxu0 0.0
  %68 = vmatpush1.msra.mxu0 0.0
  %69 = vmatprep.subr.mxu0 0.0
  %70 = vmatpush1.msra.mxu0 0.0
  %71 = vmatprep.subr.mxu0 0.0
  %72 = vmatpush1.msra.mxu0 0.0
  %73 = vmatprep.subr.mxu0 0.0
  %74 = vmatpush1.msra.mxu0 0.0
  %75 = vmatprep.subr.mxu0 0.0
  %76 = vmatpush1.msra.mxu0 0.0
  %77 = vmatprep.subr.mxu0 0.0
  %78 = vmatpush1.msra.mxu0 0.0
  %79 = vmatprep.subr.mxu0 0.0
  %80 = vmatpush1.msra.mxu0 0.0
  %81 = vmatprep.subr.mxu0 0.0
  %82 = vmatpush1.msra.mxu0 0.0
  %83 = vmatprep.subr.mxu0 0.0
  %84 = vmatpush1.msra.mxu0 0.0
  %85 = vmatprep.subr.mxu0 0.0
  %86 = vmatpush1.msra.mxu0 0.0
  %87 = vmatprep.subr.mxu0 0.0
  %88 = vmatpush1.msra.mxu0 0.0
  %89 = vmatprep.subr.mxu0 0.0
  %90 = vmatpush1.msra.mxu0 0.0
  %91 = vmatprep.subr.mxu0 0.0
  %92 = vmatpush1.msra.mxu0 0.0
  %93 = vmatprep.subr.mxu0 0.0
  %94 = vmatpush1.msra.mxu0 0.0
  %95 = vmatprep.subr.mxu0 0.0
  %96 = vmatpush1.msra.mxu0 0.0
  %97 = vmatprep.subr.mxu0 0.0
  %98 = vmatpush1.msra.mxu0 0.0
  %99 = vmatprep.subr.mxu0 0.0
  %100 = vmatpush1.msra.mxu0 0.0
  %101 = vmatprep.subr.mxu0 0.0
  %102 = vmatpush1.msra.mxu0 0.0
  %103 = vmatprep.subr.mxu0 0.0
  %104 = vmatpush1.msra.mxu0 0.0
  %105 = vmatprep.mubr.f32.mxu0 0.0
  %106 = vmatmul.mubr.f32.gmra.mrb[0].mxu0 %v29
  %v107 = vpop.f32.mrb[0].mxu0
  %v108 = vadd.f32 0.0, %v107
  %v109 = vpop.f32.mrb[0].mxu0
  %v110 = vadd.f32 0.0, %v109
  %111 = vdwg.mxu0
  %112 = vmatprep.subr.mxu0 0.0
  %113 = vmatpush1.msra.mxu0 %v39
  %114 = vmatprep.subr.mxu0 0.0
  %115 = vmatpush1.msra.mxu0 0.0
  %116 = vmatprep.subr.mxu0 0.0
  %117 = vmatpush1.msra.mxu0 0.0
  %118 = vmatprep.subr.mxu0 0.0
  %119 = vmatpush1.msra.mxu0 0.0
  %120 = vmatprep.subr.mxu0 0.0
  %121 = vmatpush1.msra.mxu0 0.0
  %122 = vmatprep.subr.mxu0 0.0
  %123 = vmatpush1.msra.mxu0 0.0
  %124 = vmatprep.subr.mxu0 0.0
  %125 = vmatpush1.msra.mxu0 0.0
  %126 = vmatprep.subr.mxu0 0.0
  %127 = vmatpush1.msra.mxu0 0.0
  %128 = vmatprep.subr.mxu0 0.0
  %129 = vmatpush1.msra.mxu0 0.0
  %130 = vmatprep.subr.mxu0 0.0
  %131 = vmatpush1.msra.mxu0 0.0
  %132 = vmatprep.subr.mxu0 0.0
  %133 = vmatpush1.msra.mxu0 0.0
  %134 = vmatprep.subr.mxu0 0.0
  %135 = vmatpush1.msra.mxu0 0.0
  %136 = vmatprep.subr.mxu0 0.0
  %137 = vmatpush1.msra.mxu0 0.0
  %138 = vmatprep.subr.mxu0 0.0
  %139 = vmatpush1.msra.mxu0 0.0
  %140 = vmatprep.subr.mxu0 0.0
  %141 = vmatpush1.msra.mxu0 0.0
  %142 = vmatprep.subr.mxu0 0.0
  %143 = vmatpush1.msra.mxu0 0.0
  %144 = vmatprep.subr.mxu0 0.0
  %145 = vmatpush1.msra.mxu0 0.0
  %146 = vmatprep.subr.mxu0 0.0
  %147 = vmatpush1.msra.mxu0 0.0
  %148 = vmatprep.subr.mxu0 0.0
  %149 = vmatpush1.msra.mxu0 0.0
  %150 = vmatprep.subr.mxu0 0.0
  %151 = vmatpush1.msra.mxu0 0.0
  %152 = vmatprep.subr.mxu0 0.0
  %153 = vmatpush1.msra.mxu0 0.0
  %154 = vmatprep.subr.mxu0 0.0
  %155 = vmatpush1.msra.mxu0 0.0
  %156 = vmatprep.subr.mxu0 0.0
  %157 = vmatpush1.msra.mxu0 0.0
  %158 = vmatprep.subr.mxu0 0.0
  %159 = vmatpush1.msra.mxu0 0.0
  %160 = vmatprep.subr.mxu0 0.0
  %161 = vmatpush1.msra.mxu0 0.0
  %162 = vmatprep.subr.mxu0 0.0
  %163 = vmatpush1.msra.mxu0 0.0
  %164 = vmatprep.subr.mxu0 0.0
  %165 = vmatpush1.msra.mxu0 0.0
  %166 = vmatprep.subr.mxu0 0.0
  %167 = vmatpush1.msra.mxu0 0.0
  %168 = vmatprep.subr.mxu0 0.0
  %169 = vmatpush1.msra.mxu0 0.0
  %170 = vmatprep.subr.mxu0 0.0
  %171 = vmatpush1.msra.mxu0 0.0
  %172 = vmatprep.subr.mxu0 0.0
  %173 = vmatpush1.msra.mxu0 0.0
  %174 = vmatprep.subr.mxu0 0.0
  %175 = vmatpush1.msra.mxu0 0.0
  %176 = vmatprep.mubr.f32.mxu0 0.0
  %177 = vmatmul.mubr.f32.gmra.mrb[0].mxu0 %v29
  %v178 = vpop.f32.mrb[0].mxu0
  %v179 = vadd.f32 0.0, %v178
  %v180 = vpop.f32.mrb[0].mxu0
  %181 = vdwg.mxu0
  %v182 = vld [vmem:[%s2] sm:$0x7]
  %v184 = vlaneseq
  %v185 = vshrl.u32 %v184, 7
  %v186 = vsub.s32 0, %v185
  %v187 = vrot.slane %v182, %v186
  %v188 = vlaneseq
  %v189 = vshrl.u32 %v188, 7
  %v190 = vsub.s32 1, %v189
  %v191 = vrot.slane %v182, %v190
  %v192 = vlaneseq
  %v193 = vshrl.u32 %v192, 7
  %v194 = vsub.s32 2, %v193
  %v195 = vrot.slane %v182, %v194
  %v199 = vmul.f32 %v108, %v187
  %v200 = vmul.f32 %v110, %v191
  %v201 = vmul.f32 %v179, %v195
  %v202 = vld [vmem:[%s3] sm:$0x7]
  %v204 = vlaneseq
  %v205 = vshrl.u32 %v204, 7
  %v206 = vsub.s32 0, %v205
  %v207 = vrot.slane %v202, %v206
  %v208 = vlaneseq
  %v209 = vshrl.u32 %v208, 7
  %v210 = vsub.s32 1, %v209
  %v211 = vrot.slane %v202, %v210
  %v212 = vlaneseq
  %v213 = vshrl.u32 %v212, 7
  %v214 = vsub.s32 2, %v213
  %v215 = vrot.slane %v202, %v214
  %v219 = vadd.f32 %v199, %v207
  %v220 = vadd.f32 %v200, %v211
  %v221 = vadd.f32 %v201, %v215
  %v222 = vmax.f32 %v219, 0.0
  %v223 = vmax.f32 %v220, 0.0
  %v224 = vmax.f32 %v221, 0.0
  %v225 = vmin.f32 %v222, 6.0
  %v226 = vmin.f32 %v223, 6.0
  %v227 = vmin.f32 %v224, 6.0
  %v228 = vld [vmem:[%s4] sm:$0xff]
  %v229 = vld [vmem:[%s4 + $0x8] sm:$0xff]
  %v230 = vld [vmem:[%s4 + $0x10] sm:$0xff]
  %v231 = vld [vmem:[%s4 + $0x18] sm:$0xff]
  %v232 = vld [vmem:[%s4 + $0x20] sm:$0xff]
  %v233 = vld [vmem:[%s4 + $0x28] sm:$0xff]
  %v234 = vld [vmem:[%s4 + $0x30] sm:$0xff]
  %v235 = vld [vmem:[%s4 + $0x38] sm:$0xff]
  %v236 = vld [vmem:[%s4 + $0x40] sm:$0xff]
  %v237 = vld [vmem:[%s4 + $0x48] sm:$0xff]
  %v238 = vld [vmem:[%s4 + $0x50] sm:$0xff]
  %v239 = vld [vmem:[%s4 + $0x58] sm:$0xff]
  %v240 = vld [vmem:[%s4 + $0x60] sm:$0xff]
  %v241 = vld [vmem:[%s4 + $0x68] sm:$0xff]
  %v242 = vld [vmem:[%s4 + $0x70] sm:$0xff]
  %v243 = vld [vmem:[%s4 + $0x78] sm:$0xff]
  %v244 = vld [vmem:[%s4 + $0x80] sm:$0xff]
  %v245 = vld [vmem:[%s4 + $0x88] sm:$0xff]
  %v246 = vld [vmem:[%s4 + $0x90] sm:$0xff]
  %v247 = vld [vmem:[%s4 + $0x98] sm:$0xff]
  %v248 = vld [vmem:[%s4 + $0xa0] sm:$0xff]
  %v249 = vld [vmem:[%s4 + $0xa8] sm:$0xff]
  %v250 = vld [vmem:[%s4 + $0xb0] sm:$0xff]
  %v251 = vld [vmem:[%s4 + $0xb8] sm:$0xff]
  %v252 = vld [vmem:[%s4 + $0xc0] sm:$0xff]
  %v253 = vld [vmem:[%s4 + $0xc8] sm:$0xff]
  %v254 = vld [vmem:[%s4 + $0xd0] sm:$0xff]
  %v255 = vld [vmem:[%s4 + $0xd8] sm:$0xff]
  %v256 = vld [vmem:[%s4 + $0xe0] sm:$0xff]
  %v257 = vld [vmem:[%s4 + $0xe8] sm:$0xff]
  %v258 = vld [vmem:[%s4 + $0xf0] sm:$0xff]
  %v259 = vld [vmem:[%s4 + $0xf8] sm:$0xff]
  %v260 = vld [vmem:[%s4 + $0x100] sm:$0xff]
  %v261 = vld [vmem:[%s4 + $0x108] sm:$0xff]
  %v262 = vld [vmem:[%s4 + $0x110] sm:$0xff]
  %v263 = vld [vmem:[%s4 + $0x118] sm:$0xff]
  %v264 = vld [vmem:[%s4 + $0x120] sm:$0xff]
  %v265 = vld [vmem:[%s4 + $0x128] sm:$0xff]
  %v266 = vld [vmem:[%s4 + $0x130] sm:$0xff]
  %v267 = vld [vmem:[%s4 + $0x138] sm:$0xff]
  %v268 = vld [vmem:[%s5] sm:$0x1]
  %v270 = vlaneseq
  %v271 = vshrl.u32 %v270, 7
  %v272 = vsub.s32 0, %v271
  %v273 = vrot.slane %v268, %v272
  %vm275 = vcmask 523264
  %v277 = vsel %vm275, %v227, 0
  %279 = vmatprep.subr.mxu0 0.0
  %280 = vmatpush1.msra.mxu0 %v228
  %281 = vmatprep.subr.mxu0 0.0
  %282 = vmatpush1.msra.mxu0 %v229
  %283 = vmatprep.subr.mxu0 0.0
  %284 = vmatpush1.msra.mxu0 %v230
  %285 = vmatprep.subr.mxu0 0.0
  %286 = vmatpush1.msra.mxu0 %v231
  %287 = vmatprep.subr.mxu0 0.0
  %288 = vmatpush1.msra.mxu0 %v232
  %289 = vmatprep.subr.mxu0 0.0
  %290 = vmatpush1.msra.mxu0 %v233
  %291 = vmatprep.subr.mxu0 0.0
  %292 = vmatpush1.msra.mxu0 %v234
  %293 = vmatprep.subr.mxu0 0.0
  %294 = vmatpush1.msra.mxu0 %v235
  %295 = vmatprep.subr.mxu0 0.0
  %296 = vmatpush1.msra.mxu0 %v236
  %297 = vmatprep.subr.mxu0 0.0
  %298 = vmatpush1.msra.mxu0 %v237
  %299 = vmatprep.subr.mxu0 0.0
  %300 = vmatpush1.msra.mxu0 %v238
  %301 = vmatprep.subr.mxu0 0.0
  %302 = vmatpush1.msra.mxu0 %v239
  %303 = vmatprep.subr.mxu0 0.0
  %304 = vmatpush1.msra.mxu0 %v240
  %305 = vmatprep.subr.mxu0 0.0
  %306 = vmatpush1.msra.mxu0 %v241
  %307 = vmatprep.subr.mxu0 0.0
  %308 = vmatpush1.msra.mxu0 %v242
  %309 = vmatprep.subr.mxu0 0.0
  %310 = vmatpush1.msra.mxu0 %v243
  %311 = vmatprep.subr.mxu0 0.0
  %312 = vmatpush1.msra.mxu0 %v244
  %313 = vmatprep.subr.mxu0 0.0
  %314 = vmatpush1.msra.mxu0 %v245
  %315 = vmatprep.subr.mxu0 0.0
  %316 = vmatpush1.msra.mxu0 %v246
  %317 = vmatprep.subr.mxu0 0.0
  %318 = vmatpush1.msra.mxu0 %v247
  %319 = vmatprep.subr.mxu0 0.0
  %320 = vmatpush1.msra.mxu0 %v248
  %321 = vmatprep.subr.mxu0 0.0
  %322 = vmatpush1.msra.mxu0 %v249
  %323 = vmatprep.subr.mxu0 0.0
  %324 = vmatpush1.msra.mxu0 %v250
  %325 = vmatprep.subr.mxu0 0.0
  %326 = vmatpush1.msra.mxu0 %v251
  %327 = vmatprep.subr.mxu0 0.0
  %328 = vmatpush1.msra.mxu0 %v252
  %329 = vmatprep.subr.mxu0 0.0
  %330 = vmatpush1.msra.mxu0 %v253
  %331 = vmatprep.subr.mxu0 0.0
  %332 = vmatpush1.msra.mxu0 %v254
  %333 = vmatprep.subr.mxu0 0.0
  %334 = vmatpush1.msra.mxu0 %v255
  %335 = vmatprep.subr.mxu0 0.0
  %336 = vmatpush1.msra.mxu0 %v256
  %337 = vmatprep.subr.mxu0 0.0
  %338 = vmatpush1.msra.mxu0 %v257
  %339 = vmatprep.subr.mxu0 0.0
  %340 = vmatpush1.msra.mxu0 %v258
  %341 = vmatprep.subr.mxu0 0.0
  %342 = vmatpush1.msra.mxu0 %v259
  %343 = vmatprep.mubr.f32.mxu0 %v226
  %344 = vmatmul.mubr.f32.gmra.mrb[0].mxu0 %v225
  %v345 = vpop.f32.mrb[0].mxu0
  %v346 = vadd.f32 %v273, %v345
  %v347 = vpop.f32.mrb[0].mxu0
  %348 = vdwg.mxu0
  %349 = vmatprep.subr.mxu0 0.0
  %350 = vmatpush1.msra.mxu0 %v260
  %351 = vmatprep.subr.mxu0 0.0
  %352 = vmatpush1.msra.mxu0 %v261
  %353 = vmatprep.subr.mxu0 0.0
  %354 = vmatpush1.msra.mxu0 %v262
  %355 = vmatprep.subr.mxu0 0.0
  %356 = vmatpush1.msra.mxu0 %v263
  %357 = vmatprep.subr.mxu0 0.0
  %358 = vmatpush1.msra.mxu0 %v264
  %359 = vmatprep.subr.mxu0 0.0
  %360 = vmatpush1.msra.mxu0 %v265
  %361 = vmatprep.subr.mxu0 0.0
  %362 = vmatpush1.msra.mxu0 %v266
  %363 = vmatprep.subr.mxu0 0.0
  %364 = vmatpush1.msra.mxu0 %v267
  %365 = vmatprep.subr.mxu0 0.0
  %366 = vmatpush1.msra.mxu0 0.0
  %367 = vmatprep.subr.mxu0 0.0
  %368 = vmatpush1.msra.mxu0 0.0
  %369 = vmatprep.subr.mxu0 0.0
  %370 = vmatpush1.msra.mxu0 0.0
  %371 = vmatprep.subr.mxu0 0.0
  %372 = vmatpush1.msra.mxu0 0.0
  %373 = vmatprep.subr.mxu0 0.0
  %374 = vmatpush1.msra.mxu0 0.0
  %375 = vmatprep.subr.mxu0 0.0
  %376 = vmatpush1.msra.mxu0 0.0
  %377 = vmatprep.subr.mxu0 0.0
  %378 = vmatpush1.msra.mxu0 0.0
  %379 = vmatprep.subr.mxu0 0.0
  %380 = vmatpush1.msra.mxu0 0.0
  %381 = vmatprep.subr.mxu0 0.0
  %382 = vmatpush1.msra.mxu0 0.0
  %383 = vmatprep.subr.mxu0 0.0
  %384 = vmatpush1.msra.mxu0 0.0
  %385 = vmatprep.subr.mxu0 0.0
  %386 = vmatpush1.msra.mxu0 0.0
  %387 = vmatprep.subr.mxu0 0.0
  %388 = vmatpush1.msra.mxu0 0.0
  %389 = vmatprep.subr.mxu0 0.0
  %390 = vmatpush1.msra.mxu0 0.0
  %391 = vmatprep.subr.mxu0 0.0
  %392 = vmatpush1.msra.mxu0 0.0
  %393 = vmatprep.subr.mxu0 0.0
  %394 = vmatpush1.msra.mxu0 0.0
  %395 = vmatprep.subr.mxu0 0.0
  %396 = vmatpush1.msra.mxu0 0.0
  %397 = vmatprep.subr.mxu0 0.0
  %398 = vmatpush1.msra.mxu0 0.0
  %399 = vmatprep.subr.mxu0 0.0
  %400 = vmatpush1.msra.mxu0 0.0
  %401 = vmatprep.subr.mxu0 0.0
  %402 = vmatpush1.msra.mxu0 0.0
  %403 = vmatprep.subr.mxu0 0.0
  %404 = vmatpush1.msra.mxu0 0.0
  %405 = vmatprep.subr.mxu0 0.0
  %406 = vmatpush1.msra.mxu0 0.0
  %407 = vmatprep.subr.mxu0 0.0
  %408 = vmatpush1.msra.mxu0 0.0
  %409 = vmatprep.subr.mxu0 0.0
  %410 = vmatpush1.msra.mxu0 0.0
  %411 = vmatprep.subr.mxu0 0.0
  %412 = vmatpush1.msra.mxu0 0.0
  %413 = vmatprep.mubr.f32.mxu0 0.0
  %414 = vmatmul.mubr.f32.gmra.mrb[0].mxu0 %v277
  %v415 = vpop.f32.mrb[0].mxu0
  %v416 = vadd.f32 %v346, %v415
  %v417 = vpop.f32.mrb[0].mxu0
  %418 = vdwg.mxu0
  %vm419 = vcmask 130048
  %420 = vst.msk [vmem:[%s6] sm:$0xff] %vm419, %v416
  // Predicated region
  $region26: #{eeegnet_b_forward.19} parent=0 // pred_check
    _
  $region27: #{eeegnet_b_forward.19} parent=0 // pred_check_branch
    %422 = sbr.rel (0) target = $region29
  $region28: #{eeegnet_b_forward.19} parent=0 // pred_region
    _
  $region29: #{eeegnet_b_forward.19} parent=0 // pred_fallthru
    _
  // Predicated region
  $region30: #{eeegnet_b_forward.19} parent=0 // pred_check
    _
  $region31: #{eeegnet_b_forward.19} parent=0 // pred_check_branch
    %424 = sbr.rel (0) target = $region33
  $region32: #{eeegnet_b_forward.19} parent=0 // pred_region
    _
  $region33: #{eeegnet_b_forward.19} parent=0 // pred_fallthru
    _

</llo_original>
